<compile_context>
chip_gen: v7x
topology: tpu7x:2x2x1
jax: 0.10.0
libtpu: 0.0.40
codegen_flags: <defaults>
</compile_context>

<pallas_src>
import functools

import jax
import jax.numpy as jnp
from jax.experimental import pallas as pl
from jax.experimental.pallas import tpu as pltpu

_EPS = 1e-12  # F.normalize default eps (norm is clamped to this)

# Set by probe_single_buffer_codebook(); False => default double buffering.
_SINGLE_BUFFER_CODEBOOK = False


def _l2norm(t):
    # rsqrt on the eps^2-clamped squared norm == divide by eps-clamped norm,
    # but the rsqrt goes to the EUP (its own VLIW slot) and drops the divide.
    sq = jnp.sum(t * t, axis=-1, keepdims=True)
    return t * jax.lax.rsqrt(jnp.maximum(sq, _EPS * _EPS))


def probe_single_buffer_codebook():
    """Eagerly (outside any jit trace) check whether pl.Buffered(1) works.

    If the pipeline_mode API or single-buffered inputs are unsupported on this
    jax/libtpu combination we silently fall back to default double buffering.
    """
    global _SINGLE_BUFFER_CODEBOOK
    try:
        def _probe(a_ref, b_ref, o_ref):
            o_ref[...] = a_ref[...] + b_ref[...]

        a = jnp.arange(4 * 8 * 128, dtype=jnp.float32).reshape(4 * 8, 128)
        b = jnp.full((8, 128), 3.0, jnp.float32)
        out = pl.pallas_call(
            _probe,
            out_shape=jax.ShapeDtypeStruct((4 * 8, 128), jnp.float32),
            grid=(4,),
            in_specs=[
                pl.BlockSpec((8, 128), lambda i: (i, 0)),
                pl.BlockSpec((8, 128), lambda i: (0, 0),
                             pipeline_mode=pl.Buffered(1)),
            ],
            out_specs=pl.BlockSpec((8, 128), lambda i: (i, 0)),
        )(a, b)
        jax.block_until_ready(out)
        _SINGLE_BUFFER_CODEBOOK = bool(jnp.allclose(out, a + 3.0))
    except Exception:
        _SINGLE_BUFFER_CODEBOOK = False
    return _SINGLE_BUFFER_CODEBOOK


def _device_vmem_bytes():
    try:
        return int(pltpu.get_tpu_info().vmem_capacity_bytes)
    except Exception:
        return 64 << 20  # conservative: v7x per-TensorCore VMEM


def _round_up(x, m):
    return ((x + m - 1) // m) * m


def _codebook_kernel(x_ref, en_t_ref, e_ref, *out_refs,
                     use_bf16_dist, need_dist, need_flatten):
    refs = list(out_refs)
    quant_ref = refs.pop(0)
    ind_ref = refs.pop(0)
    dist_ref = refs.pop(0) if need_dist else None
    flat_ref = refs.pop(0) if need_flatten else None

    x = x_ref[0]        # (tn, d) float32 inputs
    en_t = en_t_ref[0]  # (d, c)  pre-normalized, pre-transposed codebook (f32 or bf16)
    e = e_ref[0]        # (c, d)  raw codebook (for the exact gather)

    # l2 normalize inputs along the feature dim (XLU reduce + EUP rsqrt).
    xn = _l2norm(x)

    if use_bf16_dist:
        # Fast path: single bf16 MXU pass with f32 accumulation.
        dist = jnp.dot(xn.astype(jnp.bfloat16), en_t,
                       preferred_element_type=jnp.float32)
    else:
        # Pinned full-f32 precision: the exact-equality tie-break below (torch
        # argmax parity) relies on it, and the MXU cost is now deliberate.
        dist = jnp.dot(xn, en_t, preferred_element_type=jnp.float32,
                       precision=jax.lax.Precision.HIGHEST)

    # argmax along the codebook axis (temperature == 0 => no gumbel noise),
    # first-occurrence tie break, matching torch.argmax.
    c = dist.shape[-1]
    iota = jax.lax.broadcasted_iota(jnp.int32, dist.shape, 1)
    row_max = jnp.max(dist, axis=-1, keepdims=True)
    ind = jnp.min(jnp.where(dist == row_max, iota, c), axis=-1, keepdims=True)  # (tn, 1)

    # Quantize = gather from the *raw* codebook, realized as one-hot @ embed on
    # the MXU; HIGHEST precision makes the gather exact in f32.
    onehot = (iota == ind).astype(jnp.float32)                      # (tn, c)
    quant = jnp.dot(onehot, e, preferred_element_type=jnp.float32,
                    precision=jax.lax.Precision.HIGHEST)            # (tn, d)

    quant_ref[0] = quant
    ind_ref[0] = ind.T          # (1, tn) lane-dense index row
    if need_dist:
        dist_ref[0] = dist.astype(dist_ref.dtype)
    if need_flatten:
        flat_ref[0] = xn


def cosine_sim_codebook_forward(x, embed, *,
                                tile_n=1024,
                                vmem_budget_bytes=None,
                                need_dist=True,
                                need_flatten=True,
                                dist_dtype=jnp.float32,
                                use_bf16_dist=False):
    """Inference forward of CosineSimCodebook.

    x     : (..., d) float input (ndim < 4 gets an implicit codebook dim of 1).
    embed : (h, c, d) codebook.
    Returns (quantize, embed_ind, dist|None, embed, flatten|None) mirroring the
    torch module (dist/flatten are None when the corresponding write-back is
    disabled via need_dist / need_flatten).
    """
    needs_codebook_dim = x.ndim < 4
    x = x.astype(jnp.float32)
    if needs_codebook_dim:
        x = x[None, ...]
    shape = x.shape
    h, d = shape[0], shape[-1]
    flatten = x.reshape(h, -1, d)
    n = flatten.shape[1]
    c = embed.shape[1]

    embed_f32 = embed.astype(jnp.float32)
    # Hoisted out of the kernel: the codebook is constant across all n-tiles, so
    # normalize + transpose it exactly once here instead of every grid step.
    embed_norm_t = jnp.swapaxes(_l2norm(embed_f32), 1, 2)  # (h, d, c)
    if use_bf16_dist:
        embed_norm_t = embed_norm_t.astype(jnp.bfloat16)   # halves its VMEM too

    # ---- VMEM accounting (review fix) ---------------------------------------
    dist_isize = jnp.dtype(dist_dtype).itemsize
    en_isize = embed_norm_t.dtype.itemsize
    cb_bufs = 1 if _SINGLE_BUFFER_CODEBOOK else 2
    codebook_bytes = c * d * (en_isize + 4) * cb_bufs      # resident, does NOT shrink with tn

    dev_vmem = _device_vmem_bytes()
    if vmem_budget_bytes is None:
        vmem_budget_bytes = max(16 << 20, min(int(0.5 * dev_vmem), 80 << 20))
    vmem_cap = max(32 << 20, min(int(0.75 * dev_vmem), 100 << 20))

    def _tile_bytes(tn_):
        io = 2 * tn_ * d * 4 + tn_ * 4                     # x in + quant out + ind out
        if need_dist:
            io += tn_ * c * dist_isize
        if need_flatten:
            io += tn_ * d * 4
        temps = 4 * tn_ * (3 * c + 2 * d)                  # dist/iota/onehot + xn/quant
        return 2 * io + temps                              # double-buffered I/O + temps

    tile_budget = max(vmem_budget_bytes - codebook_bytes, 4 << 20)

    # ---- tile selection ------------------------------------------------------
    tn_full = _round_up(max(n, 8), 8)
    if n <= tile_n and _tile_bytes(tn_full) <= tile_budget:
        tn = tn_full
    else:
        assert tile_n % 128 == 0, "tile_n must be a multiple of 128 when tiling n"
        tn = tile_n
        while tn > 128 and _tile_bytes(tn) > tile_budget:
            tn //= 2
    n_pad = _round_up(n, tn)

    flatten_in = flatten
    if n_pad != n:  # ragged last tile: pad with zeros, slice results afterwards
        flatten_in = jnp.pad(flatten, ((0, 0), (0, n_pad - n), (0, 0)))

    n_tiles = n_pad // tn
    # Megacore: never let the core split land on a size-1 h axis (v7x).
    if h == 1:
        grid = (n_tiles,)
        dim_sem = ("parallel",)
        x_map = lambda ni: (0, ni, 0)
        cb_map = lambda ni: (0, 0, 0)
        ind_map = lambda ni: (0, 0, ni)
    else:
        grid = (h, n_tiles)
        dim_sem = ("parallel", "parallel")
        x_map = lambda hi, ni: (hi, ni, 0)
        cb_map = lambda hi, ni: (hi, 0, 0)
        ind_map = lambda hi, ni: (hi, 0, ni)

    cb_kwargs = {}
    if _SINGLE_BUFFER_CODEBOOK:
        # Codebook block index only changes with h -> single buffering is safe
        # and halves the resident codebook VMEM.
        cb_kwargs = dict(pipeline_mode=pl.Buffered(1))

    in_specs = [
        pl.BlockSpec((1, tn, d), x_map),
        pl.BlockSpec((1, d, c), cb_map, **cb_kwargs),   # normalized^T codebook
        pl.BlockSpec((1, c, d), cb_map, **cb_kwargs),   # raw codebook
    ]

    out_shapes = [
        jax.ShapeDtypeStruct((h, n_pad, d), jnp.float32),   # quantize
        jax.ShapeDtypeStruct((h, 1, n_pad), jnp.int32),     # embed_ind (lane-dense)
    ]
    out_specs = [
        pl.BlockSpec((1, tn, d), x_map),
        pl.BlockSpec((1, 1, tn), ind_map),
    ]
    if need_dist:
        out_shapes.append(jax.ShapeDtypeStruct((h, n_pad, c), dist_dtype))
        out_specs.append(pl.BlockSpec((1, tn, c), x_map))
    if need_flatten:
        out_shapes.append(jax.ShapeDtypeStruct((h, n_pad, d), jnp.float32))
        out_specs.append(pl.BlockSpec((1, tn, d), x_map))

    vmem_limit = int(min(vmem_cap,
                         max(32 << 20, codebook_bytes + _tile_bytes(tn) + (8 << 20))))

    kernel = functools.partial(
        _codebook_kernel,
        use_bf16_dist=use_bf16_dist,
        need_dist=need_dist,
        need_flatten=need_flatten,
    )

    outs = pl.pallas_call(
        kernel,
        out_shape=tuple(out_shapes),
        grid_spec=pltpu.PrefetchScalarGridSpec(
            num_scalar_prefetch=0,
            grid=grid,
            in_specs=in_specs,
            out_specs=out_specs,
        ),
        compiler_params=pltpu.CompilerParams(
            dimension_semantics=dim_sem,
            vmem_limit_bytes=vmem_limit,
        ),
    )(flatten_in, embed_norm_t, embed_f32)

    outs = list(outs)
    quant = outs.pop(0)
    ind = outs.pop(0)
    dist = outs.pop(0) if need_dist else None
    flat = outs.pop(0) if need_flatten else None

    quantize = quant[:, :n].reshape(shape)
    embed_ind = ind[:, 0, :n].reshape(shape[:-1])
    if dist is not None:
        dist = dist[:, :n]
    if flat is not None:
        flat = flat[:, :n]
    if needs_codebook_dim:
        quantize = quantize[0]
        embed_ind = embed_ind[0]
    return quantize, embed_ind, dist, embed, flat


def init_codebook(key, num_codebooks, codebook_size, dim):
    # kaiming_uniform_ followed by l2norm (kmeans_init=False path); since the
    # codebook is l2-normalized anyway, the exact uniform bound is immaterial.
    fan_in = codebook_size * dim
    bound = jnp.sqrt(2.0) * jnp.sqrt(3.0 / fan_in)
    embed = jax.random.uniform(
        key, (num_codebooks, codebook_size, dim),
        minval=-bound, maxval=bound, dtype=jnp.float32)
    return _l2norm(embed)


def _reference_forward(x, embed):
    needs_codebook_dim = x.ndim < 4
    x = x.astype(jnp.float32)
    if needs_codebook_dim:
        x = x[None, ...]
    shape = x.shape
    flatten = _l2norm(x.reshape(shape[0], -1, shape[-1]))
    en = _l2norm(embed.astype(jnp.float32))
    dist = jnp.einsum("hnd,hcd->hnc", flatten, en,
                      precision=jax.lax.Precision.HIGHEST)
    ind = jnp.argmax(dist, axis=-1)
    quant = jnp.take_along_axis(embed.astype(jnp.float32), ind[..., None], axis=1)
    quantize = quant.reshape(shape)
    embed_ind = ind.reshape(shape[:-1])
    if needs_codebook_dim:
        quantize, embed_ind = quantize[0], embed_ind[0]
    return quantize, embed_ind, dist, embed, flatten


if __name__ == "__main__":
    probe_single_buffer_codebook()  # eager feature probe (never under a jit trace)

    key = jax.random.PRNGKey(0)
    k_x, k_e, k_x2, k_e2 = jax.random.split(key, 4)

    # ---- Case 1: 3-D input (implicit codebook dim), single n-tile, h==1 grid --
    num_codebooks, codebook_size, dim = 1, 128, 64
    batch, seq = 2, 128

    x = jax.random.normal(k_x, (batch, seq, dim), dtype=jnp.float32)
    embed = init_codebook(k_e, num_codebooks, codebook_size, dim)

    fwd = jax.jit(functools.partial(cosine_sim_codebook_forward))
    quantize, embed_ind, dist, embed_out, flatten = fwd(x, embed)
    jax.block_until_ready((quantize, embed_ind, dist, embed_out, flatten))

    r_q, r_i, r_d, _, r_f = _reference_forward(x, embed)
    assert quantize.shape == (batch, seq, dim)
    assert embed_ind.shape == (batch, seq)
    assert dist.shape == (num_codebooks, batch * seq, codebook_size)
    assert jnp.allclose(dist, r_d, atol=1e-5)
    assert jnp.all(embed_ind == r_i)
    assert jnp.allclose(quantize, r_q, atol=1e-5)
    assert jnp.allclose(flatten, r_f, atol=1e-6)

    # ---- Case 2: 4-D input, 2 codebooks, ragged n (pad-and-slice + tiling) ----
    h2, c2, dim2 = 2, 256, 64
    x2 = jax.random.normal(k_x2, (h2, 2, 100, dim2), dtype=jnp.float32)  # n = 200
    embed2 = init_codebook(k_e2, h2, c2, dim2)

    fwd2 = jax.jit(functools.partial(cosine_sim_codebook_forward, tile_n=128))
    q2, i2, dist2, _, f2 = fwd2(x2, embed2)
    jax.block_until_ready((q2, i2, dist2, f2))

    r_q2, r_i2, r_d2, _, r_f2 = _reference_forward(x2, embed2)
    assert q2.shape == x2.shape
    assert i2.shape == x2.shape[:-1]
    assert dist2.shape == (h2, 200, c2)
    assert jnp.allclose(dist2, r_d2, atol=1e-5)
    assert jnp.all(i2 == r_i2)
    assert jnp.allclose(q2, r_q2, atol=1e-5)
    assert jnp.allclose(f2, r_f2, atol=1e-6)

    # ---- Case 3: bf16 scoring fast path, bf16 dist storage, no flatten output -
    fwd3 = jax.jit(functools.partial(
        cosine_sim_codebook_forward, tile_n=128,
        need_flatten=False, use_bf16_dist=True, dist_dtype=jnp.bfloat16))
    q3, i3, d3, _, f3 = fwd3(x2, embed2)
    jax.block_until_ready((q3, i3, d3))

    fl2 = _l2norm(x2.reshape(h2, -1, dim2))
    en2 = _l2norm(embed2)
    dist_bf = jnp.einsum("hnd,hcd->hnc",
                         fl2.astype(jnp.bfloat16), en2.astype(jnp.bfloat16),
                         preferred_element_type=jnp.float32)
    ind_bf = jnp.argmax(dist_bf, axis=-1)

    assert f3 is None
    assert d3.dtype == jnp.bfloat16
    assert q3.shape == x2.shape and i3.shape == x2.shape[:-1]
    i3_flat = i3.reshape(h2, -1)
    gathered = jnp.take_along_axis(embed2, i3_flat[..., None], axis=1).reshape(x2.shape)
    assert jnp.allclose(q3, gathered, atol=1e-5)            # exact raw gather
    assert jnp.allclose(d3.astype(jnp.float32), dist_bf, atol=6e-3)
    assert jnp.mean((i3_flat == ind_bf).astype(jnp.float32)) >= 0.99
    assert jnp.mean((i3_flat == r_i2.reshape(h2, -1)).astype(jnp.float32)) >= 0.85

    # ---- Case 4: write-back-free mode (no dist, no flatten) -------------------
    fwd4 = jax.jit(functools.partial(cosine_sim_codebook_forward,
                                     need_dist=False, need_flatten=False))
    q4, i4, d4, _, f4 = fwd4(x, embed)
    jax.block_until_ready((q4, i4))
    assert d4 is None and f4 is None
    assert jnp.all(i4 == r_i)
    assert jnp.allclose(q4, r_q, atol=1e-5)

    print("KERNEL_OK")
</pallas_src>

<mosaic_0001>
module attributes {stable_mosaic.version = 11 : i64} {
  func.func @_probe(%arg0: i32, %arg1: memref<8x128xf32, #tpu.memory_space<vmem>>, %arg2: memref<8x128xf32, #tpu.memory_space<vmem>>, %arg3: memref<8x128xf32, #tpu.memory_space<vmem>>) attributes {dimension_semantics = [#tpu.dimension_semantics<arbitrary>], iteration_bounds = array<i64: 4>, scalar_prefetch = 0 : i64, scratch_operands = 0 : i64, tpu.core_type = #tpu.core_type<tc>, window_params = [{transform_indices = @transform_0, window_bounds = array<i64: 8, 128>}, {pipeline_mode = #tpu.pipeline_mode<synchronous>, transform_indices = @transform_1, window_bounds = array<i64: 8, 128>}, {transform_indices = @transform_2, window_bounds = array<i64: 8, 128>}]} {
    %c0 = arith.constant 0 : index
    %c0_0 = arith.constant 0 : index
    %0 = vector.load %arg1[%c0, %c0_0] : memref<8x128xf32, #tpu.memory_space<vmem>>, vector<8x128xf32>
    %c0_1 = arith.constant 0 : index
    %c0_2 = arith.constant 0 : index
    %1 = vector.load %arg2[%c0_1, %c0_2] : memref<8x128xf32, #tpu.memory_space<vmem>>, vector<8x128xf32>
    %2 = arith.addf %0, %1 : vector<8x128xf32>
    %c0_3 = arith.constant 0 : index
    %c0_4 = arith.constant 0 : index
    %3 = vector.load %arg3[%c0_3, %c0_4] : memref<8x128xf32, #tpu.memory_space<vmem>>, vector<8x128xf32>
    tpu.vector_store %arg3[%c0_3, %c0_4], %2 {strides = array<i32>} : memref<8x128xf32, #tpu.memory_space<vmem>>, vector<8x128xf32>,
    return
  }
  func.func @transform_0(%arg0: i32) -> (i32, i32) {
    %c0_i32 = arith.constant 0 : i32
    %c0_i32_0 = arith.constant 0 : i32
    return %arg0, %c0_i32 : i32, i32
  }
  func.func @transform_1(%arg0: i32) -> (i32, i32) {
    %c0_i32 = arith.constant 0 : i32
    %c0_i32_0 = arith.constant 0 : i32
    %c0_i32_1 = arith.constant 0 : i32
    return %c0_i32, %c0_i32_0 : i32, i32
  }
  func.func @transform_2(%arg0: i32) -> (i32, i32) {
    %c0_i32 = arith.constant 0 : i32
    %c0_i32_0 = arith.constant 0 : i32
    return %arg0, %c0_i32 : i32, i32
  }
}

module attributes {stable_mosaic.version = 11 : i64} {
  func.func @_codebook_kernel(%arg0: i32, %arg1: memref<1x256x64xf32, #tpu.memory_space<vmem>>, %arg2: memref<1x64x128xf32, #tpu.memory_space<vmem>>, %arg3: memref<1x128x64xf32, #tpu.memory_space<vmem>>, %arg4: memref<1x256x64xf32, #tpu.memory_space<vmem>>, %arg5: memref<1x1x256xi32, #tpu.memory_space<vmem>>, %arg6: memref<1x256x128xf32, #tpu.memory_space<vmem>>, %arg7: memref<1x256x64xf32, #tpu.memory_space<vmem>>) attributes {dimension_semantics = [#tpu.dimension_semantics<parallel>], iteration_bounds = array<i64: 1>, scalar_prefetch = 0 : i64, scratch_operands = 0 : i64, tpu.core_type = #tpu.core_type<tc>, window_params = [{transform_indices = @transform_0, window_bounds = array<i64: 1, 256, 64>}, {pipeline_mode = #tpu.pipeline_mode<synchronous>, transform_indices = @transform_1, window_bounds = array<i64: 1, 64, 128>}, {pipeline_mode = #tpu.pipeline_mode<synchronous>, transform_indices = @transform_2, window_bounds = array<i64: 1, 128, 64>}, {transform_indices = @transform_3, window_bounds = array<i64: 1, 256, 64>}, {transform_indices = @transform_4, window_bounds = array<i64: 1, 1, 256>}, {transform_indices = @transform_5, window_bounds = array<i64: 1, 256, 128>}, {transform_indices = @transform_6, window_bounds = array<i64: 1, 256, 64>}]} {
    %c0 = arith.constant 0 : index
    %c0_0 = arith.constant 0 : index
    %c0_1 = arith.constant 0 : index
    %0 = vector.load %arg1[%c0, %c0_0, %c0_1] : memref<1x256x64xf32, #tpu.memory_space<vmem>>, vector<1x256x64xf32>
    %1 = vector.shape_cast %0 : vector<1x256x64xf32> to vector<256x64xf32>
    %c0_2 = arith.constant 0 : index
    %c0_3 = arith.constant 0 : index
    %c0_4 = arith.constant 0 : index
    %2 = vector.load %arg2[%c0_2, %c0_3, %c0_4] : memref<1x64x128xf32, #tpu.memory_space<vmem>>, vector<1x64x128xf32>
    %3 = vector.shape_cast %2 : vector<1x64x128xf32> to vector<64x128xf32>
    %c0_5 = arith.constant 0 : index
    %c0_6 = arith.constant 0 : index
    %c0_7 = arith.constant 0 : index
    %4 = vector.load %arg3[%c0_5, %c0_6, %c0_7] : memref<1x128x64xf32, #tpu.memory_space<vmem>>, vector<1x128x64xf32>
    %5 = vector.shape_cast %4 : vector<1x128x64xf32> to vector<128x64xf32>
    %6 = arith.mulf %1, %1 : vector<256x64xf32>
    %cst = arith.constant dense<0.000000e+00> : vector<256xf32>
    %7 = vector.multi_reduction <add>, %6, %cst [1] : vector<256x64xf32> to vector<256xf32>
    %8 = vector.shape_cast %7 : vector<256xf32> to vector<256x1xf32>
    %cst_8 = arith.constant 1.000000e-24 : f32
    %9 = vector.broadcast %cst_8 : f32 to vector<256x1xf32>
    %10 = arith.maximumf %8, %9 : vector<256x1xf32>
    %11 = math.rsqrt %10 : vector<256x1xf32>
    %12 = vector.broadcast %11 : vector<256x1xf32> to vector<256x64xf32>
    %13 = arith.mulf %1, %12 : vector<256x64xf32>
    %cst_9 = arith.constant dense<0.000000e+00> : vector<256x128xf32>
    %14 = tpu.matmul %13, %3, %cst_9 {dimension_numbers = #tpu.dot_dimension_numbers<[1], [0], [0], [1], [0, 0, 1, 1], [], []>, precision = #tpu.contract_precision<fp32>} : vector<256x64xf32>, vector<64x128xf32>, vector<256x128xf32> -> vector<256x128xf32>
    %15 = tpu.iota {dimensions = array<i32: 1>} : vector<256x128xi32>
    %cst_10 = arith.constant dense<0xFF800000> : vector<256xf32>
    %16 = vector.multi_reduction <maximumf>, %14, %cst_10 [1] : vector<256x128xf32> to vector<256xf32>
    %17 = vector.shape_cast %16 : vector<256xf32> to vector<256x1xf32>
    %18 = vector.broadcast %17 : vector<256x1xf32> to vector<256x128xf32>
    %19 = arith.cmpf oeq, %14, %18 : vector<256x128xf32>
    %c128_i32 = arith.constant 128 : i32
    %20 = vector.broadcast %c128_i32 : i32 to vector<256x128xi32>
    %21 = arith.select %19, %15, %20 : vector<256x128xi1>, vector<256x128xi32>
    %cst_11 = arith.constant dense<2147483647> : vector<256xi32>
    %22 = vector.multi_reduction <minsi>, %21, %cst_11 [1] : vector<256x128xi32> to vector<256xi32>
    %23 = vector.shape_cast %22 : vector<256xi32> to vector<256x1xi32>
    %24 = vector.broadcast %23 : vector<256x1xi32> to vector<256x128xi32>
    %25 = arith.cmpi eq, %15, %24 : vector<256x128xi32>
    %26 = arith.extui %25 : vector<256x128xi1> to vector<256x128xi32>
    %27 = arith.sitofp %26 : vector<256x128xi32> to vector<256x128xf32>
    %cst_12 = arith.constant dense<0.000000e+00> : vector<256x64xf32>
    %28 = tpu.matmul %27, %5, %cst_12 {dimension_numbers = #tpu.dot_dimension_numbers<[1], [0], [0], [1], [0, 0, 1, 1], [], []>, precision = #tpu.contract_precision<fp32>} : vector<256x128xf32>, vector<128x64xf32>, vector<256x64xf32> -> vector<256x64xf32>
    %c0_13 = arith.constant 0 : index
    %c0_14 = arith.constant 0 : index
    %c0_15 = arith.constant 0 : index
    %29 = vector.load %arg4[%c0_13, %c0_14, %c0_15] : memref<1x256x64xf32, #tpu.memory_space<vmem>>, vector<1x256x64xf32>
    %30 = vector.shape_cast %29 : vector<1x256x64xf32> to vector<256x64xf32>
    %31 = vector.shape_cast %28 : vector<256x64xf32> to vector<1x256x64xf32>
    tpu.vector_store %arg4[%c0_13, %c0_14, %c0_15], %31 {strides = array<i32>} : memref<1x256x64xf32, #tpu.memory_space<vmem>>, vector<1x256x64xf32>,
    %32 = tpu.transpose %23, [1, 0] : vector<256x1xi32> -> vector<1x256xi32>
    %c0_16 = arith.constant 0 : index
    %c0_17 = arith.constant 0 : index
    %c0_18 = arith.constant 0 : index
    %33 = vector.load %arg5[%c0_16, %c0_17, %c0_18] : memref<1x1x256xi32, #tpu.memory_space<vmem>>, vector<1x1x256xi32>
    %34 = vector.shape_cast %33 : vector<1x1x256xi32> to vector<1x256xi32>
    %35 = vector.shape_cast %32 : vector<1x256xi32> to vector<1x1x256xi32>
    tpu.vector_store %arg5[%c0_16, %c0_17, %c0_18], %35 {strides = array<i32>} : memref<1x1x256xi32, #tpu.memory_space<vmem>>, vector<1x1x256xi32>,
    %c0_19 = arith.constant 0 : index
    %c0_20 = arith.constant 0 : index
    %c0_21 = arith.constant 0 : index
    %36 = vector.load %arg6[%c0_19, %c0_20, %c0_21] : memref<1x256x128xf32, #tpu.memory_space<vmem>>, vector<1x256x128xf32>
    %37 = vector.shape_cast %36 : vector<1x256x128xf32> to vector<256x128xf32>
    %38 = vector.shape_cast %14 : vector<256x128xf32> to vector<1x256x128xf32>
    tpu.vector_store %arg6[%c0_19, %c0_20, %c0_21], %38 {strides = array<i32>} : memref<1x256x128xf32, #tpu.memory_space<vmem>>, vector<1x256x128xf32>,
    %c0_22 = arith.constant 0 : index
    %c0_23 = arith.constant 0 : index
    %c0_24 = arith.constant 0 : index
    %39 = vector.load %arg7[%c0_22, %c0_23, %c0_24] : memref<1x256x64xf32, #tpu.memory_space<vmem>>, vector<1x256x64xf32>
    %40 = vector.shape_cast %39 : vector<1x256x64xf32> to vector<256x64xf32>
    %41 = vector.shape_cast %13 : vector<256x64xf32> to vector<1x256x64xf32>
    tpu.vector_store %arg7[%c0_22, %c0_23, %c0_24], %41 {strides = array<i32>} : memref<1x256x64xf32, #tpu.memory_space<vmem>>, vector<1x256x64xf32>,
    return
  }
  func.func @transform_0(%arg0: i32) -> (i32, i32, i32) {
    %c0_i32 = arith.constant 0 : i32
    %c0_i32_0 = arith.constant 0 : i32
    %c0_i32_1 = arith.constant 0 : i32
    return %c0_i32, %arg0, %c0_i32_0 : i32, i32, i32
  }
  func.func @transform_1(%arg0: i32) -> (i32, i32, i32) {
    %c0_i32 = arith.constant 0 : i32
    %c0_i32_0 = arith.constant 0 : i32
    %c0_i32_1 = arith.constant 0 : i32
    %c0_i32_2 = arith.constant 0 : i32
    return %c0_i32, %c0_i32_0, %c0_i32_1 : i32, i32, i32
  }
  func.func @transform_2(%arg0: i32) -> (i32, i32, i32) {
    %c0_i32 = arith.constant 0 : i32
    %c0_i32_0 = arith.constant 0 : i32
    %c0_i32_1 = arith.constant 0 : i32
    %c0_i32_2 = arith.constant 0 : i32
    return %c0_i32, %c0_i32_0, %c0_i32_1 : i32, i32, i32
  }
  func.func @transform_3(%arg0: i32) -> (i32, i32, i32) {
    %c0_i32 = arith.constant 0 : i32
    %c0_i32_0 = arith.constant 0 : i32
    %c0_i32_1 = arith.constant 0 : i32
    return %c0_i32, %arg0, %c0_i32_0 : i32, i32, i32
  }
  func.func @transform_4(%arg0: i32) -> (i32, i32, i32) {
    %c0_i32 = arith.constant 0 : i32
    %c0_i32_0 = arith.constant 0 : i32
    %c0_i32_1 = arith.constant 0 : i32
    return %c0_i32, %c0_i32_0, %arg0 : i32, i32, i32
  }
  func.func @transform_5(%arg0: i32) -> (i32, i32, i32) {
    %c0_i32 = arith.constant 0 : i32
    %c0_i32_0 = arith.constant 0 : i32
    %c0_i32_1 = arith.constant 0 : i32
    return %c0_i32, %arg0, %c0_i32_0 : i32, i32, i32
  }
  func.func @transform_6(%arg0: i32) -> (i32, i32, i32) {
    %c0_i32 = arith.constant 0 : i32
    %c0_i32_0 = arith.constant 0 : i32
    %c0_i32_1 = arith.constant 0 : i32
    return %c0_i32, %arg0, %c0_i32_0 : i32, i32, i32
  }
}

</mosaic_0001>

<llo_original>
// kernel: tpu_custom_call.1
$region0: #{tpu_custom_call.1}
  #allocation0 [shape = 'u32[]', space=smem, size = 0x4, offset = 0x4, fixed_abs, tag = 'smem constant byte address 0x4 - core index']
  #allocation1 [shape = 'u32[144,128]{1,0:T(1,128)}', space=vmem, size = 0x12000, scoped, tag = 'internal scratch']
  %s0 = inlined_call_operand.hbm [shape: f32[32,128], index: 0, kind: input, shape index: {}]
  %s1 = inlined_call_operand.hbm [shape: f32[8,128], index: 1, kind: input, shape index: {}]
  %s2 = inlined_call_operand.hbm [shape: f32[32,128], index: 2, kind: output, shape index: {}]
  %s3 = sld [smem:[#allocation0]]
  $region49: #{tpu_custom_call.1} parent=0
    _
  %s5 = ssub.s32 1, %s3
  %s6 = scalar_select 0, %s5, %s3
  $region1: #{tpu_custom_call.1} parent=0
    #allocation2 [shape = 'u8[8192]{0}', space=vmem, size = 0x2000, scoped, tag = 'input window, operand 0']
    #allocation3 [shape = 's32[2]{0}', space=sflag, size = 0x8, scoped, tag = 'scoped memory for tpu_custom_call.1']
    #allocation4 [shape = 's32[2]{0}', space=sflag, size = 0x8, scoped, tag = 'scoped memory for tpu_custom_call.1']
    #allocation5 [shape = 'u8[4096]{0}', space=vmem, size = 0x1000, scoped, tag = 'input window, operand 1, single buffered']
    #allocation6 [shape = 's32[1]{0}', space=sflag, size = 0x4, scoped, tag = 'scoped memory for tpu_custom_call.1']
    #allocation7 [shape = 'u8[8192]{0}', space=vmem, size = 0x2000, scoped, tag = 'output window, operand 0']
    %7 = vsyncpa [#allocation3], 0
    %s8 = scalar_lea.sflag [#allocation3], 1
    %9 = vsyncpa %s8, 0
    %10 = vsyncpa [#allocation6], 0
    %11 = vsyncpa [#allocation4], 0
    %s12 = scalar_lea.sflag [#allocation4], 1
    %13 = vsyncpa %s12, 0
    loop: start=0, step=1, limit=6
    $region2: #{tpu_custom_call.1} parent=1 // loop_pre_header
      _
    $region3: #{tpu_custom_call.1} parent=1 // loop_header
      %s15 = sphi 0, %s19
      %p16 = scmp.ge.s32.totalorder %s15, 6
      %s25 = sphi 0, %s27
      %s28 = sphi 0, %s25
      %s29 = sphi 0, %s28
      %s45 = sphi 0, %s29
      %s49 = sphi 0, %s49
      %s51 = sphi 0, %s49
      %s52 = sphi 0, %s51
      %s66 = sphi 0, %s52
      %s72 = sphi 0, %s74
      %s75 = sphi 0, %s72
      %s76 = sphi 0, %s75
      %s92 = sphi 0, %s76
    $region4: #{tpu_custom_call.1} parent=1 // loop_header_branch
      %18 = sbr.rel (%p16) target = $region8
    $region5: #{tpu_custom_call.1} parent=1 // loop_body
      %s20 = ssub.s32 %s15, 1
      %s21 = ssub.s32 %s15, 2
      %s22 = sadd.s32 %s15, 1
      %s23 = ssub.s32 %s15, %s22
      %p24 = scmp.eq.s32.totalorder %s23, 0
      %s26 = sadd.s32 %s25, 1
      %s27 = scalar_select %p24, %s25, %s26
      %p30 = pneg %p24
      %p31 = scmp.eq.s32.totalorder %s15, 3
      %p32 = por %p30, %p31
      %p33 = scmp.ne.s32.totalorder %s25, %s28
      %p34 = scmp.eq.s32.totalorder %s15, 0
      %p35 = por %p33, %p34
      %p36 = scmp.ne.s32.totalorder %s25, %s28
      %p37 = scmp.eq.s32.totalorder %s20, 3
      %p38 = por %p36, %p37
      %p39 = scmp.ne.s32.totalorder %s28, %s29
      %p40 = scmp.eq.s32.totalorder %s20, 0
      %p41 = por %p39, %p40
      %p42 = scmp.ne.s32.totalorder %s28, %s29
      %p43 = scmp.eq.s32.totalorder %s21, 3
      %p44 = por %p42, %p43
      %p46 = scmp.ne.s32.totalorder %s29, %s45
      %p47 = scmp.eq.s32.totalorder %s21, 0
      %p48 = por %p46, %p47
      %s50 = sadd.s32 %s49, 1
      %p53 = scmp.eq.s32.totalorder %s15, 3
      %p54 = scmp.ne.s32.totalorder %s49, %s51
      %p55 = scmp.eq.s32.totalorder %s15, 0
      %p56 = por %p54, %p55
      %p57 = scmp.ne.s32.totalorder %s49, %s51
      %p58 = scmp.eq.s32.totalorder %s20, 3
      %p59 = por %p57, %p58
      %p60 = scmp.ne.s32.totalorder %s51, %s52
      %p61 = scmp.eq.s32.totalorder %s20, 0
      %p62 = por %p60, %p61
      %p63 = scmp.ne.s32.totalorder %s51, %s52
      %p64 = scmp.eq.s32.totalorder %s21, 3
      %p65 = por %p63, %p64
      %p67 = scmp.ne.s32.totalorder %s52, %s66
      %p68 = scmp.eq.s32.totalorder %s21, 0
      %p69 = por %p67, %p68
      %s70 = ssub.s32 %s15, %s22
      %p71 = scmp.eq.s32.totalorder %s70, 0
      %s73 = sadd.s32 %s72, 1
      %s74 = scalar_select %p71, %s72, %s73
      %p77 = pneg %p71
      %p78 = scmp.eq.s32.totalorder %s15, 3
      %p79 = por %p77, %p78
      %p80 = scmp.ne.s32.totalorder %s72, %s75
      %p81 = scmp.eq.s32.totalorder %s15, 0
      %p82 = por %p80, %p81
      %p83 = scmp.ne.s32.totalorder %s72, %s75
      %p84 = scmp.eq.s32.totalorder %s20, 3
      %p85 = por %p83, %p84
      %p86 = scmp.ne.s32.totalorder %s75, %s76
      %p87 = scmp.eq.s32.totalorder %s20, 0
      %p88 = por %p86, %p87
      %p89 = scmp.ne.s32.totalorder %s75, %s76
      %p90 = scmp.eq.s32.totalorder %s21, 3
      %p91 = por %p89, %p90
      %p93 = scmp.ne.s32.totalorder %s76, %s92
      %p94 = scmp.eq.s32.totalorder %s21, 0
      %p95 = por %p93, %p94
      %p96 = scmp.le.s32.totalorder 1, %s15
      %p97 = scmp.lt.s32.totalorder %s15, 5
      %p98 = pnand %p96, %p97
      %p99 = pneg %p98
      // Predicated region
      $region9: #{tpu_custom_call.1} parent=5 // pred_check
        _
      $region10: #{tpu_custom_call.1} parent=5 // pred_check_branch
        %101 = sbr.rel (%p98) target = $region12
      $region11: #{tpu_custom_call.1} parent=5 // pred_region
        %s102 = ssub.s32 %s15, 1
        // Predicated region
        $region13: #{tpu_custom_call.1} parent=11 // pred_check
          %p103 = pneg %p62
        $region14: #{tpu_custom_call.1} parent=11 // pred_check_branch
          %105 = sbr.rel (%p103) target = $region16
        $region15: #{tpu_custom_call.1} parent=11 // pred_region
          %s107 = ssub.s32 128, 128
          %108 = vsyncadd [#allocation6], %s107
          %s110 = sshll.u32 [#allocation5], 4
          %s111 = int_to_ptr.vmem [resolvable:$true] %s110
          %113 = dma.hbm_to_vmem [thread:$0]  %s1, 128, %s111, [#allocation6]
        $region16: #{tpu_custom_call.1} parent=11 // pred_fallthru
          _
      $region12: #{tpu_custom_call.1} parent=5 // pred_fallthru
        _
      %p114 = scmp.lt.s32.totalorder %s15, 4
      // Predicated region
      $region17: #{tpu_custom_call.1} parent=5 // pred_check
        %p115 = pneg %p114
      $region18: #{tpu_custom_call.1} parent=5 // pred_check_branch
        %117 = sbr.rel (%p115) target = $region20
      $region19: #{tpu_custom_call.1} parent=5 // pred_region
        // Predicated region
        $region21: #{tpu_custom_call.1} parent=19 // pred_check
          %p118 = pneg %p35
        $region22: #{tpu_custom_call.1} parent=19 // pred_check_branch
          %120 = sbr.rel (%p118) target = $region24
        $region23: #{tpu_custom_call.1} parent=19 // pred_region
          %s121 = sand.u32 %s25, 1
          %s122 = scalar_lea.sflag [#allocation3], %s121
          %s123 = sand.u32 %s25, 1
          %s124 = smul.addr %s123, 8
          %s125 = scalar_lea.vmem [#allocation2], %s124
          %s127 = ssub.s32 128, 128
          %128 = vsyncadd %s122, %s127
          %s129 = smul.addr %s15, 128
          %s130 = scalar_lea.hbm %s0, %s129
          %s132 = sshll.u32 %s125, 4
          %s133 = int_to_ptr.vmem [resolvable:$true] %s132
          %135 = dma.hbm_to_vmem [thread:$0]  %s130, 128, %s133, %s122
        $region24: #{tpu_custom_call.1} parent=19 // pred_fallthru
          _
      $region20: #{tpu_custom_call.1} parent=5 // pred_fallthru
        _
      %p136 = scmp.le.s32.totalorder 1, %s15
      %p137 = scmp.lt.s32.totalorder %s15, 5
      %p138 = pnand %p136, %p137
      %p139 = pneg %p138
      // Predicated region
      $region25: #{tpu_custom_call.1} parent=5 // pred_check
        _
      $region26: #{tpu_custom_call.1} parent=5 // pred_check_branch
        %141 = sbr.rel (%p138) target = $region28
      $region27: #{tpu_custom_call.1} parent=5 // pred_region
        %s142 = ssub.s32 %s15, 1
        %s143 = sand.u32 %s28, 1
        %s144 = scalar_lea.sflag [#allocation3], %s143
        %s145 = sand.u32 %s28, 1
        %s146 = smul.addr %s145, 8
        %s147 = scalar_lea.vmem [#allocation2], %s146
        // Predicated region
        $region29: #{tpu_custom_call.1} parent=27 // pred_check
          %p148 = pneg %p41
        $region30: #{tpu_custom_call.1} parent=27 // pred_check_branch
          %150 = sbr.rel (%p148) target = $region32
        $region31: #{tpu_custom_call.1} parent=27 // pred_region
          %151 = dma.done %s144, 128
        $region32: #{tpu_custom_call.1} parent=27 // pred_fallthru
          _
        // Predicated region
        $region33: #{tpu_custom_call.1} parent=27 // pred_check
          %p152 = pneg %p62
        $region34: #{tpu_custom_call.1} parent=27 // pred_check_branch
          %154 = sbr.rel (%p152) target = $region36
        $region35: #{tpu_custom_call.1} parent=27 // pred_region
          %155 = dma.done [#allocation6], 128
        $region36: #{tpu_custom_call.1} parent=27 // pred_fallthru
          _
        %s156 = sand.u32 %s28, 1
        %s157 = scalar_lea.sflag [#allocation3], %s156
        %s158 = sand.u32 %s28, 1
        %s159 = smul.addr %s158, 8
        %s160 = scalar_lea.vmem [#allocation2], %s159
        %p161 = pneg %p41
        %p162 = pneg %p38
        %p163 = pneg %p62
        %p164 = pneg %p59
        %p165 = pneg %p88
        %p166 = pneg %p85
        %s167 = sand.u32 %s75, 1
        %s168 = scalar_lea.sflag [#allocation4], %s167
        %s169 = sand.u32 %s75, 1
        %s170 = smul.addr %s169, 8
        %s171 = scalar_lea.vmem [#allocation7], %s170
        %v172 = vld [vmem:[%s147] sm:$0xff]
        %v173 = vld [vmem:[#allocation5] sm:$0xff]
        %v174 = vadd.f32 %v172, %v173
        %175 = vst [vmem:[%s171] sm:$0xff] %v174
        %s176 = sand.u32 %s75, 1
        %s177 = scalar_lea.sflag [#allocation4], %s176
        %s178 = sand.u32 %s75, 1
        %s179 = smul.addr %s178, 8
        %s180 = scalar_lea.vmem [#allocation7], %s179
        // Predicated region
        $region37: #{tpu_custom_call.1} parent=27 // pred_check
          %p181 = pneg %p85
        $region38: #{tpu_custom_call.1} parent=27 // pred_check_branch
          %183 = sbr.rel (%p181) target = $region40
        $region39: #{tpu_custom_call.1} parent=27 // pred_region
          %s185 = ssub.s32 128, 128
          %186 = vsyncadd %s177, %s185
          %s187 = smul.addr %s20, 128
          %s188 = scalar_lea.hbm %s2, %s187
          %s190 = sshll.u32 %s180, 4
          %s191 = int_to_ptr.vmem [resolvable:$true] %s190
          %193 = dma.vmem_to_hbm [thread:$0]  %s191, 128, %s188, %s177
        $region40: #{tpu_custom_call.1} parent=27 // pred_fallthru
          _
      $region28: #{tpu_custom_call.1} parent=5 // pred_fallthru
        _
      %p194 = scmp.le.s32.totalorder 2, %s15
      // Predicated region
      $region41: #{tpu_custom_call.1} parent=5 // pred_check
        %p195 = pneg %p194
      $region42: #{tpu_custom_call.1} parent=5 // pred_check_branch
        %197 = sbr.rel (%p195) target = $region44
      $region43: #{tpu_custom_call.1} parent=5 // pred_region
        %s198 = ssub.s32 %s15, 2
        // Predicated region
        $region45: #{tpu_custom_call.1} parent=43 // pred_check
          %p199 = pneg %p91
        $region46: #{tpu_custom_call.1} parent=43 // pred_check_branch
          %201 = sbr.rel (%p199) target = $region48
        $region47: #{tpu_custom_call.1} parent=43 // pred_region
          %s202 = sand.u32 %s76, 1
          %s203 = scalar_lea.sflag [#allocation4], %s202
          %s204 = sand.u32 %s76, 1
          %s205 = smul.addr %s204, 8
          %s206 = scalar_lea.vmem [#allocation7], %s205
          %207 = dma.done %s203, 128
        $region48: #{tpu_custom_call.1} parent=43 // pred_fallthru
          _
      $region44: #{tpu_custom_call.1} parent=5 // pred_fallthru
        _
    $region6: #{tpu_custom_call.1} parent=1 // loop_footer
      %s19 = sadd.s32 1, %s15
    $region7: #{tpu_custom_call.1} parent=1 // loop_footer_branch
      %14 = sbr.rel target = $region3
    $region8: #{tpu_custom_call.1} parent=1 // loop_exit
      _
    %208 = vsyncpa [#allocation3], 1
    %s209 = scalar_lea.sflag [#allocation3], 1
    %210 = vsyncpa %s209, 1
    %211 = vsyncpa [#allocation6], 1
    %212 = vsyncpa [#allocation4], 1
    %s213 = scalar_lea.sflag [#allocation4], 1
    %214 = vsyncpa %s213, 1

// kernel: cosine_sim_codebook_forward.1
$region0: #{cosine_sim_codebook_forward.1}
  #allocation0 [shape = 'u32[]', space=smem, size = 0x4, offset = 0x4, fixed_abs, tag = 'smem constant byte address 0x4 - core index']
  #allocation1 [shape = 'u32[144,128]{1,0:T(1,128)}', space=vmem, size = 0x12000, scoped, tag = 'internal scratch']
  %s0 = inlined_call_operand.vmem [shape: f32[1,256,64], index: 0, kind: input, shape index: {}]
  %s1 = inlined_call_operand.vmem [shape: f32[1,64,128], index: 1, kind: input, shape index: {}]
  %s2 = inlined_call_operand.vmem [shape: f32[1,128,64], index: 2, kind: input, shape index: {}]
  %s3 = inlined_call_operand.vmem [shape: f32[1,256,64], index: 3, kind: output, shape index: {0}]
  %s4 = inlined_call_operand.hbm [shape: s32[1,1,256], index: 4, kind: output, shape index: {1}]
  %s5 = inlined_call_operand.hbm [shape: f32[1,256,128], index: 5, kind: output, shape index: {2}]
  %s6 = inlined_call_operand.vmem [shape: f32[1,256,64], index: 6, kind: output, shape index: {3}]
  %7 = xla_tuple %s3, %s4, %s5, %s6
  %s8 = sld [smem:[#allocation0]]
  $region46: #{cosine_sim_codebook_forward.1} parent=0
    _
  %s10 = ssub.s32 1, %s8
  %s11 = scalar_select 0, %s10, %s8
  $region1: #{cosine_sim_codebook_forward.1} parent=0
    #allocation2 [shape = 'u8[1024]{0}', space=vmem, size = 0x400, scoped, tag = 'output window, operand 1, single buffered']
    #allocation3 [shape = 's32[1]{0}', space=sflag, size = 0x4, scoped, tag = 'scoped memory for cosine_sim_codebook_forward.1']
    #allocation4 [shape = 'u8[131072]{0}', space=vmem, size = 0x20000, scoped, tag = 'output window, operand 2, single buffered']
    #allocation5 [shape = 's32[1]{0}', space=sflag, size = 0x4, scoped, tag = 'scoped memory for cosine_sim_codebook_forward.1']
    %12 = vsyncpa [#allocation3], 0
    %13 = vsyncpa [#allocation5], 0
    // Predicated region
    $region2: #{cosine_sim_codebook_forward.1} parent=1 // pred_check
      _
    $region3: #{cosine_sim_codebook_forward.1} parent=1 // pred_check_branch
      %15 = sbr.rel (0) target = $region5
    $region4: #{cosine_sim_codebook_forward.1} parent=1 // pred_region
      _
    $region5: #{cosine_sim_codebook_forward.1} parent=1 // pred_fallthru
      _
    // Predicated region
    $region6: #{cosine_sim_codebook_forward.1} parent=1 // pred_check
      _
    $region7: #{cosine_sim_codebook_forward.1} parent=1 // pred_check_branch
      %17 = sbr.rel (0) target = $region9
    $region8: #{cosine_sim_codebook_forward.1} parent=1 // pred_region
      _
    $region9: #{cosine_sim_codebook_forward.1} parent=1 // pred_fallthru
      _
    // Predicated region
    $region10: #{cosine_sim_codebook_forward.1} parent=1 // pred_check
      _
    $region11: #{cosine_sim_codebook_forward.1} parent=1 // pred_check_branch
      %19 = sbr.rel (0) target = $region13
    $region12: #{cosine_sim_codebook_forward.1} parent=1 // pred_region
      _
    $region13: #{cosine_sim_codebook_forward.1} parent=1 // pred_fallthru
      _
    %v20 = vld [vmem:[%s0] sm:$0xff]
    %v21 = vld [vmem:[%s0 + $0x8] sm:$0xff]
    %v22 = vld [vmem:[%s0 + $0x10] sm:$0xff]
    %v23 = vld [vmem:[%s0 + $0x18] sm:$0xff]
    %v24 = vld [vmem:[%s0 + $0x20] sm:$0xff]
    %v25 = vld [vmem:[%s0 + $0x28] sm:$0xff]
    %v26 = vld [vmem:[%s0 + $0x30] sm:$0xff]
    %v27 = vld [vmem:[%s0 + $0x38] sm:$0xff]
    %v28 = vld [vmem:[%s0 + $0x40] sm:$0xff]
    %v29 = vld [vmem:[%s0 + $0x48] sm:$0xff]
    %v30 = vld [vmem:[%s0 + $0x50] sm:$0xff]
    %v31 = vld [vmem:[%s0 + $0x58] sm:$0xff]
    %v32 = vld [vmem:[%s0 + $0x60] sm:$0xff]
    %v33 = vld [vmem:[%s0 + $0x68] sm:$0xff]
    %v34 = vld [vmem:[%s0 + $0x70] sm:$0xff]
    %v35 = vld [vmem:[%s0 + $0x78] sm:$0xff]
    %v36 = vld [vmem:[%s0 + $0x80] sm:$0xff]
    %v37 = vld [vmem:[%s0 + $0x88] sm:$0xff]
    %v38 = vld [vmem:[%s0 + $0x90] sm:$0xff]
    %v39 = vld [vmem:[%s0 + $0x98] sm:$0xff]
    %v40 = vld [vmem:[%s0 + $0xa0] sm:$0xff]
    %v41 = vld [vmem:[%s0 + $0xa8] sm:$0xff]
    %v42 = vld [vmem:[%s0 + $0xb0] sm:$0xff]
    %v43 = vld [vmem:[%s0 + $0xb8] sm:$0xff]
    %v44 = vld [vmem:[%s0 + $0xc0] sm:$0xff]
    %v45 = vld [vmem:[%s0 + $0xc8] sm:$0xff]
    %v46 = vld [vmem:[%s0 + $0xd0] sm:$0xff]
    %v47 = vld [vmem:[%s0 + $0xd8] sm:$0xff]
    %v48 = vld [vmem:[%s0 + $0xe0] sm:$0xff]
    %v49 = vld [vmem:[%s0 + $0xe8] sm:$0xff]
    %v50 = vld [vmem:[%s0 + $0xf0] sm:$0xff]
    %v51 = vld [vmem:[%s0 + $0xf8] sm:$0xff]
    %v52 = vld [vmem:[%s1] sm:$0xff]
    %v53 = vld [vmem:[%s1 + $0x8] sm:$0xff]
    %v54 = vld [vmem:[%s1 + $0x10] sm:$0xff]
    %v55 = vld [vmem:[%s1 + $0x18] sm:$0xff]
    %v56 = vld [vmem:[%s1 + $0x20] sm:$0xff]
    %v57 = vld [vmem:[%s1 + $0x28] sm:$0xff]
    %v58 = vld [vmem:[%s1 + $0x30] sm:$0xff]
    %v59 = vld [vmem:[%s1 + $0x38] sm:$0xff]
    %v60 = vld [vmem:[%s2] sm:$0xff]
    %v61 = vld [vmem:[%s2 + $0x8] sm:$0xff]
    %v62 = vld [vmem:[%s2 + $0x10] sm:$0xff]
    %v63 = vld [vmem:[%s2 + $0x18] sm:$0xff]
    %v64 = vld [vmem:[%s2 + $0x20] sm:$0xff]
    %v65 = vld [vmem:[%s2 + $0x28] sm:$0xff]
    %v66 = vld [vmem:[%s2 + $0x30] sm:$0xff]
    %v67 = vld [vmem:[%s2 + $0x38] sm:$0xff]
    %v68 = vld [vmem:[%s2 + $0x40] sm:$0xff]
    %v69 = vld [vmem:[%s2 + $0x48] sm:$0xff]
    %v70 = vld [vmem:[%s2 + $0x50] sm:$0xff]
    %v71 = vld [vmem:[%s2 + $0x58] sm:$0xff]
    %v72 = vld [vmem:[%s2 + $0x60] sm:$0xff]
    %v73 = vld [vmem:[%s2 + $0x68] sm:$0xff]
    %v74 = vld [vmem:[%s2 + $0x70] sm:$0xff]
    %v75 = vld [vmem:[%s2 + $0x78] sm:$0xff]
    %v76 = vmul.f32 %v20, %v20
    %v77 = vmul.f32 %v21, %v21
    %v78 = vmul.f32 %v22, %v22
    %v79 = vmul.f32 %v23, %v23
    %v80 = vmul.f32 %v24, %v24
    %v81 = vmul.f32 %v25, %v25
    %v82 = vmul.f32 %v26, %v26
    %v83 = vmul.f32 %v27, %v27
    %v84 = vmul.f32 %v28, %v28
    %v85 = vmul.f32 %v29, %v29
    %v86 = vmul.f32 %v30, %v30
    %v87 = vmul.f32 %v31, %v31
    %v88 = vmul.f32 %v32, %v32
    %v89 = vmul.f32 %v33, %v33
    %v90 = vmul.f32 %v34, %v34
    %v91 = vmul.f32 %v35, %v35
    %v92 = vmul.f32 %v36, %v36
    %v93 = vmul.f32 %v37, %v37
    %v94 = vmul.f32 %v38, %v38
    %v95 = vmul.f32 %v39, %v39
    %v96 = vmul.f32 %v40, %v40
    %v97 = vmul.f32 %v41, %v41
    %v98 = vmul.f32 %v42, %v42
    %v99 = vmul.f32 %v43, %v43
    %v100 = vmul.f32 %v44, %v44
    %v101 = vmul.f32 %v45, %v45
    %v102 = vmul.f32 %v46, %v46
    %v103 = vmul.f32 %v47, %v47
    %v104 = vmul.f32 %v48, %v48
    %v105 = vmul.f32 %v49, %v49
    %v106 = vmul.f32 %v50, %v50
    %v107 = vmul.f32 %v51, %v51
    %vm108 = vcmask 523264
    %v109 = vsel %vm108, %v76, 0.0
    %110 = vadd.xlane.f32.xlu0 %v109
    %v111 = vpop.xlane.xlu0 %110
    %v112 = vsel %vm108, %v77, 0.0
    %113 = vadd.xlane.f32.xlu0 %v112
    %v114 = vpop.xlane.xlu0 %113
    %v115 = vsel %vm108, %v78, 0.0
    %116 = vadd.xlane.f32.xlu0 %v115
    %v117 = vpop.xlane.xlu0 %116
    %v118 = vsel %vm108, %v79, 0.0
    %119 = vadd.xlane.f32.xlu0 %v118
    %v120 = vpop.xlane.xlu0 %119
    %v121 = vsel %vm108, %v80, 0.0
    %122 = vadd.xlane.f32.xlu0 %v121
    %v123 = vpop.xlane.xlu0 %122
    %v124 = vsel %vm108, %v81, 0.0
    %125 = vadd.xlane.f32.xlu0 %v124
    %v126 = vpop.xlane.xlu0 %125
    %v127 = vsel %vm108, %v82, 0.0
    %128 = vadd.xlane.f32.xlu0 %v127
    %v129 = vpop.xlane.xlu0 %128
    %v130 = vsel %vm108, %v83, 0.0
    %131 = vadd.xlane.f32.xlu0 %v130
    %v132 = vpop.xlane.xlu0 %131
    %v133 = vsel %vm108, %v84, 0.0
    %134 = vadd.xlane.f32.xlu0 %v133
    %v135 = vpop.xlane.xlu0 %134
    %v136 = vsel %vm108, %v85, 0.0
    %137 = vadd.xlane.f32.xlu0 %v136
    %v138 = vpop.xlane.xlu0 %137
    %v139 = vsel %vm108, %v86, 0.0
    %140 = vadd.xlane.f32.xlu0 %v139
    %v141 = vpop.xlane.xlu0 %140
    %v142 = vsel %vm108, %v87, 0.0
    %143 = vadd.xlane.f32.xlu0 %v142
    %v144 = vpop.xlane.xlu0 %143
    %v145 = vsel %vm108, %v88, 0.0
    %146 = vadd.xlane.f32.xlu0 %v145
    %v147 = vpop.xlane.xlu0 %146
    %v148 = vsel %vm108, %v89, 0.0
    %149 = vadd.xlane.f32.xlu0 %v148
    %v150 = vpop.xlane.xlu0 %149
    %v151 = vsel %vm108, %v90, 0.0
    %152 = vadd.xlane.f32.xlu0 %v151
    %v153 = vpop.xlane.xlu0 %152
    %v154 = vsel %vm108, %v91, 0.0
    %155 = vadd.xlane.f32.xlu0 %v154
    %v156 = vpop.xlane.xlu0 %155
    %v157 = vsel %vm108, %v92, 0.0
    %158 = vadd.xlane.f32.xlu0 %v157
    %v159 = vpop.xlane.xlu0 %158
    %v160 = vsel %vm108, %v93, 0.0
    %161 = vadd.xlane.f32.xlu0 %v160
    %v162 = vpop.xlane.xlu0 %161
    %v163 = vsel %vm108, %v94, 0.0
    %164 = vadd.xlane.f32.xlu0 %v163
    %v165 = vpop.xlane.xlu0 %164
    %v166 = vsel %vm108, %v95, 0.0
    %167 = vadd.xlane.f32.xlu0 %v166
    %v168 = vpop.xlane.xlu0 %167
    %v169 = vsel %vm108, %v96, 0.0
    %170 = vadd.xlane.f32.xlu0 %v169
    %v171 = vpop.xlane.xlu0 %170
    %v172 = vsel %vm108, %v97, 0.0
    %173 = vadd.xlane.f32.xlu0 %v172
    %v174 = vpop.xlane.xlu0 %173
    %v175 = vsel %vm108, %v98, 0.0
    %176 = vadd.xlane.f32.xlu0 %v175
    %v177 = vpop.xlane.xlu0 %176
    %v178 = vsel %vm108, %v99, 0.0
    %179 = vadd.xlane.f32.xlu0 %v178
    %v180 = vpop.xlane.xlu0 %179
    %v181 = vsel %vm108, %v100, 0.0
    %182 = vadd.xlane.f32.xlu0 %v181
    %v183 = vpop.xlane.xlu0 %182
    %v184 = vsel %vm108, %v101, 0.0
    %185 = vadd.xlane.f32.xlu0 %v184
    %v186 = vpop.xlane.xlu0 %185
    %v187 = vsel %vm108, %v102, 0.0
    %188 = vadd.xlane.f32.xlu0 %v187
    %v189 = vpop.xlane.xlu0 %188
    %v190 = vsel %vm108, %v103, 0.0
    %191 = vadd.xlane.f32.xlu0 %v190
    %v192 = vpop.xlane.xlu0 %191
    %v193 = vsel %vm108, %v104, 0.0
    %194 = vadd.xlane.f32.xlu0 %v193
    %v195 = vpop.xlane.xlu0 %194
    %v196 = vsel %vm108, %v105, 0.0
    %197 = vadd.xlane.f32.xlu0 %v196
    %v198 = vpop.xlane.xlu0 %197
    %v199 = vsel %vm108, %v106, 0.0
    %200 = vadd.xlane.f32.xlu0 %v199
    %v201 = vpop.xlane.xlu0 %200
    %v202 = vsel %vm108, %v107, 0.0
    %203 = vadd.xlane.f32.xlu0 %v202
    %v204 = vpop.xlane.xlu0 %203
    %v205 = vmax.f32 %v111, 1e-24
    %v206 = vmax.f32 %v114, 1e-24
    %v207 = vmax.f32 %v117, 1e-24
    %v208 = vmax.f32 %v120, 1e-24
    %v209 = vmax.f32 %v123, 1e-24
    %v210 = vmax.f32 %v126, 1e-24
    %v211 = vmax.f32 %v129, 1e-24
    %v212 = vmax.f32 %v132, 1e-24
    %v213 = vmax.f32 %v135, 1e-24
    %v214 = vmax.f32 %v138, 1e-24
    %v215 = vmax.f32 %v141, 1e-24
    %v216 = vmax.f32 %v144, 1e-24
    %v217 = vmax.f32 %v147, 1e-24
    %v218 = vmax.f32 %v150, 1e-24
    %v219 = vmax.f32 %v153, 1e-24
    %v220 = vmax.f32 %v156, 1e-24
    %v221 = vmax.f32 %v159, 1e-24
    %v222 = vmax.f32 %v162, 1e-24
    %v223 = vmax.f32 %v165, 1e-24
    %v224 = vmax.f32 %v168, 1e-24
    %v225 = vmax.f32 %v171, 1e-24
    %v226 = vmax.f32 %v174, 1e-24
    %v227 = vmax.f32 %v177, 1e-24
    %v228 = vmax.f32 %v180, 1e-24
    %v229 = vmax.f32 %v183, 1e-24
    %v230 = vmax.f32 %v186, 1e-24
    %v231 = vmax.f32 %v189, 1e-24
    %v232 = vmax.f32 %v192, 1e-24
    %v233 = vmax.f32 %v195, 1e-24
    %v234 = vmax.f32 %v198, 1e-24
    %v235 = vmax.f32 %v201, 1e-24
    %v236 = vmax.f32 %v204, 1e-24
    %v237 = vrsqrt.pop %v205
    %v238 = vrsqrt.pop %v206
    %v239 = vrsqrt.pop %v207
    %v240 = vrsqrt.pop %v208
    %v241 = vrsqrt.pop %v209
    %v242 = vrsqrt.pop %v210
    %v243 = vrsqrt.pop %v211
    %v244 = vrsqrt.pop %v212
    %v245 = vrsqrt.pop %v213
    %v246 = vrsqrt.pop %v214
    %v247 = vrsqrt.pop %v215
    %v248 = vrsqrt.pop %v216
    %v249 = vrsqrt.pop %v217
    %v250 = vrsqrt.pop %v218
    %v251 = vrsqrt.pop %v219
    %v252 = vrsqrt.pop %v220
    %v253 = vrsqrt.pop %v221
    %v254 = vrsqrt.pop %v222
    %v255 = vrsqrt.pop %v223
    %v256 = vrsqrt.pop %v224
    %v257 = vrsqrt.pop %v225
    %v258 = vrsqrt.pop %v226
    %v259 = vrsqrt.pop %v227
    %v260 = vrsqrt.pop %v228
    %v261 = vrsqrt.pop %v229
    %v262 = vrsqrt.pop %v230
    %v263 = vrsqrt.pop %v231
    %v264 = vrsqrt.pop %v232
    %v265 = vrsqrt.pop %v233
    %v266 = vrsqrt.pop %v234
    %v267 = vrsqrt.pop %v235
    %v268 = vrsqrt.pop %v236
    %v269 = vmul.f32 %v20, %v237
    %v270 = vmul.f32 %v21, %v238
    %v271 = vmul.f32 %v22, %v239
    %v272 = vmul.f32 %v23, %v240
    %v273 = vmul.f32 %v24, %v241
    %v274 = vmul.f32 %v25, %v242
    %v275 = vmul.f32 %v26, %v243
    %v276 = vmul.f32 %v27, %v244
    %v277 = vmul.f32 %v28, %v245
    %v278 = vmul.f32 %v29, %v246
    %v279 = vmul.f32 %v30, %v247
    %v280 = vmul.f32 %v31, %v248
    %v281 = vmul.f32 %v32, %v249
    %v282 = vmul.f32 %v33, %v250
    %v283 = vmul.f32 %v34, %v251
    %v284 = vmul.f32 %v35, %v252
    %v285 = vmul.f32 %v36, %v253
    %v286 = vmul.f32 %v37, %v254
    %v287 = vmul.f32 %v38, %v255
    %v288 = vmul.f32 %v39, %v256
    %v289 = vmul.f32 %v40, %v257
    %v290 = vmul.f32 %v41, %v258
    %v291 = vmul.f32 %v42, %v259
    %v292 = vmul.f32 %v43, %v260
    %v293 = vmul.f32 %v44, %v261
    %v294 = vmul.f32 %v45, %v262
    %v295 = vmul.f32 %v46, %v263
    %v296 = vmul.f32 %v47, %v264
    %v297 = vmul.f32 %v48, %v265
    %v298 = vmul.f32 %v49, %v266
    %v299 = vmul.f32 %v50, %v267
    %v300 = vmul.f32 %v51, %v268
    %v302 = vsel %vm108, %v269, 0
    %v305 = vsel %vm108, %v270, 0
    %v308 = vsel %vm108, %v271, 0
    %v311 = vsel %vm108, %v272, 0
    %v314 = vsel %vm108, %v273, 0
    %v317 = vsel %vm108, %v274, 0
    %v320 = vsel %vm108, %v275, 0
    %v323 = vsel %vm108, %v276, 0
    %v326 = vsel %vm108, %v277, 0
    %v329 = vsel %vm108, %v278, 0
    %v332 = vsel %vm108, %v279, 0
    %v335 = vsel %vm108, %v280, 0
    %v338 = vsel %vm108, %v281, 0
    %v341 = vsel %vm108, %v282, 0
    %v344 = vsel %vm108, %v283, 0
    %v347 = vsel %vm108, %v284, 0
    %v350 = vsel %vm108, %v285, 0
    %v353 = vsel %vm108, %v286, 0
    %v356 = vsel %vm108, %v287, 0
    %v359 = vsel %vm108, %v288, 0
    %v362 = vsel %vm108, %v289, 0
    %v365 = vsel %vm108, %v290, 0
    %v368 = vsel %vm108, %v291, 0
    %v371 = vsel %vm108, %v292, 0
    %v374 = vsel %vm108, %v293, 0
    %v377 = vsel %vm108, %v294, 0
    %v380 = vsel %vm108, %v295, 0
    %v383 = vsel %vm108, %v296, 0
    %v386 = vsel %vm108, %v297, 0
    %v389 = vsel %vm108, %v298, 0
    %v392 = vsel %vm108, %v299, 0
    %v395 = vsel %vm108, %v300, 0
    %397 = vmatprep.subr.mxu0 0.0
    %v398 = vand.u32 %v52, 4294901760
    %399 = vmatpush1.msra.mxu0 %v398
    %400 = vmatprep.subr.mxu0 0.0
    %v401 = vand.u32 %v53, 4294901760
    %402 = vmatpush1.msra.mxu0 %v401
    %403 = vmatprep.subr.mxu0 0.0
    %v404 = vand.u32 %v54, 4294901760
    %405 = vmatpush1.msra.mxu0 %v404
    %406 = vmatprep.subr.mxu0 0.0
    %v407 = vand.u32 %v55, 4294901760
    %408 = vmatpush1.msra.mxu0 %v407
    %409 = vmatprep.subr.mxu0 0.0
    %v410 = vand.u32 %v56, 4294901760
    %411 = vmatpush1.msra.mxu0 %v410
    %412 = vmatprep.subr.mxu0 0.0
    %v413 = vand.u32 %v57, 4294901760
    %414 = vmatpush1.msra.mxu0 %v413
    %415 = vmatprep.subr.mxu0 0.0
    %v416 = vand.u32 %v58, 4294901760
    %417 = vmatpush1.msra.mxu0 %v416
    %418 = vmatprep.subr.mxu0 0.0
    %v419 = vand.u32 %v59, 4294901760
    %420 = vmatpush1.msra.mxu0 %v419
    %421 = vmatprep.subr.mxu0 0.0
    %422 = vmatpush1.msra.mxu0 0.0
    %423 = vmatprep.subr.mxu0 0.0
    %424 = vmatpush1.msra.mxu0 0.0
    %425 = vmatprep.subr.mxu0 0.0
    %426 = vmatpush1.msra.mxu0 0.0
    %427 = vmatprep.subr.mxu0 0.0
    %428 = vmatpush1.msra.mxu0 0.0
    %429 = vmatprep.subr.mxu0 0.0
    %430 = vmatpush1.msra.mxu0 0.0
    %431 = vmatprep.subr.mxu0 0.0
    %432 = vmatpush1.msra.mxu0 0.0
    %433 = vmatprep.subr.mxu0 0.0
    %434 = vmatpush1.msra.mxu0 0.0
    %435 = vmatprep.subr.mxu0 0.0
    %436 = vmatpush1.msra.mxu0 0.0
    %437 = vmatprep.subr.mxu0 0.0
    %438 = vmatpush1.msra.mxu0 0.0
    %439 = vmatprep.subr.mxu0 0.0
    %440 = vmatpush1.msra.mxu0 0.0
    %441 = vmatprep.subr.mxu0 0.0
    %442 = vmatpush1.msra.mxu0 0.0
    %443 = vmatprep.subr.mxu0 0.0
    %444 = vmatpush1.msra.mxu0 0.0
    %445 = vmatprep.subr.mxu0 0.0
    %446 = vmatpush1.msra.mxu0 0.0
    %447 = vmatprep.subr.mxu0 0.0
    %448 = vmatpush1.msra.mxu0 0.0
    %449 = vmatprep.subr.mxu0 0.0
    %450 = vmatpush1.msra.mxu0 0.0
    %451 = vmatprep.subr.mxu0 0.0
    %452 = vmatpush1.msra.mxu0 0.0
    %453 = vmatprep.subr.mxu0 0.0
    %454 = vmatpush1.msra.mxu0 0.0
    %455 = vmatprep.subr.mxu0 0.0
    %456 = vmatpush1.msra.mxu0 0.0
    %457 = vmatprep.subr.mxu0 0.0
    %458 = vmatpush1.msra.mxu0 0.0
    %459 = vmatprep.subr.mxu0 0.0
    %460 = vmatpush1.msra.mxu0 0.0
    %461 = vmatprep.subr.mxu0 0.0
    %462 = vmatpush1.msra.mxu0 0.0
    %463 = vmatprep.subr.mxu0 0.0
    %464 = vmatpush1.msra.mxu0 0.0
    %465 = vmatprep.subr.mxu0 0.0
    %466 = vmatpush1.msra.mxu0 0.0
    %467 = vmatprep.subr.mxu0 0.0
    %468 = vmatpush1.msra.mxu0 0.0
    %469 = vmatprep.mubr.f32.mxu0 0.0
    %v470 = vand.u32 %v302, 4294901760
    %v471 = vsub.f32 %v302, %v470
    %v472 = vand.u32 %v471, 4294901760
    %v473 = vsub.f32 %v471, %v472
    %v474 = vand.u32 %v473, 4294901760
    %475 = vmatmul.mubr.f32.gmra.mrb[0].mxu0 %v474
    %v476 = vpop.f32.mrb[0].mxu0
    %v477 = vadd.f32 0.0, %v476
    %v478 = vpop.f32.mrb[0].mxu0
    %479 = vmatprep.mubr.f32.mxu0 0.0
    %v480 = vand.u32 %v305, 4294901760
    %v481 = vsub.f32 %v305, %v480
    %v482 = vand.u32 %v481, 4294901760
    %v483 = vsub.f32 %v481, %v482
    %v484 = vand.u32 %v483, 4294901760
    %485 = vmatmul.mubr.f32.gmra.mrb[0].mxu0 %v484
    %v486 = vpop.f32.mrb[0].mxu0
    %v487 = vadd.f32 0.0, %v486
    %v488 = vpop.f32.mrb[0].mxu0
    %489 = vmatprep.mubr.f32.mxu0 0.0
    %v490 = vand.u32 %v308, 4294901760
    %v491 = vsub.f32 %v308, %v490
    %v492 = vand.u32 %v491, 4294901760
    %v493 = vsub.f32 %v491, %v492
    %v494 = vand.u32 %v493, 4294901760
    %495 = vmatmul.mubr.f32.gmra.mrb[0].mxu0 %v494
    %v496 = vpop.f32.mrb[0].mxu0
    %v497 = vadd.f32 0.0, %v496
    %v498 = vpop.f32.mrb[0].mxu0
    %499 = vmatprep.mubr.f32.mxu0 0.0
    %v500 = vand.u32 %v311, 4294901760
    %v501 = vsub.f32 %v311, %v500
    %v502 = vand.u32 %v501, 4294901760
    %v503 = vsub.f32 %v501, %v502
    %v504 = vand.u32 %v503, 4294901760
    %505 = vmatmul.mubr.f32.gmra.mrb[0].mxu0 %v504
    %v506 = vpop.f32.mrb[0].mxu0
    %v507 = vadd.f32 0.0, %v506
    %v508 = vpop.f32.mrb[0].mxu0
    %509 = vmatprep.mubr.f32.mxu0 0.0
    %v510 = vand.u32 %v314, 4294901760
    %v511 = vsub.f32 %v314, %v510
    %v512 = vand.u32 %v511, 4294901760
    %v513 = vsub.f32 %v511, %v512
    %v514 = vand.u32 %v513, 4294901760
    %515 = vmatmul.mubr.f32.gmra.mrb[0].mxu0 %v514
    %v516 = vpop.f32.mrb[0].mxu0
    %v517 = vadd.f32 0.0, %v516
    %v518 = vpop.f32.mrb[0].mxu0
    %519 = vmatprep.mubr.f32.mxu0 0.0
    %v520 = vand.u32 %v317, 4294901760
    %v521 = vsub.f32 %v317, %v520
    %v522 = vand.u32 %v521, 4294901760
    %v523 = vsub.f32 %v521, %v522
    %v524 = vand.u32 %v523, 4294901760
    %525 = vmatmul.mubr.f32.gmra.mrb[0].mxu0 %v524
    %v526 = vpop.f32.mrb[0].mxu0
    %v527 = vadd.f32 0.0, %v526
    %v528 = vpop.f32.mrb[0].mxu0
    %529 = vmatprep.mubr.f32.mxu0 0.0
    %v530 = vand.u32 %v320, 4294901760
    %v531 = vsub.f32 %v320, %v530
    %v532 = vand.u32 %v531, 4294901760
    %v533 = vsub.f32 %v531, %v532
    %v534 = vand.u32 %v533, 4294901760
    %535 = vmatmul.mubr.f32.gmra.mrb[0].mxu0 %v534
    %v536 = vpop.f32.mrb[0].mxu0
    %v537 = vadd.f32 0.0, %v536
    %v538 = vpop.f32.mrb[0].mxu0
    %539 = vmatprep.mubr.f32.mxu0 0.0
    %v540 = vand.u32 %v323, 4294901760
    %v541 = vsub.f32 %v323, %v540
    %v542 = vand.u32 %v541, 4294901760
    %v543 = vsub.f32 %v541, %v542
    %v544 = vand.u32 %v543, 4294901760
    %545 = vmatmul.mubr.f32.gmra.mrb[0].mxu0 %v544
    %v546 = vpop.f32.mrb[0].mxu0
    %v547 = vadd.f32 0.0, %v546
    %v548 = vpop.f32.mrb[0].mxu0
    %549 = vmatprep.mubr.f32.mxu0 0.0
    %v550 = vand.u32 %v326, 4294901760
    %v551 = vsub.f32 %v326, %v550
    %v552 = vand.u32 %v551, 4294901760
    %v553 = vsub.f32 %v551, %v552
    %v554 = vand.u32 %v553, 4294901760
    %555 = vmatmul.mubr.f32.gmra.mrb[0].mxu0 %v554
    %v556 = vpop.f32.mrb[0].mxu0
    %v557 = vadd.f32 0.0, %v556
    %v558 = vpop.f32.mrb[0].mxu0
    %559 = vmatprep.mubr.f32.mxu0 0.0
    %v560 = vand.u32 %v329, 4294901760
    %v561 = vsub.f32 %v329, %v560
    %v562 = vand.u32 %v561, 4294901760
    %v563 = vsub.f32 %v561, %v562
    %v564 = vand.u32 %v563, 4294901760
    %565 = vmatmul.mubr.f32.gmra.mrb[0].mxu0 %v564
    %v566 = vpop.f32.mrb[0].mxu0
    %v567 = vadd.f32 0.0, %v566
    %v568 = vpop.f32.mrb[0].mxu0
    %569 = vmatprep.mubr.f32.mxu0 0.0
    %v570 = vand.u32 %v332, 4294901760
    %v571 = vsub.f32 %v332, %v570
    %v572 = vand.u32 %v571, 4294901760
    %v573 = vsub.f32 %v571, %v572
    %v574 = vand.u32 %v573, 4294901760
    %575 = vmatmul.mubr.f32.gmra.mrb[0].mxu0 %v574
    %v576 = vpop.f32.mrb[0].mxu0
    %v577 = vadd.f32 0.0, %v576
    %v578 = vpop.f32.mrb[0].mxu0
    %579 = vmatprep.mubr.f32.mxu0 0.0
    %v580 = vand.u32 %v335, 4294901760
    %v581 = vsub.f32 %v335, %v580
    %v582 = vand.u32 %v581, 4294901760
    %v583 = vsub.f32 %v581, %v582
    %v584 = vand.u32 %v583, 4294901760
    %585 = vmatmul.mubr.f32.gmra.mrb[0].mxu0 %v584
    %v586 = vpop.f32.mrb[0].mxu0
    %v587 = vadd.f32 0.0, %v586
    %v588 = vpop.f32.mrb[0].mxu0
    %589 = vmatprep.mubr.f32.mxu0 0.0
    %v590 = vand.u32 %v338, 4294901760
    %v591 = vsub.f32 %v338, %v590
    %v592 = vand.u32 %v591, 4294901760
    %v593 = vsub.f32 %v591, %v592
    %v594 = vand.u32 %v593, 4294901760
    %595 = vmatmul.mubr.f32.gmra.mrb[0].mxu0 %v594
    %v596 = vpop.f32.mrb[0].mxu0
    %v597 = vadd.f32 0.0, %v596
    %v598 = vpop.f32.mrb[0].mxu0
    %599 = vmatprep.mubr.f32.mxu0 0.0
    %v600 = vand.u32 %v341, 4294901760
    %v601 = vsub.f32 %v341, %v600
    %v602 = vand.u32 %v601, 4294901760
    %v603 = vsub.f32 %v601, %v602
    %v604 = vand.u32 %v603, 4294901760
    %605 = vmatmul.mubr.f32.gmra.mrb[0].mxu0 %v604
    %v606 = vpop.f32.mrb[0].mxu0
    %v607 = vadd.f32 0.0, %v606
    %v608 = vpop.f32.mrb[0].mxu0
    %609 = vmatprep.mubr.f32.mxu0 0.0
    %v610 = vand.u32 %v344, 4294901760
    %v611 = vsub.f32 %v344, %v610
    %v612 = vand.u32 %v611, 4294901760
    %v613 = vsub.f32 %v611, %v612
    %v614 = vand.u32 %v613, 4294901760
    %615 = vmatmul.mubr.f32.gmra.mrb[0].mxu0 %v614
    %v616 = vpop.f32.mrb[0].mxu0
    %v617 = vadd.f32 0.0, %v616
    %v618 = vpop.f32.mrb[0].mxu0
    %619 = vmatprep.mubr.f32.mxu0 0.0
    %v620 = vand.u32 %v347, 4294901760
    %v621 = vsub.f32 %v347, %v620
    %v622 = vand.u32 %v621, 4294901760
    %v623 = vsub.f32 %v621, %v622
    %v624 = vand.u32 %v623, 4294901760
    %625 = vmatmul.mubr.f32.gmra.mrb[0].mxu0 %v624
    %v626 = vpop.f32.mrb[0].mxu0
    %v627 = vadd.f32 0.0, %v626
    %v628 = vpop.f32.mrb[0].mxu0
    %629 = vmatprep.mubr.f32.mxu0 0.0
    %v630 = vand.u32 %v350, 4294901760
    %v631 = vsub.f32 %v350, %v630
    %v632 = vand.u32 %v631, 4294901760
    %v633 = vsub.f32 %v631, %v632
    %v634 = vand.u32 %v633, 4294901760
    %635 = vmatmul.mubr.f32.gmra.mrb[0].mxu0 %v634
    %v636 = vpop.f32.mrb[0].mxu0
    %v637 = vadd.f32 0.0, %v636
    %v638 = vpop.f32.mrb[0].mxu0
    %639 = vmatprep.mubr.f32.mxu0 0.0
    %v640 = vand.u32 %v353, 4294901760
    %v641 = vsub.f32 %v353, %v640
    %v642 = vand.u32 %v641, 4294901760
    %v643 = vsub.f32 %v641, %v642
    %v644 = vand.u32 %v643, 4294901760
    %645 = vmatmul.mubr.f32.gmra.mrb[0].mxu0 %v644
    %v646 = vpop.f32.mrb[0].mxu0
    %v647 = vadd.f32 0.0, %v646
    %v648 = vpop.f32.mrb[0].mxu0
    %649 = vmatprep.mubr.f32.mxu0 0.0
    %v650 = vand.u32 %v356, 4294901760
    %v651 = vsub.f32 %v356, %v650
    %v652 = vand.u32 %v651, 4294901760
    %v653 = vsub.f32 %v651, %v652
    %v654 = vand.u32 %v653, 4294901760
    %655 = vmatmul.mubr.f32.gmra.mrb[0].mxu0 %v654
    %v656 = vpop.f32.mrb[0].mxu0
    %v657 = vadd.f32 0.0, %v656
    %v658 = vpop.f32.mrb[0].mxu0
    %659 = vmatprep.mubr.f32.mxu0 0.0
    %v660 = vand.u32 %v359, 4294901760
    %v661 = vsub.f32 %v359, %v660
    %v662 = vand.u32 %v661, 4294901760
    %v663 = vsub.f32 %v661, %v662
    %v664 = vand.u32 %v663, 4294901760
    %665 = vmatmul.mubr.f32.gmra.mrb[0].mxu0 %v664
    %v666 = vpop.f32.mrb[0].mxu0
    %v667 = vadd.f32 0.0, %v666
    %v668 = vpop.f32.mrb[0].mxu0
    %669 = vmatprep.mubr.f32.mxu0 0.0
    %v670 = vand.u32 %v362, 4294901760
    %v671 = vsub.f32 %v362, %v670
    %v672 = vand.u32 %v671, 4294901760
    %v673 = vsub.f32 %v671, %v672
    %v674 = vand.u32 %v673, 4294901760
    %675 = vmatmul.mubr.f32.gmra.mrb[0].mxu0 %v674
    %v676 = vpop.f32.mrb[0].mxu0
    %v677 = vadd.f32 0.0, %v676
    %v678 = vpop.f32.mrb[0].mxu0
    %679 = vmatprep.mubr.f32.mxu0 0.0
    %v680 = vand.u32 %v365, 4294901760
    %v681 = vsub.f32 %v365, %v680
    %v682 = vand.u32 %v681, 4294901760
    %v683 = vsub.f32 %v681, %v682
    %v684 = vand.u32 %v683, 4294901760
    %685 = vmatmul.mubr.f32.gmra.mrb[0].mxu0 %v684
    %v686 = vpop.f32.mrb[0].mxu0
    %v687 = vadd.f32 0.0, %v686
    %v688 = vpop.f32.mrb[0].mxu0
    %689 = vmatprep.mubr.f32.mxu0 0.0
    %v690 = vand.u32 %v368, 4294901760
    %v691 = vsub.f32 %v368, %v690
    %v692 = vand.u32 %v691, 4294901760
    %v693 = vsub.f32 %v691, %v692
    %v694 = vand.u32 %v693, 4294901760
    %695 = vmatmul.mubr.f32.gmra.mrb[0].mxu0 %v694
    %v696 = vpop.f32.mrb[0].mxu0
    %v697 = vadd.f32 0.0, %v696
    %v698 = vpop.f32.mrb[0].mxu0
    %699 = vmatprep.mubr.f32.mxu0 0.0
    %v700 = vand.u32 %v371, 4294901760
    %v701 = vsub.f32 %v371, %v700
    %v702 = vand.u32 %v701, 4294901760
    %v703 = vsub.f32 %v701, %v702
    %v704 = vand.u32 %v703, 4294901760
    %705 = vmatmul.mubr.f32.gmra.mrb[0].mxu0 %v704
    %v706 = vpop.f32.mrb[0].mxu0
    %v707 = vadd.f32 0.0, %v706
    %v708 = vpop.f32.mrb[0].mxu0
    %709 = vmatprep.mubr.f32.mxu0 0.0
    %v710 = vand.u32 %v374, 4294901760
    %v711 = vsub.f32 %v374, %v710
    %v712 = vand.u32 %v711, 4294901760
    %v713 = vsub.f32 %v711, %v712
    %v714 = vand.u32 %v713, 4294901760
    %715 = vmatmul.mubr.f32.gmra.mrb[0].mxu0 %v714
    %v716 = vpop.f32.mrb[0].mxu0
    %v717 = vadd.f32 0.0, %v716
    %v718 = vpop.f32.mrb[0].mxu0
    %719 = vmatprep.mubr.f32.mxu0 0.0
    %v720 = vand.u32 %v377, 4294901760
    %v721 = vsub.f32 %v377, %v720
    %v722 = vand.u32 %v721, 4294901760
    %v723 = vsub.f32 %v721, %v722
    %v724 = vand.u32 %v723, 4294901760
    %725 = vmatmul.mubr.f32.gmra.mrb[0].mxu0 %v724
    %v726 = vpop.f32.mrb[0].mxu0
    %v727 = vadd.f32 0.0, %v726
    %v728 = vpop.f32.mrb[0].mxu0
    %729 = vmatprep.mubr.f32.mxu0 0.0
    %v730 = vand.u32 %v380, 4294901760
    %v731 = vsub.f32 %v380, %v730
    %v732 = vand.u32 %v731, 4294901760
    %v733 = vsub.f32 %v731, %v732
    %v734 = vand.u32 %v733, 4294901760
    %735 = vmatmul.mubr.f32.gmra.mrb[0].mxu0 %v734
    %v736 = vpop.f32.mrb[0].mxu0
    %v737 = vadd.f32 0.0, %v736
    %v738 = vpop.f32.mrb[0].mxu0
    %739 = vmatprep.mubr.f32.mxu0 0.0
    %v740 = vand.u32 %v383, 4294901760
    %v741 = vsub.f32 %v383, %v740
    %v742 = vand.u32 %v741, 4294901760
    %v743 = vsub.f32 %v741, %v742
    %v744 = vand.u32 %v743, 4294901760
    %745 = vmatmul.mubr.f32.gmra.mrb[0].mxu0 %v744
    %v746 = vpop.f32.mrb[0].mxu0
    %v747 = vadd.f32 0.0, %v746
    %v748 = vpop.f32.mrb[0].mxu0
    %749 = vmatprep.mubr.f32.mxu0 0.0
    %v750 = vand.u32 %v386, 4294901760
    %v751 = vsub.f32 %v386, %v750
    %v752 = vand.u32 %v751, 4294901760
    %v753 = vsub.f32 %v751, %v752
    %v754 = vand.u32 %v753, 4294901760
    %755 = vmatmul.mubr.f32.gmra.mrb[0].mxu0 %v754
    %v756 = vpop.f32.mrb[0].mxu0
    %v757 = vadd.f32 0.0, %v756
    %v758 = vpop.f32.mrb[0].mxu0
    %759 = vmatprep.mubr.f32.mxu0 0.0
    %v760 = vand.u32 %v389, 4294901760
    %v761 = vsub.f32 %v389, %v760
    %v762 = vand.u32 %v761, 4294901760
    %v763 = vsub.f32 %v761, %v762
    %v764 = vand.u32 %v763, 4294901760
    %765 = vmatmul.mubr.f32.gmra.mrb[0].mxu0 %v764
    %v766 = vpop.f32.mrb[0].mxu0
    %v767 = vadd.f32 0.0, %v766
    %v768 = vpop.f32.mrb[0].mxu0
    %769 = vmatprep.mubr.f32.mxu0 0.0
    %v770 = vand.u32 %v392, 4294901760
    %v771 = vsub.f32 %v392, %v770
    %v772 = vand.u32 %v771, 4294901760
    %v773 = vsub.f32 %v771, %v772
    %v774 = vand.u32 %v773, 4294901760
    %775 = vmatmul.mubr.f32.gmra.mrb[0].mxu0 %v774
    %v776 = vpop.f32.mrb[0].mxu0
    %v777 = vadd.f32 0.0, %v776
    %v778 = vpop.f32.mrb[0].mxu0
    %779 = vmatprep.mubr.f32.mxu0 0.0
    %v780 = vand.u32 %v395, 4294901760
    %v781 = vsub.f32 %v395, %v780
    %v782 = vand.u32 %v781, 4294901760
    %v783 = vsub.f32 %v781, %v782
    %v784 = vand.u32 %v783, 4294901760
    %785 = vmatmul.mubr.f32.gmra.mrb[0].mxu0 %v784
    %v786 = vpop.f32.mrb[0].mxu0
    %v787 = vadd.f32 0.0, %v786
    %v788 = vpop.f32.mrb[0].mxu0
    %789 = vdwg.mxu0
    %790 = vmatprep.subr.mxu0 0.0
    %v791 = vand.u32 %v52, 4294901760
    %v792 = vsub.f32 %v52, %v791
    %v793 = vand.u32 %v792, 4294901760
    %v794 = vsub.f32 %v792, %v793
    %v795 = vand.u32 %v794, 4294901760
    %796 = vmatpush1.msra.mxu0 %v795
    %797 = vmatprep.subr.mxu0 0.0
    %v798 = vand.u32 %v53, 4294901760
    %v799 = vsub.f32 %v53, %v798
    %v800 = vand.u32 %v799, 4294901760
    %v801 = vsub.f32 %v799, %v800
    %v802 = vand.u32 %v801, 4294901760
    %803 = vmatpush1.msra.mxu0 %v802
    %804 = vmatprep.subr.mxu0 0.0
    %v805 = vand.u32 %v54, 4294901760
    %v806 = vsub.f32 %v54, %v805
    %v807 = vand.u32 %v806, 4294901760
    %v808 = vsub.f32 %v806, %v807
    %v809 = vand.u32 %v808, 4294901760
    %810 = vmatpush1.msra.mxu0 %v809
    %811 = vmatprep.subr.mxu0 0.0
    %v812 = vand.u32 %v55, 4294901760
    %v813 = vsub.f32 %v55, %v812
    %v814 = vand.u32 %v813, 4294901760
    %v815 = vsub.f32 %v813, %v814
    %v816 = vand.u32 %v815, 4294901760
    %817 = vmatpush1.msra.mxu0 %v816
    %818 = vmatprep.subr.mxu0 0.0
    %v819 = vand.u32 %v56, 4294901760
    %v820 = vsub.f32 %v56, %v819
    %v821 = vand.u32 %v820, 4294901760
    %v822 = vsub.f32 %v820, %v821
    %v823 = vand.u32 %v822, 4294901760
    %824 = vmatpush1.msra.mxu0 %v823
    %825 = vmatprep.subr.mxu0 0.0
    %v826 = vand.u32 %v57, 4294901760
    %v827 = vsub.f32 %v57, %v826
    %v828 = vand.u32 %v827, 4294901760
    %v829 = vsub.f32 %v827, %v828
    %v830 = vand.u32 %v829, 4294901760
    %831 = vmatpush1.msra.mxu0 %v830
    %832 = vmatprep.subr.mxu0 0.0
    %v833 = vand.u32 %v58, 4294901760
    %v834 = vsub.f32 %v58, %v833
    %v835 = vand.u32 %v834, 4294901760
    %v836 = vsub.f32 %v834, %v835
    %v837 = vand.u32 %v836, 4294901760
    %838 = vmatpush1.msra.mxu0 %v837
    %839 = vmatprep.subr.mxu0 0.0
    %v840 = vand.u32 %v59, 4294901760
    %v841 = vsub.f32 %v59, %v840
    %v842 = vand.u32 %v841, 4294901760
    %v843 = vsub.f32 %v841, %v842
    %v844 = vand.u32 %v843, 4294901760
    %845 = vmatpush1.msra.mxu0 %v844
    %846 = vmatprep.subr.mxu0 0.0
    %847 = vmatpush1.msra.mxu0 0.0
    %848 = vmatprep.subr.mxu0 0.0
    %849 = vmatpush1.msra.mxu0 0.0
    %850 = vmatprep.subr.mxu0 0.0
    %851 = vmatpush1.msra.mxu0 0.0
    %852 = vmatprep.subr.mxu0 0.0
    %853 = vmatpush1.msra.mxu0 0.0
    %854 = vmatprep.subr.mxu0 0.0
    %855 = vmatpush1.msra.mxu0 0.0
    %856 = vmatprep.subr.mxu0 0.0
    %857 = vmatpush1.msra.mxu0 0.0
    %858 = vmatprep.subr.mxu0 0.0
    %859 = vmatpush1.msra.mxu0 0.0
    %860 = vmatprep.subr.mxu0 0.0
    %861 = vmatpush1.msra.mxu0 0.0
    %862 = vmatprep.subr.mxu0 0.0
    %863 = vmatpush1.msra.mxu0 0.0
    %864 = vmatprep.subr.mxu0 0.0
    %865 = vmatpush1.msra.mxu0 0.0
    %866 = vmatprep.subr.mxu0 0.0
    %867 = vmatpush1.msra.mxu0 0.0
    %868 = vmatprep.subr.mxu0 0.0
    %869 = vmatpush1.msra.mxu0 0.0
    %870 = vmatprep.subr.mxu0 0.0
    %871 = vmatpush1.msra.mxu0 0.0
    %872 = vmatprep.subr.mxu0 0.0
    %873 = vmatpush1.msra.mxu0 0.0
    %874 = vmatprep.subr.mxu0 0.0
    %875 = vmatpush1.msra.mxu0 0.0
    %876 = vmatprep.subr.mxu0 0.0
    %877 = vmatpush1.msra.mxu0 0.0
    %878 = vmatprep.subr.mxu0 0.0
    %879 = vmatpush1.msra.mxu0 0.0
    %880 = vmatprep.subr.mxu0 0.0
    %881 = vmatpush1.msra.mxu0 0.0
    %882 = vmatprep.subr.mxu0 0.0
    %883 = vmatpush1.msra.mxu0 0.0
    %884 = vmatprep.subr.mxu0 0.0
    %885 = vmatpush1.msra.mxu0 0.0
    %886 = vmatprep.subr.mxu0 0.0
    %887 = vmatpush1.msra.mxu0 0.0
    %888 = vmatprep.subr.mxu0 0.0
    %889 = vmatpush1.msra.mxu0 0.0
    %890 = vmatprep.subr.mxu0 0.0
    %891 = vmatpush1.msra.mxu0 0.0
    %892 = vmatprep.subr.mxu0 0.0
    %893 = vmatpush1.msra.mxu0 0.0
    %894 = vmatprep.mubr.f32.mxu0 0.0
    %v895 = vand.u32 %v302, 4294901760
    %896 = vmatmul.mubr.f32.gmra.mrb[0].mxu0 %v895
    %v897 = vpop.f32.mrb[0].mxu0
    %v898 = vadd.f32 %v477, %v897
    %v899 = vpop.f32.mrb[0].mxu0
    %900 = vmatprep.mubr.f32.mxu0 0.0
    %v901 = vand.u32 %v305, 4294901760
    %902 = vmatmul.mubr.f32.gmra.mrb[0].mxu0 %v901
    %v903 = vpop.f32.mrb[0].mxu0
    %v904 = vadd.f32 %v487, %v903
    %v905 = vpop.f32.mrb[0].mxu0
    %906 = vmatprep.mubr.f32.mxu0 0.0
    %v907 = vand.u32 %v308, 4294901760
    %908 = vmatmul.mubr.f32.gmra.mrb[0].mxu0 %v907
    %v909 = vpop.f32.mrb[0].mxu0
    %v910 = vadd.f32 %v497, %v909
    %v911 = vpop.f32.mrb[0].mxu0
    %912 = vmatprep.mubr.f32.mxu0 0.0
    %v913 = vand.u32 %v311, 4294901760
    %914 = vmatmul.mubr.f32.gmra.mrb[0].mxu0 %v913
    %v915 = vpop.f32.mrb[0].mxu0
    %v916 = vadd.f32 %v507, %v915
    %v917 = vpop.f32.mrb[0].mxu0
    %918 = vmatprep.mubr.f32.mxu0 0.0
    %v919 = vand.u32 %v314, 4294901760
    %920 = vmatmul.mubr.f32.gmra.mrb[0].mxu0 %v919
    %v921 = vpop.f32.mrb[0].mxu0
    %v922 = vadd.f32 %v517, %v921
    %v923 = vpop.f32.mrb[0].mxu0
    %924 = vmatprep.mubr.f32.mxu0 0.0
    %v925 = vand.u32 %v317, 4294901760
    %926 = vmatmul.mubr.f32.gmra.mrb[0].mxu0 %v925
    %v927 = vpop.f32.mrb[0].mxu0
    %v928 = vadd.f32 %v527, %v927
    %v929 = vpop.f32.mrb[0].mxu0
    %930 = vmatprep.mubr.f32.mxu0 0.0
    %v931 = vand.u32 %v320, 4294901760
    %932 = vmatmul.mubr.f32.gmra.mrb[0].mxu0 %v931
    %v933 = vpop.f32.mrb[0].mxu0
    %v934 = vadd.f32 %v537, %v933
    %v935 = vpop.f32.mrb[0].mxu0
    %936 = vmatprep.mubr.f32.mxu0 0.0
    %v937 = vand.u32 %v323, 4294901760
    %938 = vmatmul.mubr.f32.gmra.mrb[0].mxu0 %v937
    %v939 = vpop.f32.mrb[0].mxu0
    %v940 = vadd.f32 %v547, %v939
    %v941 = vpop.f32.mrb[0].mxu0
    %942 = vmatprep.mubr.f32.mxu0 0.0
    %v943 = vand.u32 %v326, 4294901760
    %944 = vmatmul.mubr.f32.gmra.mrb[0].mxu0 %v943
    %v945 = vpop.f32.mrb[0].mxu0
    %v946 = vadd.f32 %v557, %v945
    %v947 = vpop.f32.mrb[0].mxu0
    %948 = vmatprep.mubr.f32.mxu0 0.0
    %v949 = vand.u32 %v329, 4294901760
    %950 = vmatmul.mubr.f32.gmra.mrb[0].mxu0 %v949
    %v951 = vpop.f32.mrb[0].mxu0
    %v952 = vadd.f32 %v567, %v951
    %v953 = vpop.f32.mrb[0].mxu0
    %954 = vmatprep.mubr.f32.mxu0 0.0
    %v955 = vand.u32 %v332, 4294901760
    %956 = vmatmul.mubr.f32.gmra.mrb[0].mxu0 %v955
    %v957 = vpop.f32.mrb[0].mxu0
    %v958 = vadd.f32 %v577, %v957
    %v959 = vpop.f32.mrb[0].mxu0
    %960 = vmatprep.mubr.f32.mxu0 0.0
    %v961 = vand.u32 %v335, 4294901760
    %962 = vmatmul.mubr.f32.gmra.mrb[0].mxu0 %v961
    %v963 = vpop.f32.mrb[0].mxu0
    %v964 = vadd.f32 %v587, %v963
    %v965 = vpop.f32.mrb[0].mxu0
    %966 = vmatprep.mubr.f32.mxu0 0.0
    %v967 = vand.u32 %v338, 4294901760
    %968 = vmatmul.mubr.f32.gmra.mrb[0].mxu0 %v967
    %v969 = vpop.f32.mrb[0].mxu0
    %v970 = vadd.f32 %v597, %v969
    %v971 = vpop.f32.mrb[0].mxu0
    %972 = vmatprep.mubr.f32.mxu0 0.0
    %v973 = vand.u32 %v341, 4294901760
    %974 = vmatmul.mubr.f32.gmra.mrb[0].mxu0 %v973
    %v975 = vpop.f32.mrb[0].mxu0
    %v976 = vadd.f32 %v607, %v975
    %v977 = vpop.f32.mrb[0].mxu0
    %978 = vmatprep.mubr.f32.mxu0 0.0
    %v979 = vand.u32 %v344, 4294901760
    %980 = vmatmul.mubr.f32.gmra.mrb[0].mxu0 %v979
    %v981 = vpop.f32.mrb[0].mxu0
    %v982 = vadd.f32 %v617, %v981
    %v983 = vpop.f32.mrb[0].mxu0
    %984 = vmatprep.mubr.f32.mxu0 0.0
    %v985 = vand.u32 %v347, 4294901760
    %986 = vmatmul.mubr.f32.gmra.mrb[0].mxu0 %v985
    %v987 = vpop.f32.mrb[0].mxu0
    %v988 = vadd.f32 %v627, %v987
    %v989 = vpop.f32.mrb[0].mxu0
    %990 = vmatprep.mubr.f32.mxu0 0.0
    %v991 = vand.u32 %v350, 4294901760
    %992 = vmatmul.mubr.f32.gmra.mrb[0].mxu0 %v991
    %v993 = vpop.f32.mrb[0].mxu0
    %v994 = vadd.f32 %v637, %v993
    %v995 = vpop.f32.mrb[0].mxu0
    %996 = vmatprep.mubr.f32.mxu0 0.0
    %v997 = vand.u32 %v353, 4294901760
    %998 = vmatmul.mubr.f32.gmra.mrb[0].mxu0 %v997
    %v999 = vpop.f32.mrb[0].mxu0
    %v1000 = vadd.f32 %v647, %v999
    %v1001 = vpop.f32.mrb[0].mxu0
    %1002 = vmatprep.mubr.f32.mxu0 0.0
    %v1003 = vand.u32 %v356, 4294901760
    %1004 = vmatmul.mubr.f32.gmra.mrb[0].mxu0 %v1003
    %v1005 = vpop.f32.mrb[0].mxu0
    %v1006 = vadd.f32 %v657, %v1005
    %v1007 = vpop.f32.mrb[0].mxu0
    %1008 = vmatprep.mubr.f32.mxu0 0.0
    %v1009 = vand.u32 %v359, 4294901760
    %1010 = vmatmul.mubr.f32.gmra.mrb[0].mxu0 %v1009
    %v1011 = vpop.f32.mrb[0].mxu0
    %v1012 = vadd.f32 %v667, %v1011
    %v1013 = vpop.f32.mrb[0].mxu0
    %1014 = vmatprep.mubr.f32.mxu0 0.0
    %v1015 = vand.u32 %v362, 4294901760
    %1016 = vmatmul.mubr.f32.gmra.mrb[0].mxu0 %v1015
    %v1017 = vpop.f32.mrb[0].mxu0
    %v1018 = vadd.f32 %v677, %v1017
    %v1019 = vpop.f32.mrb[0].mxu0
    %1020 = vmatprep.mubr.f32.mxu0 0.0
    %v1021 = vand.u32 %v365, 4294901760
    %1022 = vmatmul.mubr.f32.gmra.mrb[0].mxu0 %v1021
    %v1023 = vpop.f32.mrb[0].mxu0
    %v1024 = vadd.f32 %v687, %v1023
    %v1025 = vpop.f32.mrb[0].mxu0
    %1026 = vmatprep.mubr.f32.mxu0 0.0
    %v1027 = vand.u32 %v368, 4294901760
    %1028 = vmatmul.mubr.f32.gmra.mrb[0].mxu0 %v1027
    %v1029 = vpop.f32.mrb[0].mxu0
    %v1030 = vadd.f32 %v697, %v1029
    %v1031 = vpop.f32.mrb[0].mxu0
    %1032 = vmatprep.mubr.f32.mxu0 0.0
    %v1033 = vand.u32 %v371, 4294901760
    %1034 = vmatmul.mubr.f32.gmra.mrb[0].mxu0 %v1033
    %v1035 = vpop.f32.mrb[0].mxu0
    %v1036 = vadd.f32 %v707, %v1035
    %v1037 = vpop.f32.mrb[0].mxu0
    %1038 = vmatprep.mubr.f32.mxu0 0.0
    %v1039 = vand.u32 %v374, 4294901760
    %1040 = vmatmul.mubr.f32.gmra.mrb[0].mxu0 %v1039
    %v1041 = vpop.f32.mrb[0].mxu0
    %v1042 = vadd.f32 %v717, %v1041
    %v1043 = vpop.f32.mrb[0].mxu0
    %1044 = vmatprep.mubr.f32.mxu0 0.0
    %v1045 = vand.u32 %v377, 4294901760
    %1046 = vmatmul.mubr.f32.gmra.mrb[0].mxu0 %v1045
    %v1047 = vpop.f32.mrb[0].mxu0
    %v1048 = vadd.f32 %v727, %v1047
    %v1049 = vpop.f32.mrb[0].mxu0
    %1050 = vmatprep.mubr.f32.mxu0 0.0
    %v1051 = vand.u32 %v380, 4294901760
    %1052 = vmatmul.mubr.f32.gmra.mrb[0].mxu0 %v1051
    %v1053 = vpop.f32.mrb[0].mxu0
    %v1054 = vadd.f32 %v737, %v1053
    %v1055 = vpop.f32.mrb[0].mxu0
    %1056 = vmatprep.mubr.f32.mxu0 0.0
    %v1057 = vand.u32 %v383, 4294901760
    %1058 = vmatmul.mubr.f32.gmra.mrb[0].mxu0 %v1057
    %v1059 = vpop.f32.mrb[0].mxu0
    %v1060 = vadd.f32 %v747, %v1059
    %v1061 = vpop.f32.mrb[0].mxu0
    %1062 = vmatprep.mubr.f32.mxu0 0.0
    %v1063 = vand.u32 %v386, 4294901760
    %1064 = vmatmul.mubr.f32.gmra.mrb[0].mxu0 %v1063
    %v1065 = vpop.f32.mrb[0].mxu0
    %v1066 = vadd.f32 %v757, %v1065
    %v1067 = vpop.f32.mrb[0].mxu0
    %1068 = vmatprep.mubr.f32.mxu0 0.0
    %v1069 = vand.u32 %v389, 4294901760
    %1070 = vmatmul.mubr.f32.gmra.mrb[0].mxu0 %v1069
    %v1071 = vpop.f32.mrb[0].mxu0
    %v1072 = vadd.f32 %v767, %v1071
    %v1073 = vpop.f32.mrb[0].mxu0
    %1074 = vmatprep.mubr.f32.mxu0 0.0
    %v1075 = vand.u32 %v392, 4294901760
    %1076 = vmatmul.mubr.f32.gmra.mrb[0].mxu0 %v1075
    %v1077 = vpop.f32.mrb[0].mxu0
    %v1078 = vadd.f32 %v777, %v1077
    %v1079 = vpop.f32.mrb[0].mxu0
    %1080 = vmatprep.mubr.f32.mxu0 0.0
    %v1081 = vand.u32 %v395, 4294901760
    %1082 = vmatmul.mubr.f32.gmra.mrb[0].mxu0 %v1081
    %v1083 = vpop.f32.mrb[0].mxu0
    %v1084 = vadd.f32 %v787, %v1083
    %v1085 = vpop.f32.mrb[0].mxu0
    %1086 = vdwg.mxu0
    %1087 = vmatprep.subr.mxu0 0.0
    %v1088 = vand.u32 %v52, 4294901760
    %v1089 = vsub.f32 %v52, %v1088
    %1090 = vmatpush1.msra.mxu0 %v1089
    %1091 = vmatprep.subr.mxu0 0.0
    %v1092 = vand.u32 %v53, 4294901760
    %v1093 = vsub.f32 %v53, %v1092
    %1094 = vmatpush1.msra.mxu0 %v1093
    %1095 = vmatprep.subr.mxu0 0.0
    %v1096 = vand.u32 %v54, 4294901760
    %v1097 = vsub.f32 %v54, %v1096
    %1098 = vmatpush1.msra.mxu0 %v1097
    %1099 = vmatprep.subr.mxu0 0.0
    %v1100 = vand.u32 %v55, 4294901760
    %v1101 = vsub.f32 %v55, %v1100
    %1102 = vmatpush1.msra.mxu0 %v1101
    %1103 = vmatprep.subr.mxu0 0.0
    %v1104 = vand.u32 %v56, 4294901760
    %v1105 = vsub.f32 %v56, %v1104
    %1106 = vmatpush1.msra.mxu0 %v1105
    %1107 = vmatprep.subr.mxu0 0.0
    %v1108 = vand.u32 %v57, 4294901760
    %v1109 = vsub.f32 %v57, %v1108
    %1110 = vmatpush1.msra.mxu0 %v1109
    %1111 = vmatprep.subr.mxu0 0.0
    %v1112 = vand.u32 %v58, 4294901760
    %v1113 = vsub.f32 %v58, %v1112
    %1114 = vmatpush1.msra.mxu0 %v1113
    %1115 = vmatprep.subr.mxu0 0.0
    %v1116 = vand.u32 %v59, 4294901760
    %v1117 = vsub.f32 %v59, %v1116
    %1118 = vmatpush1.msra.mxu0 %v1117
    %1119 = vmatprep.subr.mxu0 0.0
    %1120 = vmatpush1.msra.mxu0 0.0
    %1121 = vmatprep.subr.mxu0 0.0
    %1122 = vmatpush1.msra.mxu0 0.0
    %1123 = vmatprep.subr.mxu0 0.0
    %1124 = vmatpush1.msra.mxu0 0.0
    %1125 = vmatprep.subr.mxu0 0.0
    %1126 = vmatpush1.msra.mxu0 0.0
    %1127 = vmatprep.subr.mxu0 0.0
    %1128 = vmatpush1.msra.mxu0 0.0
    %1129 = vmatprep.subr.mxu0 0.0
    %1130 = vmatpush1.msra.mxu0 0.0
    %1131 = vmatprep.subr.mxu0 0.0
    %1132 = vmatpush1.msra.mxu0 0.0
    %1133 = vmatprep.subr.mxu0 0.0
    %1134 = vmatpush1.msra.mxu0 0.0
    %1135 = vmatprep.subr.mxu0 0.0
    %1136 = vmatpush1.msra.mxu0 0.0
    %1137 = vmatprep.subr.mxu0 0.0
    %1138 = vmatpush1.msra.mxu0 0.0
    %1139 = vmatprep.subr.mxu0 0.0
    %1140 = vmatpush1.msra.mxu0 0.0
    %1141 = vmatprep.subr.mxu0 0.0
    %1142 = vmatpush1.msra.mxu0 0.0
    %1143 = vmatprep.subr.mxu0 0.0
    %1144 = vmatpush1.msra.mxu0 0.0
    %1145 = vmatprep.subr.mxu0 0.0
    %1146 = vmatpush1.msra.mxu0 0.0
    %1147 = vmatprep.subr.mxu0 0.0
    %1148 = vmatpush1.msra.mxu0 0.0
    %1149 = vmatprep.subr.mxu0 0.0
    %1150 = vmatpush1.msra.mxu0 0.0
    %1151 = vmatprep.subr.mxu0 0.0
    %1152 = vmatpush1.msra.mxu0 0.0
    %1153 = vmatprep.subr.mxu0 0.0
    %1154 = vmatpush1.msra.mxu0 0.0
    %1155 = vmatprep.subr.mxu0 0.0
    %1156 = vmatpush1.msra.mxu0 0.0
    %1157 = vmatprep.subr.mxu0 0.0
    %1158 = vmatpush1.msra.mxu0 0.0
    %1159 = vmatprep.subr.mxu0 0.0
    %1160 = vmatpush1.msra.mxu0 0.0
    %1161 = vmatprep.subr.mxu0 0.0
    %1162 = vmatpush1.msra.mxu0 0.0
    %1163 = vmatprep.subr.mxu0 0.0
    %1164 = vmatpush1.msra.mxu0 0.0
    %1165 = vmatprep.subr.mxu0 0.0
    %1166 = vmatpush1.msra.mxu0 0.0
    %1167 = vmatprep.mubr.f32.mxu0 0.0
    %v1168 = vand.u32 %v302, 4294901760
    %v1169 = vsub.f32 %v302, %v1168
    %1170 = vmatmul.mubr.f32.gmra.mrb[0].mxu0 %v1169
    %v1171 = vpop.f32.mrb[0].mxu0
    %v1172 = vadd.f32 %v898, %v1171
    %v1173 = vpop.f32.mrb[0].mxu0
    %1174 = vmatprep.mubr.f32.mxu0 0.0
    %v1175 = vand.u32 %v305, 4294901760
    %v1176 = vsub.f32 %v305, %v1175
    %1177 = vmatmul.mubr.f32.gmra.mrb[0].mxu0 %v1176
    %v1178 = vpop.f32.mrb[0].mxu0
    %v1179 = vadd.f32 %v904, %v1178
    %v1180 = vpop.f32.mrb[0].mxu0
    %1181 = vmatprep.mubr.f32.mxu0 0.0
    %v1182 = vand.u32 %v308, 4294901760
    %v1183 = vsub.f32 %v308, %v1182
    %1184 = vmatmul.mubr.f32.gmra.mrb[0].mxu0 %v1183
    %v1185 = vpop.f32.mrb[0].mxu0
    %v1186 = vadd.f32 %v910, %v1185
    %v1187 = vpop.f32.mrb[0].mxu0
    %1188 = vmatprep.mubr.f32.mxu0 0.0
    %v1189 = vand.u32 %v311, 4294901760
    %v1190 = vsub.f32 %v311, %v1189
    %1191 = vmatmul.mubr.f32.gmra.mrb[0].mxu0 %v1190
    %v1192 = vpop.f32.mrb[0].mxu0
    %v1193 = vadd.f32 %v916, %v1192
    %v1194 = vpop.f32.mrb[0].mxu0
    %1195 = vmatprep.mubr.f32.mxu0 0.0
    %v1196 = vand.u32 %v314, 4294901760
    %v1197 = vsub.f32 %v314, %v1196
    %1198 = vmatmul.mubr.f32.gmra.mrb[0].mxu0 %v1197
    %v1199 = vpop.f32.mrb[0].mxu0
    %v1200 = vadd.f32 %v922, %v1199
    %v1201 = vpop.f32.mrb[0].mxu0
    %1202 = vmatprep.mubr.f32.mxu0 0.0
    %v1203 = vand.u32 %v317, 4294901760
    %v1204 = vsub.f32 %v317, %v1203
    %1205 = vmatmul.mubr.f32.gmra.mrb[0].mxu0 %v1204
    %v1206 = vpop.f32.mrb[0].mxu0
    %v1207 = vadd.f32 %v928, %v1206
    %v1208 = vpop.f32.mrb[0].mxu0
    %1209 = vmatprep.mubr.f32.mxu0 0.0
    %v1210 = vand.u32 %v320, 4294901760
    %v1211 = vsub.f32 %v320, %v1210
    %1212 = vmatmul.mubr.f32.gmra.mrb[0].mxu0 %v1211
    %v1213 = vpop.f32.mrb[0].mxu0
    %v1214 = vadd.f32 %v934, %v1213
    %v1215 = vpop.f32.mrb[0].mxu0
    %1216 = vmatprep.mubr.f32.mxu0 0.0
    %v1217 = vand.u32 %v323, 4294901760
    %v1218 = vsub.f32 %v323, %v1217
    %1219 = vmatmul.mubr.f32.gmra.mrb[0].mxu0 %v1218
    %v1220 = vpop.f32.mrb[0].mxu0
    %v1221 = vadd.f32 %v940, %v1220
    %v1222 = vpop.f32.mrb[0].mxu0
    %1223 = vmatprep.mubr.f32.mxu0 0.0
    %v1224 = vand.u32 %v326, 4294901760
    %v1225 = vsub.f32 %v326, %v1224
    %1226 = vmatmul.mubr.f32.gmra.mrb[0].mxu0 %v1225
    %v1227 = vpop.f32.mrb[0].mxu0
    %v1228 = vadd.f32 %v946, %v1227
    %v1229 = vpop.f32.mrb[0].mxu0
    %1230 = vmatprep.mubr.f32.mxu0 0.0
    %v1231 = vand.u32 %v329, 4294901760
    %v1232 = vsub.f32 %v329, %v1231
    %1233 = vmatmul.mubr.f32.gmra.mrb[0].mxu0 %v1232
    %v1234 = vpop.f32.mrb[0].mxu0
    %v1235 = vadd.f32 %v952, %v1234
    %v1236 = vpop.f32.mrb[0].mxu0
    %1237 = vmatprep.mubr.f32.mxu0 0.0
    %v1238 = vand.u32 %v332, 4294901760
    %v1239 = vsub.f32 %v332, %v1238
    %1240 = vmatmul.mubr.f32.gmra.mrb[0].mxu0 %v1239
    %v1241 = vpop.f32.mrb[0].mxu0
    %v1242 = vadd.f32 %v958, %v1241
    %v1243 = vpop.f32.mrb[0].mxu0
    %1244 = vmatprep.mubr.f32.mxu0 0.0
    %v1245 = vand.u32 %v335, 4294901760
    %v1246 = vsub.f32 %v335, %v1245
    %1247 = vmatmul.mubr.f32.gmra.mrb[0].mxu0 %v1246
    %v1248 = vpop.f32.mrb[0].mxu0
    %v1249 = vadd.f32 %v964, %v1248
    %v1250 = vpop.f32.mrb[0].mxu0
    %1251 = vmatprep.mubr.f32.mxu0 0.0
    %v1252 = vand.u32 %v338, 4294901760
    %v1253 = vsub.f32 %v338, %v1252
    %1254 = vmatmul.mubr.f32.gmra.mrb[0].mxu0 %v1253
    %v1255 = vpop.f32.mrb[0].mxu0
    %v1256 = vadd.f32 %v970, %v1255
    %v1257 = vpop.f32.mrb[0].mxu0
    %1258 = vmatprep.mubr.f32.mxu0 0.0
    %v1259 = vand.u32 %v341, 4294901760
    %v1260 = vsub.f32 %v341, %v1259
    %1261 = vmatmul.mubr.f32.gmra.mrb[0].mxu0 %v1260
    %v1262 = vpop.f32.mrb[0].mxu0
    %v1263 = vadd.f32 %v976, %v1262
    %v1264 = vpop.f32.mrb[0].mxu0
    %1265 = vmatprep.mubr.f32.mxu0 0.0
    %v1266 = vand.u32 %v344, 4294901760
    %v1267 = vsub.f32 %v344, %v1266
    %1268 = vmatmul.mubr.f32.gmra.mrb[0].mxu0 %v1267
    %v1269 = vpop.f32.mrb[0].mxu0
    %v1270 = vadd.f32 %v982, %v1269
    %v1271 = vpop.f32.mrb[0].mxu0
    %1272 = vmatprep.mubr.f32.mxu0 0.0
    %v1273 = vand.u32 %v347, 4294901760
    %v1274 = vsub.f32 %v347, %v1273
    %1275 = vmatmul.mubr.f32.gmra.mrb[0].mxu0 %v1274
    %v1276 = vpop.f32.mrb[0].mxu0
    %v1277 = vadd.f32 %v988, %v1276
    %v1278 = vpop.f32.mrb[0].mxu0
    %1279 = vmatprep.mubr.f32.mxu0 0.0
    %v1280 = vand.u32 %v350, 4294901760
    %v1281 = vsub.f32 %v350, %v1280
    %1282 = vmatmul.mubr.f32.gmra.mrb[0].mxu0 %v1281
    %v1283 = vpop.f32.mrb[0].mxu0
    %v1284 = vadd.f32 %v994, %v1283
    %v1285 = vpop.f32.mrb[0].mxu0
    %1286 = vmatprep.mubr.f32.mxu0 0.0
    %v1287 = vand.u32 %v353, 4294901760
    %v1288 = vsub.f32 %v353, %v1287
    %1289 = vmatmul.mubr.f32.gmra.mrb[0].mxu0 %v1288
    %v1290 = vpop.f32.mrb[0].mxu0
    %v1291 = vadd.f32 %v1000, %v1290
    %v1292 = vpop.f32.mrb[0].mxu0
    %1293 = vmatprep.mubr.f32.mxu0 0.0
    %v1294 = vand.u32 %v356, 4294901760
    %v1295 = vsub.f32 %v356, %v1294
    %1296 = vmatmul.mubr.f32.gmra.mrb[0].mxu0 %v1295
    %v1297 = vpop.f32.mrb[0].mxu0
    %v1298 = vadd.f32 %v1006, %v1297
    %v1299 = vpop.f32.mrb[0].mxu0
    %1300 = vmatprep.mubr.f32.mxu0 0.0
    %v1301 = vand.u32 %v359, 4294901760
    %v1302 = vsub.f32 %v359, %v1301
    %1303 = vmatmul.mubr.f32.gmra.mrb[0].mxu0 %v1302
    %v1304 = vpop.f32.mrb[0].mxu0
    %v1305 = vadd.f32 %v1012, %v1304
    %v1306 = vpop.f32.mrb[0].mxu0
    %1307 = vmatprep.mubr.f32.mxu0 0.0
    %v1308 = vand.u32 %v362, 4294901760
    %v1309 = vsub.f32 %v362, %v1308
    %1310 = vmatmul.mubr.f32.gmra.mrb[0].mxu0 %v1309
    %v1311 = vpop.f32.mrb[0].mxu0
    %v1312 = vadd.f32 %v1018, %v1311
    %v1313 = vpop.f32.mrb[0].mxu0
    %1314 = vmatprep.mubr.f32.mxu0 0.0
    %v1315 = vand.u32 %v365, 4294901760
    %v1316 = vsub.f32 %v365, %v1315
    %1317 = vmatmul.mubr.f32.gmra.mrb[0].mxu0 %v1316
    %v1318 = vpop.f32.mrb[0].mxu0
    %v1319 = vadd.f32 %v1024, %v1318
    %v1320 = vpop.f32.mrb[0].mxu0
    %1321 = vmatprep.mubr.f32.mxu0 0.0
    %v1322 = vand.u32 %v368, 4294901760
    %v1323 = vsub.f32 %v368, %v1322
    %1324 = vmatmul.mubr.f32.gmra.mrb[0].mxu0 %v1323
    %v1325 = vpop.f32.mrb[0].mxu0
    %v1326 = vadd.f32 %v1030, %v1325
    %v1327 = vpop.f32.mrb[0].mxu0
    %1328 = vmatprep.mubr.f32.mxu0 0.0
    %v1329 = vand.u32 %v371, 4294901760
    %v1330 = vsub.f32 %v371, %v1329
    %1331 = vmatmul.mubr.f32.gmra.mrb[0].mxu0 %v1330
    %v1332 = vpop.f32.mrb[0].mxu0
    %v1333 = vadd.f32 %v1036, %v1332
    %v1334 = vpop.f32.mrb[0].mxu0
    %1335 = vmatprep.mubr.f32.mxu0 0.0
    %v1336 = vand.u32 %v374, 4294901760
    %v1337 = vsub.f32 %v374, %v1336
    %1338 = vmatmul.mubr.f32.gmra.mrb[0].mxu0 %v1337
    %v1339 = vpop.f32.mrb[0].mxu0
    %v1340 = vadd.f32 %v1042, %v1339
    %v1341 = vpop.f32.mrb[0].mxu0
    %1342 = vmatprep.mubr.f32.mxu0 0.0
    %v1343 = vand.u32 %v377, 4294901760
    %v1344 = vsub.f32 %v377, %v1343
    %1345 = vmatmul.mubr.f32.gmra.mrb[0].mxu0 %v1344
    %v1346 = vpop.f32.mrb[0].mxu0
    %v1347 = vadd.f32 %v1048, %v1346
    %v1348 = vpop.f32.mrb[0].mxu0
    %1349 = vmatprep.mubr.f32.mxu0 0.0
    %v1350 = vand.u32 %v380, 4294901760
    %v1351 = vsub.f32 %v380, %v1350
    %1352 = vmatmul.mubr.f32.gmra.mrb[0].mxu0 %v1351
    %v1353 = vpop.f32.mrb[0].mxu0
    %v1354 = vadd.f32 %v1054, %v1353
    %v1355 = vpop.f32.mrb[0].mxu0
    %1356 = vmatprep.mubr.f32.mxu0 0.0
    %v1357 = vand.u32 %v383, 4294901760
    %v1358 = vsub.f32 %v383, %v1357
    %1359 = vmatmul.mubr.f32.gmra.mrb[0].mxu0 %v1358
    %v1360 = vpop.f32.mrb[0].mxu0
    %v1361 = vadd.f32 %v1060, %v1360
    %v1362 = vpop.f32.mrb[0].mxu0
    %1363 = vmatprep.mubr.f32.mxu0 0.0
    %v1364 = vand.u32 %v386, 4294901760
    %v1365 = vsub.f32 %v386, %v1364
    %1366 = vmatmul.mubr.f32.gmra.mrb[0].mxu0 %v1365
    %v1367 = vpop.f32.mrb[0].mxu0
    %v1368 = vadd.f32 %v1066, %v1367
    %v1369 = vpop.f32.mrb[0].mxu0
    %1370 = vmatprep.mubr.f32.mxu0 0.0
    %v1371 = vand.u32 %v389, 4294901760
    %v1372 = vsub.f32 %v389, %v1371
    %1373 = vmatmul.mubr.f32.gmra.mrb[0].mxu0 %v1372
    %v1374 = vpop.f32.mrb[0].mxu0
    %v1375 = vadd.f32 %v1072, %v1374
    %v1376 = vpop.f32.mrb[0].mxu0
    %1377 = vmatprep.mubr.f32.mxu0 0.0
    %v1378 = vand.u32 %v392, 4294901760
    %v1379 = vsub.f32 %v392, %v1378
    %1380 = vmatmul.mubr.f32.gmra.mrb[0].mxu0 %v1379
    %v1381 = vpop.f32.mrb[0].mxu0
    %v1382 = vadd.f32 %v1078, %v1381
    %v1383 = vpop.f32.mrb[0].mxu0
    %1384 = vmatprep.mubr.f32.mxu0 0.0
    %v1385 = vand.u32 %v395, 4294901760
    %v1386 = vsub.f32 %v395, %v1385
    %1387 = vmatmul.mubr.f32.gmra.mrb[0].mxu0 %v1386
    %v1388 = vpop.f32.mrb[0].mxu0
    %v1389 = vadd.f32 %v1084, %v1388
    %v1390 = vpop.f32.mrb[0].mxu0
    %1391 = vdwg.mxu0
    %1392 = vmatprep.subr.mxu0 0.0
    %v1393 = vand.u32 %v52, 4294901760
    %1394 = vmatpush1.msra.mxu0 %v1393
    %1395 = vmatprep.subr.mxu0 0.0
    %v1396 = vand.u32 %v53, 4294901760
    %1397 = vmatpush1.msra.mxu0 %v1396
    %1398 = vmatprep.subr.mxu0 0.0
    %v1399 = vand.u32 %v54, 4294901760
    %1400 = vmatpush1.msra.mxu0 %v1399
    %1401 = vmatprep.subr.mxu0 0.0
    %v1402 = vand.u32 %v55, 4294901760
    %1403 = vmatpush1.msra.mxu0 %v1402
    %1404 = vmatprep.subr.mxu0 0.0
    %v1405 = vand.u32 %v56, 4294901760
    %1406 = vmatpush1.msra.mxu0 %v1405
    %1407 = vmatprep.subr.mxu0 0.0
    %v1408 = vand.u32 %v57, 4294901760
    %1409 = vmatpush1.msra.mxu0 %v1408
    %1410 = vmatprep.subr.mxu0 0.0
    %v1411 = vand.u32 %v58, 4294901760
    %1412 = vmatpush1.msra.mxu0 %v1411
    %1413 = vmatprep.subr.mxu0 0.0
    %v1414 = vand.u32 %v59, 4294901760
    %1415 = vmatpush1.msra.mxu0 %v1414
    %1416 = vmatprep.subr.mxu0 0.0
    %1417 = vmatpush1.msra.mxu0 0.0
    %1418 = vmatprep.subr.mxu0 0.0
    %1419 = vmatpush1.msra.mxu0 0.0
    %1420 = vmatprep.subr.mxu0 0.0
    %1421 = vmatpush1.msra.mxu0 0.0
    %1422 = vmatprep.subr.mxu0 0.0
    %1423 = vmatpush1.msra.mxu0 0.0
    %1424 = vmatprep.subr.mxu0 0.0
    %1425 = vmatpush1.msra.mxu0 0.0
    %1426 = vmatprep.subr.mxu0 0.0
    %1427 = vmatpush1.msra.mxu0 0.0
    %1428 = vmatprep.subr.mxu0 0.0
    %1429 = vmatpush1.msra.mxu0 0.0
    %1430 = vmatprep.subr.mxu0 0.0
    %1431 = vmatpush1.msra.mxu0 0.0
    %1432 = vmatprep.subr.mxu0 0.0
    %1433 = vmatpush1.msra.mxu0 0.0
    %1434 = vmatprep.subr.mxu0 0.0
    %1435 = vmatpush1.msra.mxu0 0.0
    %1436 = vmatprep.subr.mxu0 0.0
    %1437 = vmatpush1.msra.mxu0 0.0
    %1438 = vmatprep.subr.mxu0 0.0
    %1439 = vmatpush1.msra.mxu0 0.0
    %1440 = vmatprep.subr.mxu0 0.0
    %1441 = vmatpush1.msra.mxu0 0.0
    %1442 = vmatprep.subr.mxu0 0.0
    %1443 = vmatpush1.msra.mxu0 0.0
    %1444 = vmatprep.subr.mxu0 0.0
    %1445 = vmatpush1.msra.mxu0 0.0
    %1446 = vmatprep.subr.mxu0 0.0
    %1447 = vmatpush1.msra.mxu0 0.0
    %1448 = vmatprep.subr.mxu0 0.0
    %1449 = vmatpush1.msra.mxu0 0.0
    %1450 = vmatprep.subr.mxu0 0.0
    %1451 = vmatpush1.msra.mxu0 0.0
    %1452 = vmatprep.subr.mxu0 0.0
    %1453 = vmatpush1.msra.mxu0 0.0
    %1454 = vmatprep.subr.mxu0 0.0
    %1455 = vmatpush1.msra.mxu0 0.0
    %1456 = vmatprep.subr.mxu0 0.0
    %1457 = vmatpush1.msra.mxu0 0.0
    %1458 = vmatprep.subr.mxu0 0.0
    %1459 = vmatpush1.msra.mxu0 0.0
    %1460 = vmatprep.subr.mxu0 0.0
    %1461 = vmatpush1.msra.mxu0 0.0
    %1462 = vmatprep.subr.mxu0 0.0
    %1463 = vmatpush1.msra.mxu0 0.0
    %1464 = vmatprep.mubr.f32.mxu0 0.0
    %v1465 = vand.u32 %v302, 4294901760
    %v1466 = vsub.f32 %v302, %v1465
    %v1467 = vand.u32 %v1466, 4294901760
    %1468 = vmatmul.mubr.f32.gmra.mrb[0].mxu0 %v1467
    %v1469 = vpop.f32.mrb[0].mxu0
    %v1470 = vadd.f32 %v1172, %v1469
    %v1471 = vpop.f32.mrb[0].mxu0
    %1472 = vmatprep.mubr.f32.mxu0 0.0
    %v1473 = vand.u32 %v305, 4294901760
    %v1474 = vsub.f32 %v305, %v1473
    %v1475 = vand.u32 %v1474, 4294901760
    %1476 = vmatmul.mubr.f32.gmra.mrb[0].mxu0 %v1475
    %v1477 = vpop.f32.mrb[0].mxu0
    %v1478 = vadd.f32 %v1179, %v1477
    %v1479 = vpop.f32.mrb[0].mxu0
    %1480 = vmatprep.mubr.f32.mxu0 0.0
    %v1481 = vand.u32 %v308, 4294901760
    %v1482 = vsub.f32 %v308, %v1481
    %v1483 = vand.u32 %v1482, 4294901760
    %1484 = vmatmul.mubr.f32.gmra.mrb[0].mxu0 %v1483
    %v1485 = vpop.f32.mrb[0].mxu0
    %v1486 = vadd.f32 %v1186, %v1485
    %v1487 = vpop.f32.mrb[0].mxu0
    %1488 = vmatprep.mubr.f32.mxu0 0.0
    %v1489 = vand.u32 %v311, 4294901760
    %v1490 = vsub.f32 %v311, %v1489
    %v1491 = vand.u32 %v1490, 4294901760
    %1492 = vmatmul.mubr.f32.gmra.mrb[0].mxu0 %v1491
    %v1493 = vpop.f32.mrb[0].mxu0
    %v1494 = vadd.f32 %v1193, %v1493
    %v1495 = vpop.f32.mrb[0].mxu0
    %1496 = vmatprep.mubr.f32.mxu0 0.0
    %v1497 = vand.u32 %v314, 4294901760
    %v1498 = vsub.f32 %v314, %v1497
    %v1499 = vand.u32 %v1498, 4294901760
    %1500 = vmatmul.mubr.f32.gmra.mrb[0].mxu0 %v1499
    %v1501 = vpop.f32.mrb[0].mxu0
    %v1502 = vadd.f32 %v1200, %v1501
    %v1503 = vpop.f32.mrb[0].mxu0
    %1504 = vmatprep.mubr.f32.mxu0 0.0
    %v1505 = vand.u32 %v317, 4294901760
    %v1506 = vsub.f32 %v317, %v1505
    %v1507 = vand.u32 %v1506, 4294901760
    %1508 = vmatmul.mubr.f32.gmra.mrb[0].mxu0 %v1507
    %v1509 = vpop.f32.mrb[0].mxu0
    %v1510 = vadd.f32 %v1207, %v1509
    %v1511 = vpop.f32.mrb[0].mxu0
    %1512 = vmatprep.mubr.f32.mxu0 0.0
    %v1513 = vand.u32 %v320, 4294901760
    %v1514 = vsub.f32 %v320, %v1513
    %v1515 = vand.u32 %v1514, 4294901760
    %1516 = vmatmul.mubr.f32.gmra.mrb[0].mxu0 %v1515
    %v1517 = vpop.f32.mrb[0].mxu0
    %v1518 = vadd.f32 %v1214, %v1517
    %v1519 = vpop.f32.mrb[0].mxu0
    %1520 = vmatprep.mubr.f32.mxu0 0.0
    %v1521 = vand.u32 %v323, 4294901760
    %v1522 = vsub.f32 %v323, %v1521
    %v1523 = vand.u32 %v1522, 4294901760
    %1524 = vmatmul.mubr.f32.gmra.mrb[0].mxu0 %v1523
    %v1525 = vpop.f32.mrb[0].mxu0
    %v1526 = vadd.f32 %v1221, %v1525
    %v1527 = vpop.f32.mrb[0].mxu0
    %1528 = vmatprep.mubr.f32.mxu0 0.0
    %v1529 = vand.u32 %v326, 4294901760
    %v1530 = vsub.f32 %v326, %v1529
    %v1531 = vand.u32 %v1530, 4294901760
    %1532 = vmatmul.mubr.f32.gmra.mrb[0].mxu0 %v1531
    %v1533 = vpop.f32.mrb[0].mxu0
    %v1534 = vadd.f32 %v1228, %v1533
    %v1535 = vpop.f32.mrb[0].mxu0
    %1536 = vmatprep.mubr.f32.mxu0 0.0
    %v1537 = vand.u32 %v329, 4294901760
    %v1538 = vsub.f32 %v329, %v1537
    %v1539 = vand.u32 %v1538, 4294901760
    %1540 = vmatmul.mubr.f32.gmra.mrb[0].mxu0 %v1539
    %v1541 = vpop.f32.mrb[0].mxu0
    %v1542 = vadd.f32 %v1235, %v1541
    %v1543 = vpop.f32.mrb[0].mxu0
    %1544 = vmatprep.mubr.f32.mxu0 0.0
    %v1545 = vand.u32 %v332, 4294901760
    %v1546 = vsub.f32 %v332, %v1545
    %v1547 = vand.u32 %v1546, 4294901760
    %1548 = vmatmul.mubr.f32.gmra.mrb[0].mxu0 %v1547
    %v1549 = vpop.f32.mrb[0].mxu0
    %v1550 = vadd.f32 %v1242, %v1549
    %v1551 = vpop.f32.mrb[0].mxu0
    %1552 = vmatprep.mubr.f32.mxu0 0.0
    %v1553 = vand.u32 %v335, 4294901760
    %v1554 = vsub.f32 %v335, %v1553
    %v1555 = vand.u32 %v1554, 4294901760
    %1556 = vmatmul.mubr.f32.gmra.mrb[0].mxu0 %v1555
    %v1557 = vpop.f32.mrb[0].mxu0
    %v1558 = vadd.f32 %v1249, %v1557
    %v1559 = vpop.f32.mrb[0].mxu0
    %1560 = vmatprep.mubr.f32.mxu0 0.0
    %v1561 = vand.u32 %v338, 4294901760
    %v1562 = vsub.f32 %v338, %v1561
    %v1563 = vand.u32 %v1562, 4294901760
    %1564 = vmatmul.mubr.f32.gmra.mrb[0].mxu0 %v1563
    %v1565 = vpop.f32.mrb[0].mxu0
    %v1566 = vadd.f32 %v1256, %v1565
    %v1567 = vpop.f32.mrb[0].mxu0
    %1568 = vmatprep.mubr.f32.mxu0 0.0
    %v1569 = vand.u32 %v341, 4294901760
    %v1570 = vsub.f32 %v341, %v1569
    %v1571 = vand.u32 %v1570, 4294901760
    %1572 = vmatmul.mubr.f32.gmra.mrb[0].mxu0 %v1571
    %v1573 = vpop.f32.mrb[0].mxu0
    %v1574 = vadd.f32 %v1263, %v1573
    %v1575 = vpop.f32.mrb[0].mxu0
    %1576 = vmatprep.mubr.f32.mxu0 0.0
    %v1577 = vand.u32 %v344, 4294901760
    %v1578 = vsub.f32 %v344, %v1577
    %v1579 = vand.u32 %v1578, 4294901760
    %1580 = vmatmul.mubr.f32.gmra.mrb[0].mxu0 %v1579
    %v1581 = vpop.f32.mrb[0].mxu0
    %v1582 = vadd.f32 %v1270, %v1581
    %v1583 = vpop.f32.mrb[0].mxu0
    %1584 = vmatprep.mubr.f32.mxu0 0.0
    %v1585 = vand.u32 %v347, 4294901760
    %v1586 = vsub.f32 %v347, %v1585
    %v1587 = vand.u32 %v1586, 4294901760
    %1588 = vmatmul.mubr.f32.gmra.mrb[0].mxu0 %v1587
    %v1589 = vpop.f32.mrb[0].mxu0
    %v1590 = vadd.f32 %v1277, %v1589
    %v1591 = vpop.f32.mrb[0].mxu0
    %1592 = vmatprep.mubr.f32.mxu0 0.0
    %v1593 = vand.u32 %v350, 4294901760
    %v1594 = vsub.f32 %v350, %v1593
    %v1595 = vand.u32 %v1594, 4294901760
    %1596 = vmatmul.mubr.f32.gmra.mrb[0].mxu0 %v1595
    %v1597 = vpop.f32.mrb[0].mxu0
    %v1598 = vadd.f32 %v1284, %v1597
    %v1599 = vpop.f32.mrb[0].mxu0
    %1600 = vmatprep.mubr.f32.mxu0 0.0
    %v1601 = vand.u32 %v353, 4294901760
    %v1602 = vsub.f32 %v353, %v1601
    %v1603 = vand.u32 %v1602, 4294901760
    %1604 = vmatmul.mubr.f32.gmra.mrb[0].mxu0 %v1603
    %v1605 = vpop.f32.mrb[0].mxu0
    %v1606 = vadd.f32 %v1291, %v1605
    %v1607 = vpop.f32.mrb[0].mxu0
    %1608 = vmatprep.mubr.f32.mxu0 0.0
    %v1609 = vand.u32 %v356, 4294901760
    %v1610 = vsub.f32 %v356, %v1609
    %v1611 = vand.u32 %v1610, 4294901760
    %1612 = vmatmul.mubr.f32.gmra.mrb[0].mxu0 %v1611
    %v1613 = vpop.f32.mrb[0].mxu0
    %v1614 = vadd.f32 %v1298, %v1613
    %v1615 = vpop.f32.mrb[0].mxu0
    %1616 = vmatprep.mubr.f32.mxu0 0.0
    %v1617 = vand.u32 %v359, 4294901760
    %v1618 = vsub.f32 %v359, %v1617
    %v1619 = vand.u32 %v1618, 4294901760
    %1620 = vmatmul.mubr.f32.gmra.mrb[0].mxu0 %v1619
    %v1621 = vpop.f32.mrb[0].mxu0
    %v1622 = vadd.f32 %v1305, %v1621
    %v1623 = vpop.f32.mrb[0].mxu0
    %1624 = vmatprep.mubr.f32.mxu0 0.0
    %v1625 = vand.u32 %v362, 4294901760
    %v1626 = vsub.f32 %v362, %v1625
    %v1627 = vand.u32 %v1626, 4294901760
    %1628 = vmatmul.mubr.f32.gmra.mrb[0].mxu0 %v1627
    %v1629 = vpop.f32.mrb[0].mxu0
    %v1630 = vadd.f32 %v1312, %v1629
    %v1631 = vpop.f32.mrb[0].mxu0
    %1632 = vmatprep.mubr.f32.mxu0 0.0
    %v1633 = vand.u32 %v365, 4294901760
    %v1634 = vsub.f32 %v365, %v1633
    %v1635 = vand.u32 %v1634, 4294901760
    %1636 = vmatmul.mubr.f32.gmra.mrb[0].mxu0 %v1635
    %v1637 = vpop.f32.mrb[0].mxu0
    %v1638 = vadd.f32 %v1319, %v1637
    %v1639 = vpop.f32.mrb[0].mxu0
    %1640 = vmatprep.mubr.f32.mxu0 0.0
    %v1641 = vand.u32 %v368, 4294901760
    %v1642 = vsub.f32 %v368, %v1641
    %v1643 = vand.u32 %v1642, 4294901760
    %1644 = vmatmul.mubr.f32.gmra.mrb[0].mxu0 %v1643
    %v1645 = vpop.f32.mrb[0].mxu0
    %v1646 = vadd.f32 %v1326, %v1645
    %v1647 = vpop.f32.mrb[0].mxu0
    %1648 = vmatprep.mubr.f32.mxu0 0.0
    %v1649 = vand.u32 %v371, 4294901760
    %v1650 = vsub.f32 %v371, %v1649
    %v1651 = vand.u32 %v1650, 4294901760
    %1652 = vmatmul.mubr.f32.gmra.mrb[0].mxu0 %v1651
    %v1653 = vpop.f32.mrb[0].mxu0
    %v1654 = vadd.f32 %v1333, %v1653
    %v1655 = vpop.f32.mrb[0].mxu0
    %1656 = vmatprep.mubr.f32.mxu0 0.0
    %v1657 = vand.u32 %v374, 4294901760
    %v1658 = vsub.f32 %v374, %v1657
    %v1659 = vand.u32 %v1658, 4294901760
    %1660 = vmatmul.mubr.f32.gmra.mrb[0].mxu0 %v1659
    %v1661 = vpop.f32.mrb[0].mxu0
    %v1662 = vadd.f32 %v1340, %v1661
    %v1663 = vpop.f32.mrb[0].mxu0
    %1664 = vmatprep.mubr.f32.mxu0 0.0
    %v1665 = vand.u32 %v377, 4294901760
    %v1666 = vsub.f32 %v377, %v1665
    %v1667 = vand.u32 %v1666, 4294901760
    %1668 = vmatmul.mubr.f32.gmra.mrb[0].mxu0 %v1667
    %v1669 = vpop.f32.mrb[0].mxu0
    %v1670 = vadd.f32 %v1347, %v1669
    %v1671 = vpop.f32.mrb[0].mxu0
    %1672 = vmatprep.mubr.f32.mxu0 0.0
    %v1673 = vand.u32 %v380, 4294901760
    %v1674 = vsub.f32 %v380, %v1673
    %v1675 = vand.u32 %v1674, 4294901760
    %1676 = vmatmul.mubr.f32.gmra.mrb[0].mxu0 %v1675
    %v1677 = vpop.f32.mrb[0].mxu0
    %v1678 = vadd.f32 %v1354, %v1677
    %v1679 = vpop.f32.mrb[0].mxu0
    %1680 = vmatprep.mubr.f32.mxu0 0.0
    %v1681 = vand.u32 %v383, 4294901760
    %v1682 = vsub.f32 %v383, %v1681
    %v1683 = vand.u32 %v1682, 4294901760
    %1684 = vmatmul.mubr.f32.gmra.mrb[0].mxu0 %v1683
    %v1685 = vpop.f32.mrb[0].mxu0
    %v1686 = vadd.f32 %v1361, %v1685
    %v1687 = vpop.f32.mrb[0].mxu0
    %1688 = vmatprep.mubr.f32.mxu0 0.0
    %v1689 = vand.u32 %v386, 4294901760
    %v1690 = vsub.f32 %v386, %v1689
    %v1691 = vand.u32 %v1690, 4294901760
    %1692 = vmatmul.mubr.f32.gmra.mrb[0].mxu0 %v1691
    %v1693 = vpop.f32.mrb[0].mxu0
    %v1694 = vadd.f32 %v1368, %v1693
    %v1695 = vpop.f32.mrb[0].mxu0
    %1696 = vmatprep.mubr.f32.mxu0 0.0
    %v1697 = vand.u32 %v389, 4294901760
    %v1698 = vsub.f32 %v389, %v1697
    %v1699 = vand.u32 %v1698, 4294901760
    %1700 = vmatmul.mubr.f32.gmra.mrb[0].mxu0 %v1699
    %v1701 = vpop.f32.mrb[0].mxu0
    %v1702 = vadd.f32 %v1375, %v1701
    %v1703 = vpop.f32.mrb[0].mxu0
    %1704 = vmatprep.mubr.f32.mxu0 0.0
    %v1705 = vand.u32 %v392, 4294901760
    %v1706 = vsub.f32 %v392, %v1705
    %v1707 = vand.u32 %v1706, 4294901760
    %1708 = vmatmul.mubr.f32.gmra.mrb[0].mxu0 %v1707
    %v1709 = vpop.f32.mrb[0].mxu0
    %v1710 = vadd.f32 %v1382, %v1709
    %v1711 = vpop.f32.mrb[0].mxu0
    %1712 = vmatprep.mubr.f32.mxu0 0.0
    %v1713 = vand.u32 %v395, 4294901760
    %v1714 = vsub.f32 %v395, %v1713
    %v1715 = vand.u32 %v1714, 4294901760
    %1716 = vmatmul.mubr.f32.gmra.mrb[0].mxu0 %v1715
    %v1717 = vpop.f32.mrb[0].mxu0
    %v1718 = vadd.f32 %v1389, %v1717
    %v1719 = vpop.f32.mrb[0].mxu0
    %1720 = vdwg.mxu0
    %1721 = vmatprep.subr.mxu0 0.0
    %v1722 = vand.u32 %v52, 4294901760
    %v1723 = vsub.f32 %v52, %v1722
    %v1724 = vand.u32 %v1723, 4294901760
    %1725 = vmatpush1.msra.mxu0 %v1724
    %1726 = vmatprep.subr.mxu0 0.0
    %v1727 = vand.u32 %v53, 4294901760
    %v1728 = vsub.f32 %v53, %v1727
    %v1729 = vand.u32 %v1728, 4294901760
    %1730 = vmatpush1.msra.mxu0 %v1729
    %1731 = vmatprep.subr.mxu0 0.0
    %v1732 = vand.u32 %v54, 4294901760
    %v1733 = vsub.f32 %v54, %v1732
    %v1734 = vand.u32 %v1733, 4294901760
    %1735 = vmatpush1.msra.mxu0 %v1734
    %1736 = vmatprep.subr.mxu0 0.0
    %v1737 = vand.u32 %v55, 4294901760
    %v1738 = vsub.f32 %v55, %v1737
    %v1739 = vand.u32 %v1738, 4294901760
    %1740 = vmatpush1.msra.mxu0 %v1739
    %1741 = vmatprep.subr.mxu0 0.0
    %v1742 = vand.u32 %v56, 4294901760
    %v1743 = vsub.f32 %v56, %v1742
    %v1744 = vand.u32 %v1743, 4294901760
    %1745 = vmatpush1.msra.mxu0 %v1744
    %1746 = vmatprep.subr.mxu0 0.0
    %v1747 = vand.u32 %v57, 4294901760
    %v1748 = vsub.f32 %v57, %v1747
    %v1749 = vand.u32 %v1748, 4294901760
    %1750 = vmatpush1.msra.mxu0 %v1749
    %1751 = vmatprep.subr.mxu0 0.0
    %v1752 = vand.u32 %v58, 4294901760
    %v1753 = vsub.f32 %v58, %v1752
    %v1754 = vand.u32 %v1753, 4294901760
    %1755 = vmatpush1.msra.mxu0 %v1754
    %1756 = vmatprep.subr.mxu0 0.0
    %v1757 = vand.u32 %v59, 4294901760
    %v1758 = vsub.f32 %v59, %v1757
    %v1759 = vand.u32 %v1758, 4294901760
    %1760 = vmatpush1.msra.mxu0 %v1759
    %1761 = vmatprep.subr.mxu0 0.0
    %1762 = vmatpush1.msra.mxu0 0.0
    %1763 = vmatprep.subr.mxu0 0.0
    %1764 = vmatpush1.msra.mxu0 0.0
    %1765 = vmatprep.subr.mxu0 0.0
    %1766 = vmatpush1.msra.mxu0 0.0
    %1767 = vmatprep.subr.mxu0 0.0
    %1768 = vmatpush1.msra.mxu0 0.0
    %1769 = vmatprep.subr.mxu0 0.0
    %1770 = vmatpush1.msra.mxu0 0.0
    %1771 = vmatprep.subr.mxu0 0.0
    %1772 = vmatpush1.msra.mxu0 0.0
    %1773 = vmatprep.subr.mxu0 0.0
    %1774 = vmatpush1.msra.mxu0 0.0
    %1775 = vmatprep.subr.mxu0 0.0
    %1776 = vmatpush1.msra.mxu0 0.0
    %1777 = vmatprep.subr.mxu0 0.0
    %1778 = vmatpush1.msra.mxu0 0.0
    %1779 = vmatprep.subr.mxu0 0.0
    %1780 = vmatpush1.msra.mxu0 0.0
    %1781 = vmatprep.subr.mxu0 0.0
    %1782 = vmatpush1.msra.mxu0 0.0
    %1783 = vmatprep.subr.mxu0 0.0
    %1784 = vmatpush1.msra.mxu0 0.0
    %1785 = vmatprep.subr.mxu0 0.0
    %1786 = vmatpush1.msra.mxu0 0.0
    %1787 = vmatprep.subr.mxu0 0.0
    %1788 = vmatpush1.msra.mxu0 0.0
    %1789 = vmatprep.subr.mxu0 0.0
    %1790 = vmatpush1.msra.mxu0 0.0
    %1791 = vmatprep.subr.mxu0 0.0
    %1792 = vmatpush1.msra.mxu0 0.0
    %1793 = vmatprep.subr.mxu0 0.0
    %1794 = vmatpush1.msra.mxu0 0.0
    %1795 = vmatprep.subr.mxu0 0.0
    %1796 = vmatpush1.msra.mxu0 0.0
    %1797 = vmatprep.subr.mxu0 0.0
    %1798 = vmatpush1.msra.mxu0 0.0
    %1799 = vmatprep.subr.mxu0 0.0
    %1800 = vmatpush1.msra.mxu0 0.0
    %1801 = vmatprep.subr.mxu0 0.0
    %1802 = vmatpush1.msra.mxu0 0.0
    %1803 = vmatprep.subr.mxu0 0.0
    %1804 = vmatpush1.msra.mxu0 0.0
    %1805 = vmatprep.subr.mxu0 0.0
    %1806 = vmatpush1.msra.mxu0 0.0
    %1807 = vmatprep.subr.mxu0 0.0
    %1808 = vmatpush1.msra.mxu0 0.0
    %1809 = vmatprep.mubr.f32.mxu0 0.0
    %v1810 = vand.u32 %v302, 4294901760
    %1811 = vmatmul.mubr.f32.gmra.mrb[0].mxu0 %v1810
    %v1812 = vpop.f32.mrb[0].mxu0
    %v1813 = vadd.f32 %v1470, %v1812
    %v1814 = vpop.f32.mrb[0].mxu0
    %1815 = vmatprep.mubr.f32.mxu0 0.0
    %v1816 = vand.u32 %v305, 4294901760
    %1817 = vmatmul.mubr.f32.gmra.mrb[0].mxu0 %v1816
    %v1818 = vpop.f32.mrb[0].mxu0
    %v1819 = vadd.f32 %v1478, %v1818
    %v1820 = vpop.f32.mrb[0].mxu0
    %1821 = vmatprep.mubr.f32.mxu0 0.0
    %v1822 = vand.u32 %v308, 4294901760
    %1823 = vmatmul.mubr.f32.gmra.mrb[0].mxu0 %v1822
    %v1824 = vpop.f32.mrb[0].mxu0
    %v1825 = vadd.f32 %v1486, %v1824
    %v1826 = vpop.f32.mrb[0].mxu0
    %1827 = vmatprep.mubr.f32.mxu0 0.0
    %v1828 = vand.u32 %v311, 4294901760
    %1829 = vmatmul.mubr.f32.gmra.mrb[0].mxu0 %v1828
    %v1830 = vpop.f32.mrb[0].mxu0
    %v1831 = vadd.f32 %v1494, %v1830
    %v1832 = vpop.f32.mrb[0].mxu0
    %1833 = vmatprep.mubr.f32.mxu0 0.0
    %v1834 = vand.u32 %v314, 4294901760
    %1835 = vmatmul.mubr.f32.gmra.mrb[0].mxu0 %v1834
    %v1836 = vpop.f32.mrb[0].mxu0
    %v1837 = vadd.f32 %v1502, %v1836
    %v1838 = vpop.f32.mrb[0].mxu0
    %1839 = vmatprep.mubr.f32.mxu0 0.0
    %v1840 = vand.u32 %v317, 4294901760
    %1841 = vmatmul.mubr.f32.gmra.mrb[0].mxu0 %v1840
    %v1842 = vpop.f32.mrb[0].mxu0
    %v1843 = vadd.f32 %v1510, %v1842
    %v1844 = vpop.f32.mrb[0].mxu0
    %1845 = vmatprep.mubr.f32.mxu0 0.0
    %v1846 = vand.u32 %v320, 4294901760
    %1847 = vmatmul.mubr.f32.gmra.mrb[0].mxu0 %v1846
    %v1848 = vpop.f32.mrb[0].mxu0
    %v1849 = vadd.f32 %v1518, %v1848
    %v1850 = vpop.f32.mrb[0].mxu0
    %1851 = vmatprep.mubr.f32.mxu0 0.0
    %v1852 = vand.u32 %v323, 4294901760
    %1853 = vmatmul.mubr.f32.gmra.mrb[0].mxu0 %v1852
    %v1854 = vpop.f32.mrb[0].mxu0
    %v1855 = vadd.f32 %v1526, %v1854
    %v1856 = vpop.f32.mrb[0].mxu0
    %1857 = vmatprep.mubr.f32.mxu0 0.0
    %v1858 = vand.u32 %v326, 4294901760
    %1859 = vmatmul.mubr.f32.gmra.mrb[0].mxu0 %v1858
    %v1860 = vpop.f32.mrb[0].mxu0
    %v1861 = vadd.f32 %v1534, %v1860
    %v1862 = vpop.f32.mrb[0].mxu0
    %1863 = vmatprep.mubr.f32.mxu0 0.0
    %v1864 = vand.u32 %v329, 4294901760
    %1865 = vmatmul.mubr.f32.gmra.mrb[0].mxu0 %v1864
    %v1866 = vpop.f32.mrb[0].mxu0
    %v1867 = vadd.f32 %v1542, %v1866
    %v1868 = vpop.f32.mrb[0].mxu0
    %1869 = vmatprep.mubr.f32.mxu0 0.0
    %v1870 = vand.u32 %v332, 4294901760
    %1871 = vmatmul.mubr.f32.gmra.mrb[0].mxu0 %v1870
    %v1872 = vpop.f32.mrb[0].mxu0
    %v1873 = vadd.f32 %v1550, %v1872
    %v1874 = vpop.f32.mrb[0].mxu0
    %1875 = vmatprep.mubr.f32.mxu0 0.0
    %v1876 = vand.u32 %v335, 4294901760
    %1877 = vmatmul.mubr.f32.gmra.mrb[0].mxu0 %v1876
    %v1878 = vpop.f32.mrb[0].mxu0
    %v1879 = vadd.f32 %v1558, %v1878
    %v1880 = vpop.f32.mrb[0].mxu0
    %1881 = vmatprep.mubr.f32.mxu0 0.0
    %v1882 = vand.u32 %v338, 4294901760
    %1883 = vmatmul.mubr.f32.gmra.mrb[0].mxu0 %v1882
    %v1884 = vpop.f32.mrb[0].mxu0
    %v1885 = vadd.f32 %v1566, %v1884
    %v1886 = vpop.f32.mrb[0].mxu0
    %1887 = vmatprep.mubr.f32.mxu0 0.0
    %v1888 = vand.u32 %v341, 4294901760
    %1889 = vmatmul.mubr.f32.gmra.mrb[0].mxu0 %v1888
    %v1890 = vpop.f32.mrb[0].mxu0
    %v1891 = vadd.f32 %v1574, %v1890
    %v1892 = vpop.f32.mrb[0].mxu0
    %1893 = vmatprep.mubr.f32.mxu0 0.0
    %v1894 = vand.u32 %v344, 4294901760
    %1895 = vmatmul.mubr.f32.gmra.mrb[0].mxu0 %v1894
    %v1896 = vpop.f32.mrb[0].mxu0
    %v1897 = vadd.f32 %v1582, %v1896
    %v1898 = vpop.f32.mrb[0].mxu0
    %1899 = vmatprep.mubr.f32.mxu0 0.0
    %v1900 = vand.u32 %v347, 4294901760
    %1901 = vmatmul.mubr.f32.gmra.mrb[0].mxu0 %v1900
    %v1902 = vpop.f32.mrb[0].mxu0
    %v1903 = vadd.f32 %v1590, %v1902
    %v1904 = vpop.f32.mrb[0].mxu0
    %1905 = vmatprep.mubr.f32.mxu0 0.0
    %v1906 = vand.u32 %v350, 4294901760
    %1907 = vmatmul.mubr.f32.gmra.mrb[0].mxu0 %v1906
    %v1908 = vpop.f32.mrb[0].mxu0
    %v1909 = vadd.f32 %v1598, %v1908
    %v1910 = vpop.f32.mrb[0].mxu0
    %1911 = vmatprep.mubr.f32.mxu0 0.0
    %v1912 = vand.u32 %v353, 4294901760
    %1913 = vmatmul.mubr.f32.gmra.mrb[0].mxu0 %v1912
    %v1914 = vpop.f32.mrb[0].mxu0
    %v1915 = vadd.f32 %v1606, %v1914
    %v1916 = vpop.f32.mrb[0].mxu0
    %1917 = vmatprep.mubr.f32.mxu0 0.0
    %v1918 = vand.u32 %v356, 4294901760
    %1919 = vmatmul.mubr.f32.gmra.mrb[0].mxu0 %v1918
    %v1920 = vpop.f32.mrb[0].mxu0
    %v1921 = vadd.f32 %v1614, %v1920
    %v1922 = vpop.f32.mrb[0].mxu0
    %1923 = vmatprep.mubr.f32.mxu0 0.0
    %v1924 = vand.u32 %v359, 4294901760
    %1925 = vmatmul.mubr.f32.gmra.mrb[0].mxu0 %v1924
    %v1926 = vpop.f32.mrb[0].mxu0
    %v1927 = vadd.f32 %v1622, %v1926
    %v1928 = vpop.f32.mrb[0].mxu0
    %1929 = vmatprep.mubr.f32.mxu0 0.0
    %v1930 = vand.u32 %v362, 4294901760
    %1931 = vmatmul.mubr.f32.gmra.mrb[0].mxu0 %v1930
    %v1932 = vpop.f32.mrb[0].mxu0
    %v1933 = vadd.f32 %v1630, %v1932
    %v1934 = vpop.f32.mrb[0].mxu0
    %1935 = vmatprep.mubr.f32.mxu0 0.0
    %v1936 = vand.u32 %v365, 4294901760
    %1937 = vmatmul.mubr.f32.gmra.mrb[0].mxu0 %v1936
    %v1938 = vpop.f32.mrb[0].mxu0
    %v1939 = vadd.f32 %v1638, %v1938
    %v1940 = vpop.f32.mrb[0].mxu0
    %1941 = vmatprep.mubr.f32.mxu0 0.0
    %v1942 = vand.u32 %v368, 4294901760
    %1943 = vmatmul.mubr.f32.gmra.mrb[0].mxu0 %v1942
    %v1944 = vpop.f32.mrb[0].mxu0
    %v1945 = vadd.f32 %v1646, %v1944
    %v1946 = vpop.f32.mrb[0].mxu0
    %1947 = vmatprep.mubr.f32.mxu0 0.0
    %v1948 = vand.u32 %v371, 4294901760
    %1949 = vmatmul.mubr.f32.gmra.mrb[0].mxu0 %v1948
    %v1950 = vpop.f32.mrb[0].mxu0
    %v1951 = vadd.f32 %v1654, %v1950
    %v1952 = vpop.f32.mrb[0].mxu0
    %1953 = vmatprep.mubr.f32.mxu0 0.0
    %v1954 = vand.u32 %v374, 4294901760
    %1955 = vmatmul.mubr.f32.gmra.mrb[0].mxu0 %v1954
    %v1956 = vpop.f32.mrb[0].mxu0
    %v1957 = vadd.f32 %v1662, %v1956
    %v1958 = vpop.f32.mrb[0].mxu0
    %1959 = vmatprep.mubr.f32.mxu0 0.0
    %v1960 = vand.u32 %v377, 4294901760
    %1961 = vmatmul.mubr.f32.gmra.mrb[0].mxu0 %v1960
    %v1962 = vpop.f32.mrb[0].mxu0
    %v1963 = vadd.f32 %v1670, %v1962
    %v1964 = vpop.f32.mrb[0].mxu0
    %1965 = vmatprep.mubr.f32.mxu0 0.0
    %v1966 = vand.u32 %v380, 4294901760
    %1967 = vmatmul.mubr.f32.gmra.mrb[0].mxu0 %v1966
    %v1968 = vpop.f32.mrb[0].mxu0
    %v1969 = vadd.f32 %v1678, %v1968
    %v1970 = vpop.f32.mrb[0].mxu0
    %1971 = vmatprep.mubr.f32.mxu0 0.0
    %v1972 = vand.u32 %v383, 4294901760
    %1973 = vmatmul.mubr.f32.gmra.mrb[0].mxu0 %v1972
    %v1974 = vpop.f32.mrb[0].mxu0
    %v1975 = vadd.f32 %v1686, %v1974
    %v1976 = vpop.f32.mrb[0].mxu0
    %1977 = vmatprep.mubr.f32.mxu0 0.0
    %v1978 = vand.u32 %v386, 4294901760
    %1979 = vmatmul.mubr.f32.gmra.mrb[0].mxu0 %v1978
    %v1980 = vpop.f32.mrb[0].mxu0
    %v1981 = vadd.f32 %v1694, %v1980
    %v1982 = vpop.f32.mrb[0].mxu0
    %1983 = vmatprep.mubr.f32.mxu0 0.0
    %v1984 = vand.u32 %v389, 4294901760
    %1985 = vmatmul.mubr.f32.gmra.mrb[0].mxu0 %v1984
    %v1986 = vpop.f32.mrb[0].mxu0
    %v1987 = vadd.f32 %v1702, %v1986
    %v1988 = vpop.f32.mrb[0].mxu0
    %1989 = vmatprep.mubr.f32.mxu0 0.0
    %v1990 = vand.u32 %v392, 4294901760
    %1991 = vmatmul.mubr.f32.gmra.mrb[0].mxu0 %v1990
    %v1992 = vpop.f32.mrb[0].mxu0
    %v1993 = vadd.f32 %v1710, %v1992
    %v1994 = vpop.f32.mrb[0].mxu0
    %1995 = vmatprep.mubr.f32.mxu0 0.0
    %v1996 = vand.u32 %v395, 4294901760
    %1997 = vmatmul.mubr.f32.gmra.mrb[0].mxu0 %v1996
    %v1998 = vpop.f32.mrb[0].mxu0
    %v1999 = vadd.f32 %v1718, %v1998
    %v2000 = vpop.f32.mrb[0].mxu0
    %2001 = vdwg.mxu0
    %2002 = vmatprep.subr.mxu0 0.0
    %v2003 = vand.u32 %v52, 4294901760
    %2004 = vmatpush1.msra.mxu0 %v2003
    %2005 = vmatprep.subr.mxu0 0.0
    %v2006 = vand.u32 %v53, 4294901760
    %2007 = vmatpush1.msra.mxu0 %v2006
    %2008 = vmatprep.subr.mxu0 0.0
    %v2009 = vand.u32 %v54, 4294901760
    %2010 = vmatpush1.msra.mxu0 %v2009
    %2011 = vmatprep.subr.mxu0 0.0
    %v2012 = vand.u32 %v55, 4294901760
    %2013 = vmatpush1.msra.mxu0 %v2012
    %2014 = vmatprep.subr.mxu0 0.0
    %v2015 = vand.u32 %v56, 4294901760
    %2016 = vmatpush1.msra.mxu0 %v2015
    %2017 = vmatprep.subr.mxu0 0.0
    %v2018 = vand.u32 %v57, 4294901760
    %2019 = vmatpush1.msra.mxu0 %v2018
    %2020 = vmatprep.subr.mxu0 0.0
    %v2021 = vand.u32 %v58, 4294901760
    %2022 = vmatpush1.msra.mxu0 %v2021
    %2023 = vmatprep.subr.mxu0 0.0
    %v2024 = vand.u32 %v59, 4294901760
    %2025 = vmatpush1.msra.mxu0 %v2024
    %2026 = vmatprep.subr.mxu0 0.0
    %2027 = vmatpush1.msra.mxu0 0.0
    %2028 = vmatprep.subr.mxu0 0.0
    %2029 = vmatpush1.msra.mxu0 0.0
    %2030 = vmatprep.subr.mxu0 0.0
    %2031 = vmatpush1.msra.mxu0 0.0
    %2032 = vmatprep.subr.mxu0 0.0
    %2033 = vmatpush1.msra.mxu0 0.0
    %2034 = vmatprep.subr.mxu0 0.0
    %2035 = vmatpush1.msra.mxu0 0.0
    %2036 = vmatprep.subr.mxu0 0.0
    %2037 = vmatpush1.msra.mxu0 0.0
    %2038 = vmatprep.subr.mxu0 0.0
    %2039 = vmatpush1.msra.mxu0 0.0
    %2040 = vmatprep.subr.mxu0 0.0
    %2041 = vmatpush1.msra.mxu0 0.0
    %2042 = vmatprep.subr.mxu0 0.0
    %2043 = vmatpush1.msra.mxu0 0.0
    %2044 = vmatprep.subr.mxu0 0.0
    %2045 = vmatpush1.msra.mxu0 0.0
    %2046 = vmatprep.subr.mxu0 0.0
    %2047 = vmatpush1.msra.mxu0 0.0
    %2048 = vmatprep.subr.mxu0 0.0
    %2049 = vmatpush1.msra.mxu0 0.0
    %2050 = vmatprep.subr.mxu0 0.0
    %2051 = vmatpush1.msra.mxu0 0.0
    %2052 = vmatprep.subr.mxu0 0.0
    %2053 = vmatpush1.msra.mxu0 0.0
    %2054 = vmatprep.subr.mxu0 0.0
    %2055 = vmatpush1.msra.mxu0 0.0
    %2056 = vmatprep.subr.mxu0 0.0
    %2057 = vmatpush1.msra.mxu0 0.0
    %2058 = vmatprep.subr.mxu0 0.0
    %2059 = vmatpush1.msra.mxu0 0.0
    %2060 = vmatprep.subr.mxu0 0.0
    %2061 = vmatpush1.msra.mxu0 0.0
    %2062 = vmatprep.subr.mxu0 0.0
    %2063 = vmatpush1.msra.mxu0 0.0
    %2064 = vmatprep.subr.mxu0 0.0
    %2065 = vmatpush1.msra.mxu0 0.0
    %2066 = vmatprep.subr.mxu0 0.0
    %2067 = vmatpush1.msra.mxu0 0.0
    %2068 = vmatprep.subr.mxu0 0.0
    %2069 = vmatpush1.msra.mxu0 0.0
    %2070 = vmatprep.subr.mxu0 0.0
    %2071 = vmatpush1.msra.mxu0 0.0
    %2072 = vmatprep.subr.mxu0 0.0
    %2073 = vmatpush1.msra.mxu0 0.0
    %2074 = vmatprep.mubr.f32.mxu0 0.0
    %v2075 = vand.u32 %v302, 4294901760
    %2076 = vmatmul.mubr.f32.gmra.mrb[0].mxu0 %v2075
    %v2077 = vpop.f32.mrb[0].mxu0
    %v2078 = vadd.f32 %v1813, %v2077
    %v2079 = vpop.f32.mrb[0].mxu0
    %2080 = vmatprep.mubr.f32.mxu0 0.0
    %v2081 = vand.u32 %v305, 4294901760
    %2082 = vmatmul.mubr.f32.gmra.mrb[0].mxu0 %v2081
    %v2083 = vpop.f32.mrb[0].mxu0
    %v2084 = vadd.f32 %v1819, %v2083
    %v2085 = vpop.f32.mrb[0].mxu0
    %2086 = vmatprep.mubr.f32.mxu0 0.0
    %v2087 = vand.u32 %v308, 4294901760
    %2088 = vmatmul.mubr.f32.gmra.mrb[0].mxu0 %v2087
    %v2089 = vpop.f32.mrb[0].mxu0
    %v2090 = vadd.f32 %v1825, %v2089
    %v2091 = vpop.f32.mrb[0].mxu0
    %2092 = vmatprep.mubr.f32.mxu0 0.0
    %v2093 = vand.u32 %v311, 4294901760
    %2094 = vmatmul.mubr.f32.gmra.mrb[0].mxu0 %v2093
    %v2095 = vpop.f32.mrb[0].mxu0
    %v2096 = vadd.f32 %v1831, %v2095
    %v2097 = vpop.f32.mrb[0].mxu0
    %2098 = vmatprep.mubr.f32.mxu0 0.0
    %v2099 = vand.u32 %v314, 4294901760
    %2100 = vmatmul.mubr.f32.gmra.mrb[0].mxu0 %v2099
    %v2101 = vpop.f32.mrb[0].mxu0
    %v2102 = vadd.f32 %v1837, %v2101
    %v2103 = vpop.f32.mrb[0].mxu0
    %2104 = vmatprep.mubr.f32.mxu0 0.0
    %v2105 = vand.u32 %v317, 4294901760
    %2106 = vmatmul.mubr.f32.gmra.mrb[0].mxu0 %v2105
    %v2107 = vpop.f32.mrb[0].mxu0
    %v2108 = vadd.f32 %v1843, %v2107
    %v2109 = vpop.f32.mrb[0].mxu0
    %2110 = vmatprep.mubr.f32.mxu0 0.0
    %v2111 = vand.u32 %v320, 4294901760
    %2112 = vmatmul.mubr.f32.gmra.mrb[0].mxu0 %v2111
    %v2113 = vpop.f32.mrb[0].mxu0
    %v2114 = vadd.f32 %v1849, %v2113
    %v2115 = vpop.f32.mrb[0].mxu0
    %2116 = vmatprep.mubr.f32.mxu0 0.0
    %v2117 = vand.u32 %v323, 4294901760
    %2118 = vmatmul.mubr.f32.gmra.mrb[0].mxu0 %v2117
    %v2119 = vpop.f32.mrb[0].mxu0
    %v2120 = vadd.f32 %v1855, %v2119
    %v2121 = vpop.f32.mrb[0].mxu0
    %2122 = vmatprep.mubr.f32.mxu0 0.0
    %v2123 = vand.u32 %v326, 4294901760
    %2124 = vmatmul.mubr.f32.gmra.mrb[0].mxu0 %v2123
    %v2125 = vpop.f32.mrb[0].mxu0
    %v2126 = vadd.f32 %v1861, %v2125
    %v2127 = vpop.f32.mrb[0].mxu0
    %2128 = vmatprep.mubr.f32.mxu0 0.0
    %v2129 = vand.u32 %v329, 4294901760
    %2130 = vmatmul.mubr.f32.gmra.mrb[0].mxu0 %v2129
    %v2131 = vpop.f32.mrb[0].mxu0
    %v2132 = vadd.f32 %v1867, %v2131
    %v2133 = vpop.f32.mrb[0].mxu0
    %2134 = vmatprep.mubr.f32.mxu0 0.0
    %v2135 = vand.u32 %v332, 4294901760
    %2136 = vmatmul.mubr.f32.gmra.mrb[0].mxu0 %v2135
    %v2137 = vpop.f32.mrb[0].mxu0
    %v2138 = vadd.f32 %v1873, %v2137
    %v2139 = vpop.f32.mrb[0].mxu0
    %2140 = vmatprep.mubr.f32.mxu0 0.0
    %v2141 = vand.u32 %v335, 4294901760
    %2142 = vmatmul.mubr.f32.gmra.mrb[0].mxu0 %v2141
    %v2143 = vpop.f32.mrb[0].mxu0
    %v2144 = vadd.f32 %v1879, %v2143
    %v2145 = vpop.f32.mrb[0].mxu0
    %2146 = vmatprep.mubr.f32.mxu0 0.0
    %v2147 = vand.u32 %v338, 4294901760
    %2148 = vmatmul.mubr.f32.gmra.mrb[0].mxu0 %v2147
    %v2149 = vpop.f32.mrb[0].mxu0
    %v2150 = vadd.f32 %v1885, %v2149
    %v2151 = vpop.f32.mrb[0].mxu0
    %2152 = vmatprep.mubr.f32.mxu0 0.0
    %v2153 = vand.u32 %v341, 4294901760
    %2154 = vmatmul.mubr.f32.gmra.mrb[0].mxu0 %v2153
    %v2155 = vpop.f32.mrb[0].mxu0
    %v2156 = vadd.f32 %v1891, %v2155
    %v2157 = vpop.f32.mrb[0].mxu0
    %2158 = vmatprep.mubr.f32.mxu0 0.0
    %v2159 = vand.u32 %v344, 4294901760
    %2160 = vmatmul.mubr.f32.gmra.mrb[0].mxu0 %v2159
    %v2161 = vpop.f32.mrb[0].mxu0
    %v2162 = vadd.f32 %v1897, %v2161
    %v2163 = vpop.f32.mrb[0].mxu0
    %2164 = vmatprep.mubr.f32.mxu0 0.0
    %v2165 = vand.u32 %v347, 4294901760
    %2166 = vmatmul.mubr.f32.gmra.mrb[0].mxu0 %v2165
    %v2167 = vpop.f32.mrb[0].mxu0
    %v2168 = vadd.f32 %v1903, %v2167
    %v2169 = vpop.f32.mrb[0].mxu0
    %2170 = vmatprep.mubr.f32.mxu0 0.0
    %v2171 = vand.u32 %v350, 4294901760
    %2172 = vmatmul.mubr.f32.gmra.mrb[0].mxu0 %v2171
    %v2173 = vpop.f32.mrb[0].mxu0
    %v2174 = vadd.f32 %v1909, %v2173
    %v2175 = vpop.f32.mrb[0].mxu0
    %2176 = vmatprep.mubr.f32.mxu0 0.0
    %v2177 = vand.u32 %v353, 4294901760
    %2178 = vmatmul.mubr.f32.gmra.mrb[0].mxu0 %v2177
    %v2179 = vpop.f32.mrb[0].mxu0
    %v2180 = vadd.f32 %v1915, %v2179
    %v2181 = vpop.f32.mrb[0].mxu0
    %2182 = vmatprep.mubr.f32.mxu0 0.0
    %v2183 = vand.u32 %v356, 4294901760
    %2184 = vmatmul.mubr.f32.gmra.mrb[0].mxu0 %v2183
    %v2185 = vpop.f32.mrb[0].mxu0
    %v2186 = vadd.f32 %v1921, %v2185
    %v2187 = vpop.f32.mrb[0].mxu0
    %2188 = vmatprep.mubr.f32.mxu0 0.0
    %v2189 = vand.u32 %v359, 4294901760
    %2190 = vmatmul.mubr.f32.gmra.mrb[0].mxu0 %v2189
    %v2191 = vpop.f32.mrb[0].mxu0
    %v2192 = vadd.f32 %v1927, %v2191
    %v2193 = vpop.f32.mrb[0].mxu0
    %2194 = vmatprep.mubr.f32.mxu0 0.0
    %v2195 = vand.u32 %v362, 4294901760
    %2196 = vmatmul.mubr.f32.gmra.mrb[0].mxu0 %v2195
    %v2197 = vpop.f32.mrb[0].mxu0
    %v2198 = vadd.f32 %v1933, %v2197
    %v2199 = vpop.f32.mrb[0].mxu0
    %2200 = vmatprep.mubr.f32.mxu0 0.0
    %v2201 = vand.u32 %v365, 4294901760
    %2202 = vmatmul.mubr.f32.gmra.mrb[0].mxu0 %v2201
    %v2203 = vpop.f32.mrb[0].mxu0
    %v2204 = vadd.f32 %v1939, %v2203
    %v2205 = vpop.f32.mrb[0].mxu0
    %2206 = vmatprep.mubr.f32.mxu0 0.0
    %v2207 = vand.u32 %v368, 4294901760
    %2208 = vmatmul.mubr.f32.gmra.mrb[0].mxu0 %v2207
    %v2209 = vpop.f32.mrb[0].mxu0
    %v2210 = vadd.f32 %v1945, %v2209
    %v2211 = vpop.f32.mrb[0].mxu0
    %2212 = vmatprep.mubr.f32.mxu0 0.0
    %v2213 = vand.u32 %v371, 4294901760
    %2214 = vmatmul.mubr.f32.gmra.mrb[0].mxu0 %v2213
    %v2215 = vpop.f32.mrb[0].mxu0
    %v2216 = vadd.f32 %v1951, %v2215
    %v2217 = vpop.f32.mrb[0].mxu0
    %2218 = vmatprep.mubr.f32.mxu0 0.0
    %v2219 = vand.u32 %v374, 4294901760
    %2220 = vmatmul.mubr.f32.gmra.mrb[0].mxu0 %v2219
    %v2221 = vpop.f32.mrb[0].mxu0
    %v2222 = vadd.f32 %v1957, %v2221
    %v2223 = vpop.f32.mrb[0].mxu0
    %2224 = vmatprep.mubr.f32.mxu0 0.0
    %v2225 = vand.u32 %v377, 4294901760
    %2226 = vmatmul.mubr.f32.gmra.mrb[0].mxu0 %v2225
    %v2227 = vpop.f32.mrb[0].mxu0
    %v2228 = vadd.f32 %v1963, %v2227
    %v2229 = vpop.f32.mrb[0].mxu0
    %2230 = vmatprep.mubr.f32.mxu0 0.0
    %v2231 = vand.u32 %v380, 4294901760
    %2232 = vmatmul.mubr.f32.gmra.mrb[0].mxu0 %v2231
    %v2233 = vpop.f32.mrb[0].mxu0
    %v2234 = vadd.f32 %v1969, %v2233
    %v2235 = vpop.f32.mrb[0].mxu0
    %2236 = vmatprep.mubr.f32.mxu0 0.0
    %v2237 = vand.u32 %v383, 4294901760
    %2238 = vmatmul.mubr.f32.gmra.mrb[0].mxu0 %v2237
    %v2239 = vpop.f32.mrb[0].mxu0
    %v2240 = vadd.f32 %v1975, %v2239
    %v2241 = vpop.f32.mrb[0].mxu0
    %2242 = vmatprep.mubr.f32.mxu0 0.0
    %v2243 = vand.u32 %v386, 4294901760
    %2244 = vmatmul.mubr.f32.gmra.mrb[0].mxu0 %v2243
    %v2245 = vpop.f32.mrb[0].mxu0
    %v2246 = vadd.f32 %v1981, %v2245
    %v2247 = vpop.f32.mrb[0].mxu0
    %2248 = vmatprep.mubr.f32.mxu0 0.0
    %v2249 = vand.u32 %v389, 4294901760
    %2250 = vmatmul.mubr.f32.gmra.mrb[0].mxu0 %v2249
    %v2251 = vpop.f32.mrb[0].mxu0
    %v2252 = vadd.f32 %v1987, %v2251
    %v2253 = vpop.f32.mrb[0].mxu0
    %2254 = vmatprep.mubr.f32.mxu0 0.0
    %v2255 = vand.u32 %v392, 4294901760
    %2256 = vmatmul.mubr.f32.gmra.mrb[0].mxu0 %v2255
    %v2257 = vpop.f32.mrb[0].mxu0
    %v2258 = vadd.f32 %v1993, %v2257
    %v2259 = vpop.f32.mrb[0].mxu0
    %2260 = vmatprep.mubr.f32.mxu0 0.0
    %v2261 = vand.u32 %v395, 4294901760
    %2262 = vmatmul.mubr.f32.gmra.mrb[0].mxu0 %v2261
    %v2263 = vpop.f32.mrb[0].mxu0
    %v2264 = vadd.f32 %v1999, %v2263
    %v2265 = vpop.f32.mrb[0].mxu0
    %2266 = vdwg.mxu0
    %v2267 = vlaneseq
    %v2268 = vand.u32 %v2267, 127
    %2269 = vmax.xlane.f32.xlu0 %v2078
    %v2270 = vpop.xlane.xlu0 %2269
    %2271 = vmax.xlane.f32.xlu0 %v2084
    %v2272 = vpop.xlane.xlu0 %2271
    %2273 = vmax.xlane.f32.xlu0 %v2090
    %v2274 = vpop.xlane.xlu0 %2273
    %2275 = vmax.xlane.f32.xlu0 %v2096
    %v2276 = vpop.xlane.xlu0 %2275
    %2277 = vmax.xlane.f32.xlu0 %v2102
    %v2278 = vpop.xlane.xlu0 %2277
    %2279 = vmax.xlane.f32.xlu0 %v2108
    %v2280 = vpop.xlane.xlu0 %2279
    %2281 = vmax.xlane.f32.xlu0 %v2114
    %v2282 = vpop.xlane.xlu0 %2281
    %2283 = vmax.xlane.f32.xlu0 %v2120
    %v2284 = vpop.xlane.xlu0 %2283
    %2285 = vmax.xlane.f32.xlu0 %v2126
    %v2286 = vpop.xlane.xlu0 %2285
    %2287 = vmax.xlane.f32.xlu0 %v2132
    %v2288 = vpop.xlane.xlu0 %2287
    %2289 = vmax.xlane.f32.xlu0 %v2138
    %v2290 = vpop.xlane.xlu0 %2289
    %2291 = vmax.xlane.f32.xlu0 %v2144
    %v2292 = vpop.xlane.xlu0 %2291
    %2293 = vmax.xlane.f32.xlu0 %v2150
    %v2294 = vpop.xlane.xlu0 %2293
    %2295 = vmax.xlane.f32.xlu0 %v2156
    %v2296 = vpop.xlane.xlu0 %2295
    %2297 = vmax.xlane.f32.xlu0 %v2162
    %v2298 = vpop.xlane.xlu0 %2297
    %2299 = vmax.xlane.f32.xlu0 %v2168
    %v2300 = vpop.xlane.xlu0 %2299
    %2301 = vmax.xlane.f32.xlu0 %v2174
    %v2302 = vpop.xlane.xlu0 %2301
    %2303 = vmax.xlane.f32.xlu0 %v2180
    %v2304 = vpop.xlane.xlu0 %2303
    %2305 = vmax.xlane.f32.xlu0 %v2186
    %v2306 = vpop.xlane.xlu0 %2305
    %2307 = vmax.xlane.f32.xlu0 %v2192
    %v2308 = vpop.xlane.xlu0 %2307
    %2309 = vmax.xlane.f32.xlu0 %v2198
    %v2310 = vpop.xlane.xlu0 %2309
    %2311 = vmax.xlane.f32.xlu0 %v2204
    %v2312 = vpop.xlane.xlu0 %2311
    %2313 = vmax.xlane.f32.xlu0 %v2210
    %v2314 = vpop.xlane.xlu0 %2313
    %2315 = vmax.xlane.f32.xlu0 %v2216
    %v2316 = vpop.xlane.xlu0 %2315
    %2317 = vmax.xlane.f32.xlu0 %v2222
    %v2318 = vpop.xlane.xlu0 %2317
    %2319 = vmax.xlane.f32.xlu0 %v2228
    %v2320 = vpop.xlane.xlu0 %2319
    %2321 = vmax.xlane.f32.xlu0 %v2234
    %v2322 = vpop.xlane.xlu0 %2321
    %2323 = vmax.xlane.f32.xlu0 %v2240
    %v2324 = vpop.xlane.xlu0 %2323
    %2325 = vmax.xlane.f32.xlu0 %v2246
    %v2326 = vpop.xlane.xlu0 %2325
    %2327 = vmax.xlane.f32.xlu0 %v2252
    %v2328 = vpop.xlane.xlu0 %2327
    %2329 = vmax.xlane.f32.xlu0 %v2258
    %v2330 = vpop.xlane.xlu0 %2329
    %2331 = vmax.xlane.f32.xlu0 %v2264
    %v2332 = vpop.xlane.xlu0 %2331
    %vm2333 = vcmp.eq.f32.partialorder %v2078, %v2270
    %vm2334 = vcmp.eq.f32.partialorder %v2084, %v2272
    %vm2335 = vcmp.eq.f32.partialorder %v2090, %v2274
    %vm2336 = vcmp.eq.f32.partialorder %v2096, %v2276
    %vm2337 = vcmp.eq.f32.partialorder %v2102, %v2278
    %vm2338 = vcmp.eq.f32.partialorder %v2108, %v2280
    %vm2339 = vcmp.eq.f32.partialorder %v2114, %v2282
    %vm2340 = vcmp.eq.f32.partialorder %v2120, %v2284
    %vm2341 = vcmp.eq.f32.partialorder %v2126, %v2286
    %vm2342 = vcmp.eq.f32.partialorder %v2132, %v2288
    %vm2343 = vcmp.eq.f32.partialorder %v2138, %v2290
    %vm2344 = vcmp.eq.f32.partialorder %v2144, %v2292
    %vm2345 = vcmp.eq.f32.partialorder %v2150, %v2294
    %vm2346 = vcmp.eq.f32.partialorder %v2156, %v2296
    %vm2347 = vcmp.eq.f32.partialorder %v2162, %v2298
    %vm2348 = vcmp.eq.f32.partialorder %v2168, %v2300
    %vm2349 = vcmp.eq.f32.partialorder %v2174, %v2302
    %vm2350 = vcmp.eq.f32.partialorder %v2180, %v2304
    %vm2351 = vcmp.eq.f32.partialorder %v2186, %v2306
    %vm2352 = vcmp.eq.f32.partialorder %v2192, %v2308
    %vm2353 = vcmp.eq.f32.partialorder %v2198, %v2310
    %vm2354 = vcmp.eq.f32.partialorder %v2204, %v2312
    %vm2355 = vcmp.eq.f32.partialorder %v2210, %v2314
    %vm2356 = vcmp.eq.f32.partialorder %v2216, %v2316
    %vm2357 = vcmp.eq.f32.partialorder %v2222, %v2318
    %vm2358 = vcmp.eq.f32.partialorder %v2228, %v2320
    %vm2359 = vcmp.eq.f32.partialorder %v2234, %v2322
    %vm2360 = vcmp.eq.f32.partialorder %v2240, %v2324
    %vm2361 = vcmp.eq.f32.partialorder %v2246, %v2326
    %vm2362 = vcmp.eq.f32.partialorder %v2252, %v2328
    %vm2363 = vcmp.eq.f32.partialorder %v2258, %v2330
    %vm2364 = vcmp.eq.f32.partialorder %v2264, %v2332
    %v2365 = vsel %vm2333, %v2268, 128
    %v2366 = vsel %vm2334, %v2268, 128
    %v2367 = vsel %vm2335, %v2268, 128
    %v2368 = vsel %vm2336, %v2268, 128
    %v2369 = vsel %vm2337, %v2268, 128
    %v2370 = vsel %vm2338, %v2268, 128
    %v2371 = vsel %vm2339, %v2268, 128
    %v2372 = vsel %vm2340, %v2268, 128
    %v2373 = vsel %vm2341, %v2268, 128
    %v2374 = vsel %vm2342, %v2268, 128
    %v2375 = vsel %vm2343, %v2268, 128
    %v2376 = vsel %vm2344, %v2268, 128
    %v2377 = vsel %vm2345, %v2268, 128
    %v2378 = vsel %vm2346, %v2268, 128
    %v2379 = vsel %vm2347, %v2268, 128
    %v2380 = vsel %vm2348, %v2268, 128
    %v2381 = vsel %vm2349, %v2268, 128
    %v2382 = vsel %vm2350, %v2268, 128
    %v2383 = vsel %vm2351, %v2268, 128
    %v2384 = vsel %vm2352, %v2268, 128
    %v2385 = vsel %vm2353, %v2268, 128
    %v2386 = vsel %vm2354, %v2268, 128
    %v2387 = vsel %vm2355, %v2268, 128
    %v2388 = vsel %vm2356, %v2268, 128
    %v2389 = vsel %vm2357, %v2268, 128
    %v2390 = vsel %vm2358, %v2268, 128
    %v2391 = vsel %vm2359, %v2268, 128
    %v2392 = vsel %vm2360, %v2268, 128
    %v2393 = vsel %vm2361, %v2268, 128
    %v2394 = vsel %vm2362, %v2268, 128
    %v2395 = vsel %vm2363, %v2268, 128
    %v2396 = vsel %vm2364, %v2268, 128
    %v2397 = vand.u32 %v2365, 65535
    %v2398 = vshra.s32 %v2365, 16
    %v2399 = vcvt.s32.f32 %v2397
    %v2400 = vcvt.s32.f32 %v2398
    %2401 = vmin.xlane.f32.xlu0 %v2400
    %v2402 = vpop.xlane.xlu0 %2401
    %vm2403 = vcmp.eq.f32.partialorder %v2400, %v2402
    %v2404 = vsel %vm2403, %v2399, inf
    %2405 = vmin.xlane.f32.xlu0 %v2404
    %v2406 = vpop.xlane.xlu0 %2405
    %v2407 = vcvt.f32.s32 %v2406
    %v2408 = vcvt.f32.s32 %v2402
    %v2409 = vshll.u32 %v2408, 16
    %v2410 = vadd.s32 %v2409, %v2407
    %v2411 = vand.u32 %v2366, 65535
    %v2412 = vshra.s32 %v2366, 16
    %v2413 = vcvt.s32.f32 %v2411
    %v2414 = vcvt.s32.f32 %v2412
    %2415 = vmin.xlane.f32.xlu0 %v2414
    %v2416 = vpop.xlane.xlu0 %2415
    %vm2417 = vcmp.eq.f32.partialorder %v2414, %v2416
    %v2418 = vsel %vm2417, %v2413, inf
    %2419 = vmin.xlane.f32.xlu0 %v2418
    %v2420 = vpop.xlane.xlu0 %2419
    %v2421 = vcvt.f32.s32 %v2420
    %v2422 = vcvt.f32.s32 %v2416
    %v2423 = vshll.u32 %v2422, 16
    %v2424 = vadd.s32 %v2423, %v2421
    %v2425 = vand.u32 %v2367, 65535
    %v2426 = vshra.s32 %v2367, 16
    %v2427 = vcvt.s32.f32 %v2425
    %v2428 = vcvt.s32.f32 %v2426
    %2429 = vmin.xlane.f32.xlu0 %v2428
    %v2430 = vpop.xlane.xlu0 %2429
    %vm2431 = vcmp.eq.f32.partialorder %v2428, %v2430
    %v2432 = vsel %vm2431, %v2427, inf
    %2433 = vmin.xlane.f32.xlu0 %v2432
    %v2434 = vpop.xlane.xlu0 %2433
    %v2435 = vcvt.f32.s32 %v2434
    %v2436 = vcvt.f32.s32 %v2430
    %v2437 = vshll.u32 %v2436, 16
    %v2438 = vadd.s32 %v2437, %v2435
    %v2439 = vand.u32 %v2368, 65535
    %v2440 = vshra.s32 %v2368, 16
    %v2441 = vcvt.s32.f32 %v2439
    %v2442 = vcvt.s32.f32 %v2440
    %2443 = vmin.xlane.f32.xlu0 %v2442
    %v2444 = vpop.xlane.xlu0 %2443
    %vm2445 = vcmp.eq.f32.partialorder %v2442, %v2444
    %v2446 = vsel %vm2445, %v2441, inf
    %2447 = vmin.xlane.f32.xlu0 %v2446
    %v2448 = vpop.xlane.xlu0 %2447
    %v2449 = vcvt.f32.s32 %v2448
    %v2450 = vcvt.f32.s32 %v2444
    %v2451 = vshll.u32 %v2450, 16
    %v2452 = vadd.s32 %v2451, %v2449
    %v2453 = vand.u32 %v2369, 65535
    %v2454 = vshra.s32 %v2369, 16
    %v2455 = vcvt.s32.f32 %v2453
    %v2456 = vcvt.s32.f32 %v2454
    %2457 = vmin.xlane.f32.xlu0 %v2456
    %v2458 = vpop.xlane.xlu0 %2457
    %vm2459 = vcmp.eq.f32.partialorder %v2456, %v2458
    %v2460 = vsel %vm2459, %v2455, inf
    %2461 = vmin.xlane.f32.xlu0 %v2460
    %v2462 = vpop.xlane.xlu0 %2461
    %v2463 = vcvt.f32.s32 %v2462
    %v2464 = vcvt.f32.s32 %v2458
    %v2465 = vshll.u32 %v2464, 16
    %v2466 = vadd.s32 %v2465, %v2463
    %v2467 = vand.u32 %v2370, 65535
    %v2468 = vshra.s32 %v2370, 16
    %v2469 = vcvt.s32.f32 %v2467
    %v2470 = vcvt.s32.f32 %v2468
    %2471 = vmin.xlane.f32.xlu0 %v2470
    %v2472 = vpop.xlane.xlu0 %2471
    %vm2473 = vcmp.eq.f32.partialorder %v2470, %v2472
    %v2474 = vsel %vm2473, %v2469, inf
    %2475 = vmin.xlane.f32.xlu0 %v2474
    %v2476 = vpop.xlane.xlu0 %2475
    %v2477 = vcvt.f32.s32 %v2476
    %v2478 = vcvt.f32.s32 %v2472
    %v2479 = vshll.u32 %v2478, 16
    %v2480 = vadd.s32 %v2479, %v2477
    %v2481 = vand.u32 %v2371, 65535
    %v2482 = vshra.s32 %v2371, 16
    %v2483 = vcvt.s32.f32 %v2481
    %v2484 = vcvt.s32.f32 %v2482
    %2485 = vmin.xlane.f32.xlu0 %v2484
    %v2486 = vpop.xlane.xlu0 %2485
    %vm2487 = vcmp.eq.f32.partialorder %v2484, %v2486
    %v2488 = vsel %vm2487, %v2483, inf
    %2489 = vmin.xlane.f32.xlu0 %v2488
    %v2490 = vpop.xlane.xlu0 %2489
    %v2491 = vcvt.f32.s32 %v2490
    %v2492 = vcvt.f32.s32 %v2486
    %v2493 = vshll.u32 %v2492, 16
    %v2494 = vadd.s32 %v2493, %v2491
    %v2495 = vand.u32 %v2372, 65535
    %v2496 = vshra.s32 %v2372, 16
    %v2497 = vcvt.s32.f32 %v2495
    %v2498 = vcvt.s32.f32 %v2496
    %2499 = vmin.xlane.f32.xlu0 %v2498
    %v2500 = vpop.xlane.xlu0 %2499
    %vm2501 = vcmp.eq.f32.partialorder %v2498, %v2500
    %v2502 = vsel %vm2501, %v2497, inf
    %2503 = vmin.xlane.f32.xlu0 %v2502
    %v2504 = vpop.xlane.xlu0 %2503
    %v2505 = vcvt.f32.s32 %v2504
    %v2506 = vcvt.f32.s32 %v2500
    %v2507 = vshll.u32 %v2506, 16
    %v2508 = vadd.s32 %v2507, %v2505
    %v2509 = vand.u32 %v2373, 65535
    %v2510 = vshra.s32 %v2373, 16
    %v2511 = vcvt.s32.f32 %v2509
    %v2512 = vcvt.s32.f32 %v2510
    %2513 = vmin.xlane.f32.xlu0 %v2512
    %v2514 = vpop.xlane.xlu0 %2513
    %vm2515 = vcmp.eq.f32.partialorder %v2512, %v2514
    %v2516 = vsel %vm2515, %v2511, inf
    %2517 = vmin.xlane.f32.xlu0 %v2516
    %v2518 = vpop.xlane.xlu0 %2517
    %v2519 = vcvt.f32.s32 %v2518
    %v2520 = vcvt.f32.s32 %v2514
    %v2521 = vshll.u32 %v2520, 16
    %v2522 = vadd.s32 %v2521, %v2519
    %v2523 = vand.u32 %v2374, 65535
    %v2524 = vshra.s32 %v2374, 16
    %v2525 = vcvt.s32.f32 %v2523
    %v2526 = vcvt.s32.f32 %v2524
    %2527 = vmin.xlane.f32.xlu0 %v2526
    %v2528 = vpop.xlane.xlu0 %2527
    %vm2529 = vcmp.eq.f32.partialorder %v2526, %v2528
    %v2530 = vsel %vm2529, %v2525, inf
    %2531 = vmin.xlane.f32.xlu0 %v2530
    %v2532 = vpop.xlane.xlu0 %2531
    %v2533 = vcvt.f32.s32 %v2532
    %v2534 = vcvt.f32.s32 %v2528
    %v2535 = vshll.u32 %v2534, 16
    %v2536 = vadd.s32 %v2535, %v2533
    %v2537 = vand.u32 %v2375, 65535
    %v2538 = vshra.s32 %v2375, 16
    %v2539 = vcvt.s32.f32 %v2537
    %v2540 = vcvt.s32.f32 %v2538
    %2541 = vmin.xlane.f32.xlu0 %v2540
    %v2542 = vpop.xlane.xlu0 %2541
    %vm2543 = vcmp.eq.f32.partialorder %v2540, %v2542
    %v2544 = vsel %vm2543, %v2539, inf
    %2545 = vmin.xlane.f32.xlu0 %v2544
    %v2546 = vpop.xlane.xlu0 %2545
    %v2547 = vcvt.f32.s32 %v2546
    %v2548 = vcvt.f32.s32 %v2542
    %v2549 = vshll.u32 %v2548, 16
    %v2550 = vadd.s32 %v2549, %v2547
    %v2551 = vand.u32 %v2376, 65535
    %v2552 = vshra.s32 %v2376, 16
    %v2553 = vcvt.s32.f32 %v2551
    %v2554 = vcvt.s32.f32 %v2552
    %2555 = vmin.xlane.f32.xlu0 %v2554
    %v2556 = vpop.xlane.xlu0 %2555
    %vm2557 = vcmp.eq.f32.partialorder %v2554, %v2556
    %v2558 = vsel %vm2557, %v2553, inf
    %2559 = vmin.xlane.f32.xlu0 %v2558
    %v2560 = vpop.xlane.xlu0 %2559
    %v2561 = vcvt.f32.s32 %v2560
    %v2562 = vcvt.f32.s32 %v2556
    %v2563 = vshll.u32 %v2562, 16
    %v2564 = vadd.s32 %v2563, %v2561
    %v2565 = vand.u32 %v2377, 65535
    %v2566 = vshra.s32 %v2377, 16
    %v2567 = vcvt.s32.f32 %v2565
    %v2568 = vcvt.s32.f32 %v2566
    %2569 = vmin.xlane.f32.xlu0 %v2568
    %v2570 = vpop.xlane.xlu0 %2569
    %vm2571 = vcmp.eq.f32.partialorder %v2568, %v2570
    %v2572 = vsel %vm2571, %v2567, inf
    %2573 = vmin.xlane.f32.xlu0 %v2572
    %v2574 = vpop.xlane.xlu0 %2573
    %v2575 = vcvt.f32.s32 %v2574
    %v2576 = vcvt.f32.s32 %v2570
    %v2577 = vshll.u32 %v2576, 16
    %v2578 = vadd.s32 %v2577, %v2575
    %v2579 = vand.u32 %v2378, 65535
    %v2580 = vshra.s32 %v2378, 16
    %v2581 = vcvt.s32.f32 %v2579
    %v2582 = vcvt.s32.f32 %v2580
    %2583 = vmin.xlane.f32.xlu0 %v2582
    %v2584 = vpop.xlane.xlu0 %2583
    %vm2585 = vcmp.eq.f32.partialorder %v2582, %v2584
    %v2586 = vsel %vm2585, %v2581, inf
    %2587 = vmin.xlane.f32.xlu0 %v2586
    %v2588 = vpop.xlane.xlu0 %2587
    %v2589 = vcvt.f32.s32 %v2588
    %v2590 = vcvt.f32.s32 %v2584
    %v2591 = vshll.u32 %v2590, 16
    %v2592 = vadd.s32 %v2591, %v2589
    %v2593 = vand.u32 %v2379, 65535
    %v2594 = vshra.s32 %v2379, 16
    %v2595 = vcvt.s32.f32 %v2593
    %v2596 = vcvt.s32.f32 %v2594
    %2597 = vmin.xlane.f32.xlu0 %v2596
    %v2598 = vpop.xlane.xlu0 %2597
    %vm2599 = vcmp.eq.f32.partialorder %v2596, %v2598
    %v2600 = vsel %vm2599, %v2595, inf
    %2601 = vmin.xlane.f32.xlu0 %v2600
    %v2602 = vpop.xlane.xlu0 %2601
    %v2603 = vcvt.f32.s32 %v2602
    %v2604 = vcvt.f32.s32 %v2598
    %v2605 = vshll.u32 %v2604, 16
    %v2606 = vadd.s32 %v2605, %v2603
    %v2607 = vand.u32 %v2380, 65535
    %v2608 = vshra.s32 %v2380, 16
    %v2609 = vcvt.s32.f32 %v2607
    %v2610 = vcvt.s32.f32 %v2608
    %2611 = vmin.xlane.f32.xlu0 %v2610
    %v2612 = vpop.xlane.xlu0 %2611
    %vm2613 = vcmp.eq.f32.partialorder %v2610, %v2612
    %v2614 = vsel %vm2613, %v2609, inf
    %2615 = vmin.xlane.f32.xlu0 %v2614
    %v2616 = vpop.xlane.xlu0 %2615
    %v2617 = vcvt.f32.s32 %v2616
    %v2618 = vcvt.f32.s32 %v2612
    %v2619 = vshll.u32 %v2618, 16
    %v2620 = vadd.s32 %v2619, %v2617
    %v2621 = vand.u32 %v2381, 65535
    %v2622 = vshra.s32 %v2381, 16
    %v2623 = vcvt.s32.f32 %v2621
    %v2624 = vcvt.s32.f32 %v2622
    %2625 = vmin.xlane.f32.xlu0 %v2624
    %v2626 = vpop.xlane.xlu0 %2625
    %vm2627 = vcmp.eq.f32.partialorder %v2624, %v2626
    %v2628 = vsel %vm2627, %v2623, inf
    %2629 = vmin.xlane.f32.xlu0 %v2628
    %v2630 = vpop.xlane.xlu0 %2629
    %v2631 = vcvt.f32.s32 %v2630
    %v2632 = vcvt.f32.s32 %v2626
    %v2633 = vshll.u32 %v2632, 16
    %v2634 = vadd.s32 %v2633, %v2631
    %v2635 = vand.u32 %v2382, 65535
    %v2636 = vshra.s32 %v2382, 16
    %v2637 = vcvt.s32.f32 %v2635
    %v2638 = vcvt.s32.f32 %v2636
    %2639 = vmin.xlane.f32.xlu0 %v2638
    %v2640 = vpop.xlane.xlu0 %2639
    %vm2641 = vcmp.eq.f32.partialorder %v2638, %v2640
    %v2642 = vsel %vm2641, %v2637, inf
    %2643 = vmin.xlane.f32.xlu0 %v2642
    %v2644 = vpop.xlane.xlu0 %2643
    %v2645 = vcvt.f32.s32 %v2644
    %v2646 = vcvt.f32.s32 %v2640
    %v2647 = vshll.u32 %v2646, 16
    %v2648 = vadd.s32 %v2647, %v2645
    %v2649 = vand.u32 %v2383, 65535
    %v2650 = vshra.s32 %v2383, 16
    %v2651 = vcvt.s32.f32 %v2649
    %v2652 = vcvt.s32.f32 %v2650
    %2653 = vmin.xlane.f32.xlu0 %v2652
    %v2654 = vpop.xlane.xlu0 %2653
    %vm2655 = vcmp.eq.f32.partialorder %v2652, %v2654
    %v2656 = vsel %vm2655, %v2651, inf
    %2657 = vmin.xlane.f32.xlu0 %v2656
    %v2658 = vpop.xlane.xlu0 %2657
    %v2659 = vcvt.f32.s32 %v2658
    %v2660 = vcvt.f32.s32 %v2654
    %v2661 = vshll.u32 %v2660, 16
    %v2662 = vadd.s32 %v2661, %v2659
    %v2663 = vand.u32 %v2384, 65535
    %v2664 = vshra.s32 %v2384, 16
    %v2665 = vcvt.s32.f32 %v2663
    %v2666 = vcvt.s32.f32 %v2664
    %2667 = vmin.xlane.f32.xlu0 %v2666
    %v2668 = vpop.xlane.xlu0 %2667
    %vm2669 = vcmp.eq.f32.partialorder %v2666, %v2668
    %v2670 = vsel %vm2669, %v2665, inf
    %2671 = vmin.xlane.f32.xlu0 %v2670
    %v2672 = vpop.xlane.xlu0 %2671
    %v2673 = vcvt.f32.s32 %v2672
    %v2674 = vcvt.f32.s32 %v2668
    %v2675 = vshll.u32 %v2674, 16
    %v2676 = vadd.s32 %v2675, %v2673
    %v2677 = vand.u32 %v2385, 65535
    %v2678 = vshra.s32 %v2385, 16
    %v2679 = vcvt.s32.f32 %v2677
    %v2680 = vcvt.s32.f32 %v2678
    %2681 = vmin.xlane.f32.xlu0 %v2680
    %v2682 = vpop.xlane.xlu0 %2681
    %vm2683 = vcmp.eq.f32.partialorder %v2680, %v2682
    %v2684 = vsel %vm2683, %v2679, inf
    %2685 = vmin.xlane.f32.xlu0 %v2684
    %v2686 = vpop.xlane.xlu0 %2685
    %v2687 = vcvt.f32.s32 %v2686
    %v2688 = vcvt.f32.s32 %v2682
    %v2689 = vshll.u32 %v2688, 16
    %v2690 = vadd.s32 %v2689, %v2687
    %v2691 = vand.u32 %v2386, 65535
    %v2692 = vshra.s32 %v2386, 16
    %v2693 = vcvt.s32.f32 %v2691
    %v2694 = vcvt.s32.f32 %v2692
    %2695 = vmin.xlane.f32.xlu0 %v2694
    %v2696 = vpop.xlane.xlu0 %2695
    %vm2697 = vcmp.eq.f32.partialorder %v2694, %v2696
    %v2698 = vsel %vm2697, %v2693, inf
    %2699 = vmin.xlane.f32.xlu0 %v2698
    %v2700 = vpop.xlane.xlu0 %2699
    %v2701 = vcvt.f32.s32 %v2700
    %v2702 = vcvt.f32.s32 %v2696
    %v2703 = vshll.u32 %v2702, 16
    %v2704 = vadd.s32 %v2703, %v2701
    %v2705 = vand.u32 %v2387, 65535
    %v2706 = vshra.s32 %v2387, 16
    %v2707 = vcvt.s32.f32 %v2705
    %v2708 = vcvt.s32.f32 %v2706
    %2709 = vmin.xlane.f32.xlu0 %v2708
    %v2710 = vpop.xlane.xlu0 %2709
    %vm2711 = vcmp.eq.f32.partialorder %v2708, %v2710
    %v2712 = vsel %vm2711, %v2707, inf
    %2713 = vmin.xlane.f32.xlu0 %v2712
    %v2714 = vpop.xlane.xlu0 %2713
    %v2715 = vcvt.f32.s32 %v2714
    %v2716 = vcvt.f32.s32 %v2710
    %v2717 = vshll.u32 %v2716, 16
    %v2718 = vadd.s32 %v2717, %v2715
    %v2719 = vand.u32 %v2388, 65535
    %v2720 = vshra.s32 %v2388, 16
    %v2721 = vcvt.s32.f32 %v2719
    %v2722 = vcvt.s32.f32 %v2720
    %2723 = vmin.xlane.f32.xlu0 %v2722
    %v2724 = vpop.xlane.xlu0 %2723
    %vm2725 = vcmp.eq.f32.partialorder %v2722, %v2724
    %v2726 = vsel %vm2725, %v2721, inf
    %2727 = vmin.xlane.f32.xlu0 %v2726
    %v2728 = vpop.xlane.xlu0 %2727
    %v2729 = vcvt.f32.s32 %v2728
    %v2730 = vcvt.f32.s32 %v2724
    %v2731 = vshll.u32 %v2730, 16
    %v2732 = vadd.s32 %v2731, %v2729
    %v2733 = vand.u32 %v2389, 65535
    %v2734 = vshra.s32 %v2389, 16
    %v2735 = vcvt.s32.f32 %v2733
    %v2736 = vcvt.s32.f32 %v2734
    %2737 = vmin.xlane.f32.xlu0 %v2736
    %v2738 = vpop.xlane.xlu0 %2737
    %vm2739 = vcmp.eq.f32.partialorder %v2736, %v2738
    %v2740 = vsel %vm2739, %v2735, inf
    %2741 = vmin.xlane.f32.xlu0 %v2740
    %v2742 = vpop.xlane.xlu0 %2741
    %v2743 = vcvt.f32.s32 %v2742
    %v2744 = vcvt.f32.s32 %v2738
    %v2745 = vshll.u32 %v2744, 16
    %v2746 = vadd.s32 %v2745, %v2743
    %v2747 = vand.u32 %v2390, 65535
    %v2748 = vshra.s32 %v2390, 16
    %v2749 = vcvt.s32.f32 %v2747
    %v2750 = vcvt.s32.f32 %v2748
    %2751 = vmin.xlane.f32.xlu0 %v2750
    %v2752 = vpop.xlane.xlu0 %2751
    %vm2753 = vcmp.eq.f32.partialorder %v2750, %v2752
    %v2754 = vsel %vm2753, %v2749, inf
    %2755 = vmin.xlane.f32.xlu0 %v2754
    %v2756 = vpop.xlane.xlu0 %2755
    %v2757 = vcvt.f32.s32 %v2756
    %v2758 = vcvt.f32.s32 %v2752
    %v2759 = vshll.u32 %v2758, 16
    %v2760 = vadd.s32 %v2759, %v2757
    %v2761 = vand.u32 %v2391, 65535
    %v2762 = vshra.s32 %v2391, 16
    %v2763 = vcvt.s32.f32 %v2761
    %v2764 = vcvt.s32.f32 %v2762
    %2765 = vmin.xlane.f32.xlu0 %v2764
    %v2766 = vpop.xlane.xlu0 %2765
    %vm2767 = vcmp.eq.f32.partialorder %v2764, %v2766
    %v2768 = vsel %vm2767, %v2763, inf
    %2769 = vmin.xlane.f32.xlu0 %v2768
    %v2770 = vpop.xlane.xlu0 %2769
    %v2771 = vcvt.f32.s32 %v2770
    %v2772 = vcvt.f32.s32 %v2766
    %v2773 = vshll.u32 %v2772, 16
    %v2774 = vadd.s32 %v2773, %v2771
    %v2775 = vand.u32 %v2392, 65535
    %v2776 = vshra.s32 %v2392, 16
    %v2777 = vcvt.s32.f32 %v2775
    %v2778 = vcvt.s32.f32 %v2776
    %2779 = vmin.xlane.f32.xlu0 %v2778
    %v2780 = vpop.xlane.xlu0 %2779
    %vm2781 = vcmp.eq.f32.partialorder %v2778, %v2780
    %v2782 = vsel %vm2781, %v2777, inf
    %2783 = vmin.xlane.f32.xlu0 %v2782
    %v2784 = vpop.xlane.xlu0 %2783
    %v2785 = vcvt.f32.s32 %v2784
    %v2786 = vcvt.f32.s32 %v2780
    %v2787 = vshll.u32 %v2786, 16
    %v2788 = vadd.s32 %v2787, %v2785
    %v2789 = vand.u32 %v2393, 65535
    %v2790 = vshra.s32 %v2393, 16
    %v2791 = vcvt.s32.f32 %v2789
    %v2792 = vcvt.s32.f32 %v2790
    %2793 = vmin.xlane.f32.xlu0 %v2792
    %v2794 = vpop.xlane.xlu0 %2793
    %vm2795 = vcmp.eq.f32.partialorder %v2792, %v2794
    %v2796 = vsel %vm2795, %v2791, inf
    %2797 = vmin.xlane.f32.xlu0 %v2796
    %v2798 = vpop.xlane.xlu0 %2797
    %v2799 = vcvt.f32.s32 %v2798
    %v2800 = vcvt.f32.s32 %v2794
    %v2801 = vshll.u32 %v2800, 16
    %v2802 = vadd.s32 %v2801, %v2799
    %v2803 = vand.u32 %v2394, 65535
    %v2804 = vshra.s32 %v2394, 16
    %v2805 = vcvt.s32.f32 %v2803
    %v2806 = vcvt.s32.f32 %v2804
    %2807 = vmin.xlane.f32.xlu0 %v2806
    %v2808 = vpop.xlane.xlu0 %2807
    %vm2809 = vcmp.eq.f32.partialorder %v2806, %v2808
    %v2810 = vsel %vm2809, %v2805, inf
    %2811 = vmin.xlane.f32.xlu0 %v2810
    %v2812 = vpop.xlane.xlu0 %2811
    %v2813 = vcvt.f32.s32 %v2812
    %v2814 = vcvt.f32.s32 %v2808
    %v2815 = vshll.u32 %v2814, 16
    %v2816 = vadd.s32 %v2815, %v2813
    %v2817 = vand.u32 %v2395, 65535
    %v2818 = vshra.s32 %v2395, 16
    %v2819 = vcvt.s32.f32 %v2817
    %v2820 = vcvt.s32.f32 %v2818
    %2821 = vmin.xlane.f32.xlu0 %v2820
    %v2822 = vpop.xlane.xlu0 %2821
    %vm2823 = vcmp.eq.f32.partialorder %v2820, %v2822
    %v2824 = vsel %vm2823, %v2819, inf
    %2825 = vmin.xlane.f32.xlu0 %v2824
    %v2826 = vpop.xlane.xlu0 %2825
    %v2827 = vcvt.f32.s32 %v2826
    %v2828 = vcvt.f32.s32 %v2822
    %v2829 = vshll.u32 %v2828, 16
    %v2830 = vadd.s32 %v2829, %v2827
    %v2831 = vand.u32 %v2396, 65535
    %v2832 = vshra.s32 %v2396, 16
    %v2833 = vcvt.s32.f32 %v2831
    %v2834 = vcvt.s32.f32 %v2832
    %2835 = vmin.xlane.f32.xlu0 %v2834
    %v2836 = vpop.xlane.xlu0 %2835
    %vm2837 = vcmp.eq.f32.partialorder %v2834, %v2836
    %v2838 = vsel %vm2837, %v2833, inf
    %2839 = vmin.xlane.f32.xlu0 %v2838
    %v2840 = vpop.xlane.xlu0 %2839
    %v2841 = vcvt.f32.s32 %v2840
    %v2842 = vcvt.f32.s32 %v2836
    %v2843 = vshll.u32 %v2842, 16
    %v2844 = vadd.s32 %v2843, %v2841
    %vm2845 = vcmp.eq.s32.totalorder %v2268, %v2410
    %vm2846 = vcmp.eq.s32.totalorder %v2268, %v2424
    %vm2847 = vcmp.eq.s32.totalorder %v2268, %v2438
    %vm2848 = vcmp.eq.s32.totalorder %v2268, %v2452
    %vm2849 = vcmp.eq.s32.totalorder %v2268, %v2466
    %vm2850 = vcmp.eq.s32.totalorder %v2268, %v2480
    %vm2851 = vcmp.eq.s32.totalorder %v2268, %v2494
    %vm2852 = vcmp.eq.s32.totalorder %v2268, %v2508
    %vm2853 = vcmp.eq.s32.totalorder %v2268, %v2522
    %vm2854 = vcmp.eq.s32.totalorder %v2268, %v2536
    %vm2855 = vcmp.eq.s32.totalorder %v2268, %v2550
    %vm2856 = vcmp.eq.s32.totalorder %v2268, %v2564
    %vm2857 = vcmp.eq.s32.totalorder %v2268, %v2578
    %vm2858 = vcmp.eq.s32.totalorder %v2268, %v2592
    %vm2859 = vcmp.eq.s32.totalorder %v2268, %v2606
    %vm2860 = vcmp.eq.s32.totalorder %v2268, %v2620
    %vm2861 = vcmp.eq.s32.totalorder %v2268, %v2634
    %vm2862 = vcmp.eq.s32.totalorder %v2268, %v2648
    %vm2863 = vcmp.eq.s32.totalorder %v2268, %v2662
    %vm2864 = vcmp.eq.s32.totalorder %v2268, %v2676
    %vm2865 = vcmp.eq.s32.totalorder %v2268, %v2690
    %vm2866 = vcmp.eq.s32.totalorder %v2268, %v2704
    %vm2867 = vcmp.eq.s32.totalorder %v2268, %v2718
    %vm2868 = vcmp.eq.s32.totalorder %v2268, %v2732
    %vm2869 = vcmp.eq.s32.totalorder %v2268, %v2746
    %vm2870 = vcmp.eq.s32.totalorder %v2268, %v2760
    %vm2871 = vcmp.eq.s32.totalorder %v2268, %v2774
    %vm2872 = vcmp.eq.s32.totalorder %v2268, %v2788
    %vm2873 = vcmp.eq.s32.totalorder %v2268, %v2802
    %vm2874 = vcmp.eq.s32.totalorder %v2268, %v2816
    %vm2875 = vcmp.eq.s32.totalorder %v2268, %v2830
    %vm2876 = vcmp.eq.s32.totalorder %v2268, %v2844
    %v2877 = vsel %vm2845, 1, 0
    %v2878 = vsel %vm2846, 1, 0
    %v2879 = vsel %vm2847, 1, 0
    %v2880 = vsel %vm2848, 1, 0
    %v2881 = vsel %vm2849, 1, 0
    %v2882 = vsel %vm2850, 1, 0
    %v2883 = vsel %vm2851, 1, 0
    %v2884 = vsel %vm2852, 1, 0
    %v2885 = vsel %vm2853, 1, 0
    %v2886 = vsel %vm2854, 1, 0
    %v2887 = vsel %vm2855, 1, 0
    %v2888 = vsel %vm2856, 1, 0
    %v2889 = vsel %vm2857, 1, 0
    %v2890 = vsel %vm2858, 1, 0
    %v2891 = vsel %vm2859, 1, 0
    %v2892 = vsel %vm2860, 1, 0
    %v2893 = vsel %vm2861, 1, 0
    %v2894 = vsel %vm2862, 1, 0
    %v2895 = vsel %vm2863, 1, 0
    %v2896 = vsel %vm2864, 1, 0
    %v2897 = vsel %vm2865, 1, 0
    %v2898 = vsel %vm2866, 1, 0
    %v2899 = vsel %vm2867, 1, 0
    %v2900 = vsel %vm2868, 1, 0
    %v2901 = vsel %vm2869, 1, 0
    %v2902 = vsel %vm2870, 1, 0
    %v2903 = vsel %vm2871, 1, 0
    %v2904 = vsel %vm2872, 1, 0
    %v2905 = vsel %vm2873, 1, 0
    %v2906 = vsel %vm2874, 1, 0
    %v2907 = vsel %vm2875, 1, 0
    %v2908 = vsel %vm2876, 1, 0
    %v2909 = vcvt.s32.f32 %v2877
    %v2910 = vcvt.s32.f32 %v2878
    %v2911 = vcvt.s32.f32 %v2879
    %v2912 = vcvt.s32.f32 %v2880
    %v2913 = vcvt.s32.f32 %v2881
    %v2914 = vcvt.s32.f32 %v2882
    %v2915 = vcvt.s32.f32 %v2883
    %v2916 = vcvt.s32.f32 %v2884
    %v2917 = vcvt.s32.f32 %v2885
    %v2918 = vcvt.s32.f32 %v2886
    %v2919 = vcvt.s32.f32 %v2887
    %v2920 = vcvt.s32.f32 %v2888
    %v2921 = vcvt.s32.f32 %v2889
    %v2922 = vcvt.s32.f32 %v2890
    %v2923 = vcvt.s32.f32 %v2891
    %v2924 = vcvt.s32.f32 %v2892
    %v2925 = vcvt.s32.f32 %v2893
    %v2926 = vcvt.s32.f32 %v2894
    %v2927 = vcvt.s32.f32 %v2895
    %v2928 = vcvt.s32.f32 %v2896
    %v2929 = vcvt.s32.f32 %v2897
    %v2930 = vcvt.s32.f32 %v2898
    %v2931 = vcvt.s32.f32 %v2899
    %v2932 = vcvt.s32.f32 %v2900
    %v2933 = vcvt.s32.f32 %v2901
    %v2934 = vcvt.s32.f32 %v2902
    %v2935 = vcvt.s32.f32 %v2903
    %v2936 = vcvt.s32.f32 %v2904
    %v2937 = vcvt.s32.f32 %v2905
    %v2938 = vcvt.s32.f32 %v2906
    %v2939 = vcvt.s32.f32 %v2907
    %v2940 = vcvt.s32.f32 %v2908
    %2941 = vmatprep.subr.mxu0 0.0
    %v2942 = vand.u32 %v60, 4294901760
    %2943 = vmatpush1.msra.mxu0 %v2942
    %2944 = vmatprep.subr.mxu0 0.0
    %v2945 = vand.u32 %v61, 4294901760
    %2946 = vmatpush1.msra.mxu0 %v2945
    %2947 = vmatprep.subr.mxu0 0.0
    %v2948 = vand.u32 %v62, 4294901760
    %2949 = vmatpush1.msra.mxu0 %v2948
    %2950 = vmatprep.subr.mxu0 0.0
    %v2951 = vand.u32 %v63, 4294901760
    %2952 = vmatpush1.msra.mxu0 %v2951
    %2953 = vmatprep.subr.mxu0 0.0
    %v2954 = vand.u32 %v64, 4294901760
    %2955 = vmatpush1.msra.mxu0 %v2954
    %2956 = vmatprep.subr.mxu0 0.0
    %v2957 = vand.u32 %v65, 4294901760
    %2958 = vmatpush1.msra.mxu0 %v2957
    %2959 = vmatprep.subr.mxu0 0.0
    %v2960 = vand.u32 %v66, 4294901760
    %2961 = vmatpush1.msra.mxu0 %v2960
    %2962 = vmatprep.subr.mxu0 0.0
    %v2963 = vand.u32 %v67, 4294901760
    %2964 = vmatpush1.msra.mxu0 %v2963
    %2965 = vmatprep.subr.mxu0 0.0
    %v2966 = vand.u32 %v68, 4294901760
    %2967 = vmatpush1.msra.mxu0 %v2966
    %2968 = vmatprep.subr.mxu0 0.0
    %v2969 = vand.u32 %v69, 4294901760
    %2970 = vmatpush1.msra.mxu0 %v2969
    %2971 = vmatprep.subr.mxu0 0.0
    %v2972 = vand.u32 %v70, 4294901760
    %2973 = vmatpush1.msra.mxu0 %v2972
    %2974 = vmatprep.subr.mxu0 0.0
    %v2975 = vand.u32 %v71, 4294901760
    %2976 = vmatpush1.msra.mxu0 %v2975
    %2977 = vmatprep.subr.mxu0 0.0
    %v2978 = vand.u32 %v72, 4294901760
    %2979 = vmatpush1.msra.mxu0 %v2978
    %2980 = vmatprep.subr.mxu0 0.0
    %v2981 = vand.u32 %v73, 4294901760
    %2982 = vmatpush1.msra.mxu0 %v2981
    %2983 = vmatprep.subr.mxu0 0.0
    %v2984 = vand.u32 %v74, 4294901760
    %2985 = vmatpush1.msra.mxu0 %v2984
    %2986 = vmatprep.subr.mxu0 0.0
    %v2987 = vand.u32 %v75, 4294901760
    %2988 = vmatpush1.msra.mxu0 %v2987
    %2989 = vmatprep.subr.mxu0 0.0
    %2990 = vmatpush1.msra.mxu0 0.0
    %2991 = vmatprep.subr.mxu0 0.0
    %2992 = vmatpush1.msra.mxu0 0.0
    %2993 = vmatprep.subr.mxu0 0.0
    %2994 = vmatpush1.msra.mxu0 0.0
    %2995 = vmatprep.subr.mxu0 0.0
    %2996 = vmatpush1.msra.mxu0 0.0
    %2997 = vmatprep.subr.mxu0 0.0
    %2998 = vmatpush1.msra.mxu0 0.0
    %2999 = vmatprep.subr.mxu0 0.0
    %3000 = vmatpush1.msra.mxu0 0.0
    %3001 = vmatprep.subr.mxu0 0.0
    %3002 = vmatpush1.msra.mxu0 0.0
    %3003 = vmatprep.subr.mxu0 0.0
    %3004 = vmatpush1.msra.mxu0 0.0
    %3005 = vmatprep.subr.mxu0 0.0
    %3006 = vmatpush1.msra.mxu0 0.0
    %3007 = vmatprep.subr.mxu0 0.0
    %3008 = vmatpush1.msra.mxu0 0.0
    %3009 = vmatprep.subr.mxu0 0.0
    %3010 = vmatpush1.msra.mxu0 0.0
    %3011 = vmatprep.subr.mxu0 0.0
    %3012 = vmatpush1.msra.mxu0 0.0
    %3013 = vmatprep.subr.mxu0 0.0
    %3014 = vmatpush1.msra.mxu0 0.0
    %3015 = vmatprep.subr.mxu0 0.0
    %3016 = vmatpush1.msra.mxu0 0.0
    %3017 = vmatprep.subr.mxu0 0.0
    %3018 = vmatpush1.msra.mxu0 0.0
    %3019 = vmatprep.subr.mxu0 0.0
    %3020 = vmatpush1.msra.mxu0 0.0
    %3021 = vmatprep.mubr.f32.mxu0 0.0
    %v3022 = vand.u32 %v2909, 4294901760
    %v3023 = vsub.f32 %v2909, %v3022
    %v3024 = vand.u32 %v3023, 4294901760
    %v3025 = vsub.f32 %v3023, %v3024
    %v3026 = vand.u32 %v3025, 4294901760
    %3027 = vmatmul.mubr.f32.gmra.mrb[0].mxu0 %v3026
    %v3028 = vpop.f32.mrb[0].mxu0
    %v3029 = vadd.f32 0.0, %v3028
    %v3030 = vpop.f32.mrb[0].mxu0
    %3031 = vmatprep.mubr.f32.mxu0 0.0
    %v3032 = vand.u32 %v2910, 4294901760
    %v3033 = vsub.f32 %v2910, %v3032
    %v3034 = vand.u32 %v3033, 4294901760
    %v3035 = vsub.f32 %v3033, %v3034
    %v3036 = vand.u32 %v3035, 4294901760
    %3037 = vmatmul.mubr.f32.gmra.mrb[0].mxu0 %v3036
    %v3038 = vpop.f32.mrb[0].mxu0
    %v3039 = vadd.f32 0.0, %v3038
    %v3040 = vpop.f32.mrb[0].mxu0
    %3041 = vmatprep.mubr.f32.mxu0 0.0
    %v3042 = vand.u32 %v2911, 4294901760
    %v3043 = vsub.f32 %v2911, %v3042
    %v3044 = vand.u32 %v3043, 4294901760
    %v3045 = vsub.f32 %v3043, %v3044
    %v3046 = vand.u32 %v3045, 4294901760
    %3047 = vmatmul.mubr.f32.gmra.mrb[0].mxu0 %v3046
    %v3048 = vpop.f32.mrb[0].mxu0
    %v3049 = vadd.f32 0.0, %v3048
    %v3050 = vpop.f32.mrb[0].mxu0
    %3051 = vmatprep.mubr.f32.mxu0 0.0
    %v3052 = vand.u32 %v2912, 4294901760
    %v3053 = vsub.f32 %v2912, %v3052
    %v3054 = vand.u32 %v3053, 4294901760
    %v3055 = vsub.f32 %v3053, %v3054
    %v3056 = vand.u32 %v3055, 4294901760
    %3057 = vmatmul.mubr.f32.gmra.mrb[0].mxu0 %v3056
    %v3058 = vpop.f32.mrb[0].mxu0
    %v3059 = vadd.f32 0.0, %v3058
    %v3060 = vpop.f32.mrb[0].mxu0
    %3061 = vmatprep.mubr.f32.mxu0 0.0
    %v3062 = vand.u32 %v2913, 4294901760
    %v3063 = vsub.f32 %v2913, %v3062
    %v3064 = vand.u32 %v3063, 4294901760
    %v3065 = vsub.f32 %v3063, %v3064
    %v3066 = vand.u32 %v3065, 4294901760
    %3067 = vmatmul.mubr.f32.gmra.mrb[0].mxu0 %v3066
    %v3068 = vpop.f32.mrb[0].mxu0
    %v3069 = vadd.f32 0.0, %v3068
    %v3070 = vpop.f32.mrb[0].mxu0
    %3071 = vmatprep.mubr.f32.mxu0 0.0
    %v3072 = vand.u32 %v2914, 4294901760
    %v3073 = vsub.f32 %v2914, %v3072
    %v3074 = vand.u32 %v3073, 4294901760
    %v3075 = vsub.f32 %v3073, %v3074
    %v3076 = vand.u32 %v3075, 4294901760
    %3077 = vmatmul.mubr.f32.gmra.mrb[0].mxu0 %v3076
    %v3078 = vpop.f32.mrb[0].mxu0
    %v3079 = vadd.f32 0.0, %v3078
    %v3080 = vpop.f32.mrb[0].mxu0
    %3081 = vmatprep.mubr.f32.mxu0 0.0
    %v3082 = vand.u32 %v2915, 4294901760
    %v3083 = vsub.f32 %v2915, %v3082
    %v3084 = vand.u32 %v3083, 4294901760
    %v3085 = vsub.f32 %v3083, %v3084
    %v3086 = vand.u32 %v3085, 4294901760
    %3087 = vmatmul.mubr.f32.gmra.mrb[0].mxu0 %v3086
    %v3088 = vpop.f32.mrb[0].mxu0
    %v3089 = vadd.f32 0.0, %v3088
    %v3090 = vpop.f32.mrb[0].mxu0
    %3091 = vmatprep.mubr.f32.mxu0 0.0
    %v3092 = vand.u32 %v2916, 4294901760
    %v3093 = vsub.f32 %v2916, %v3092
    %v3094 = vand.u32 %v3093, 4294901760
    %v3095 = vsub.f32 %v3093, %v3094
    %v3096 = vand.u32 %v3095, 4294901760
    %3097 = vmatmul.mubr.f32.gmra.mrb[0].mxu0 %v3096
    %v3098 = vpop.f32.mrb[0].mxu0
    %v3099 = vadd.f32 0.0, %v3098
    %v3100 = vpop.f32.mrb[0].mxu0
    %3101 = vmatprep.mubr.f32.mxu0 0.0
    %v3102 = vand.u32 %v2917, 4294901760
    %v3103 = vsub.f32 %v2917, %v3102
    %v3104 = vand.u32 %v3103, 4294901760
    %v3105 = vsub.f32 %v3103, %v3104
    %v3106 = vand.u32 %v3105, 4294901760
    %3107 = vmatmul.mubr.f32.gmra.mrb[0].mxu0 %v3106
    %v3108 = vpop.f32.mrb[0].mxu0
    %v3109 = vadd.f32 0.0, %v3108
    %v3110 = vpop.f32.mrb[0].mxu0
    %3111 = vmatprep.mubr.f32.mxu0 0.0
    %v3112 = vand.u32 %v2918, 4294901760
    %v3113 = vsub.f32 %v2918, %v3112
    %v3114 = vand.u32 %v3113, 4294901760
    %v3115 = vsub.f32 %v3113, %v3114
    %v3116 = vand.u32 %v3115, 4294901760
    %3117 = vmatmul.mubr.f32.gmra.mrb[0].mxu0 %v3116
    %v3118 = vpop.f32.mrb[0].mxu0
    %v3119 = vadd.f32 0.0, %v3118
    %v3120 = vpop.f32.mrb[0].mxu0
    %3121 = vmatprep.mubr.f32.mxu0 0.0
    %v3122 = vand.u32 %v2919, 4294901760
    %v3123 = vsub.f32 %v2919, %v3122
    %v3124 = vand.u32 %v3123, 4294901760
    %v3125 = vsub.f32 %v3123, %v3124
    %v3126 = vand.u32 %v3125, 4294901760
    %3127 = vmatmul.mubr.f32.gmra.mrb[0].mxu0 %v3126
    %v3128 = vpop.f32.mrb[0].mxu0
    %v3129 = vadd.f32 0.0, %v3128
    %v3130 = vpop.f32.mrb[0].mxu0
    %3131 = vmatprep.mubr.f32.mxu0 0.0
    %v3132 = vand.u32 %v2920, 4294901760
    %v3133 = vsub.f32 %v2920, %v3132
    %v3134 = vand.u32 %v3133, 4294901760
    %v3135 = vsub.f32 %v3133, %v3134
    %v3136 = vand.u32 %v3135, 4294901760
    %3137 = vmatmul.mubr.f32.gmra.mrb[0].mxu0 %v3136
    %v3138 = vpop.f32.mrb[0].mxu0
    %v3139 = vadd.f32 0.0, %v3138
    %v3140 = vpop.f32.mrb[0].mxu0
    %3141 = vmatprep.mubr.f32.mxu0 0.0
    %v3142 = vand.u32 %v2921, 4294901760
    %v3143 = vsub.f32 %v2921, %v3142
    %v3144 = vand.u32 %v3143, 4294901760
    %v3145 = vsub.f32 %v3143, %v3144
    %v3146 = vand.u32 %v3145, 4294901760
    %3147 = vmatmul.mubr.f32.gmra.mrb[0].mxu0 %v3146
    %v3148 = vpop.f32.mrb[0].mxu0
    %v3149 = vadd.f32 0.0, %v3148
    %v3150 = vpop.f32.mrb[0].mxu0
    %3151 = vmatprep.mubr.f32.mxu0 0.0
    %v3152 = vand.u32 %v2922, 4294901760
    %v3153 = vsub.f32 %v2922, %v3152
    %v3154 = vand.u32 %v3153, 4294901760
    %v3155 = vsub.f32 %v3153, %v3154
    %v3156 = vand.u32 %v3155, 4294901760
    %3157 = vmatmul.mubr.f32.gmra.mrb[0].mxu0 %v3156
    %v3158 = vpop.f32.mrb[0].mxu0
    %v3159 = vadd.f32 0.0, %v3158
    %v3160 = vpop.f32.mrb[0].mxu0
    %3161 = vmatprep.mubr.f32.mxu0 0.0
    %v3162 = vand.u32 %v2923, 4294901760
    %v3163 = vsub.f32 %v2923, %v3162
    %v3164 = vand.u32 %v3163, 4294901760
    %v3165 = vsub.f32 %v3163, %v3164
    %v3166 = vand.u32 %v3165, 4294901760
    %3167 = vmatmul.mubr.f32.gmra.mrb[0].mxu0 %v3166
    %v3168 = vpop.f32.mrb[0].mxu0
    %v3169 = vadd.f32 0.0, %v3168
    %v3170 = vpop.f32.mrb[0].mxu0
    %3171 = vmatprep.mubr.f32.mxu0 0.0
    %v3172 = vand.u32 %v2924, 4294901760
    %v3173 = vsub.f32 %v2924, %v3172
    %v3174 = vand.u32 %v3173, 4294901760
    %v3175 = vsub.f32 %v3173, %v3174
    %v3176 = vand.u32 %v3175, 4294901760
    %3177 = vmatmul.mubr.f32.gmra.mrb[0].mxu0 %v3176
    %v3178 = vpop.f32.mrb[0].mxu0
    %v3179 = vadd.f32 0.0, %v3178
    %v3180 = vpop.f32.mrb[0].mxu0
    %3181 = vmatprep.mubr.f32.mxu0 0.0
    %v3182 = vand.u32 %v2925, 4294901760
    %v3183 = vsub.f32 %v2925, %v3182
    %v3184 = vand.u32 %v3183, 4294901760
    %v3185 = vsub.f32 %v3183, %v3184
    %v3186 = vand.u32 %v3185, 4294901760
    %3187 = vmatmul.mubr.f32.gmra.mrb[0].mxu0 %v3186
    %v3188 = vpop.f32.mrb[0].mxu0
    %v3189 = vadd.f32 0.0, %v3188
    %v3190 = vpop.f32.mrb[0].mxu0
    %3191 = vmatprep.mubr.f32.mxu0 0.0
    %v3192 = vand.u32 %v2926, 4294901760
    %v3193 = vsub.f32 %v2926, %v3192
    %v3194 = vand.u32 %v3193, 4294901760
    %v3195 = vsub.f32 %v3193, %v3194
    %v3196 = vand.u32 %v3195, 4294901760
    %3197 = vmatmul.mubr.f32.gmra.mrb[0].mxu0 %v3196
    %v3198 = vpop.f32.mrb[0].mxu0
    %v3199 = vadd.f32 0.0, %v3198
    %v3200 = vpop.f32.mrb[0].mxu0
    %3201 = vmatprep.mubr.f32.mxu0 0.0
    %v3202 = vand.u32 %v2927, 4294901760
    %v3203 = vsub.f32 %v2927, %v3202
    %v3204 = vand.u32 %v3203, 4294901760
    %v3205 = vsub.f32 %v3203, %v3204
    %v3206 = vand.u32 %v3205, 4294901760
    %3207 = vmatmul.mubr.f32.gmra.mrb[0].mxu0 %v3206
    %v3208 = vpop.f32.mrb[0].mxu0
    %v3209 = vadd.f32 0.0, %v3208
    %v3210 = vpop.f32.mrb[0].mxu0
    %3211 = vmatprep.mubr.f32.mxu0 0.0
    %v3212 = vand.u32 %v2928, 4294901760
    %v3213 = vsub.f32 %v2928, %v3212
    %v3214 = vand.u32 %v3213, 4294901760
    %v3215 = vsub.f32 %v3213, %v3214
    %v3216 = vand.u32 %v3215, 4294901760
    %3217 = vmatmul.mubr.f32.gmra.mrb[0].mxu0 %v3216
    %v3218 = vpop.f32.mrb[0].mxu0
    %v3219 = vadd.f32 0.0, %v3218
    %v3220 = vpop.f32.mrb[0].mxu0
    %3221 = vmatprep.mubr.f32.mxu0 0.0
    %v3222 = vand.u32 %v2929, 4294901760
    %v3223 = vsub.f32 %v2929, %v3222
    %v3224 = vand.u32 %v3223, 4294901760
    %v3225 = vsub.f32 %v3223, %v3224
    %v3226 = vand.u32 %v3225, 4294901760
    %3227 = vmatmul.mubr.f32.gmra.mrb[0].mxu0 %v3226
    %v3228 = vpop.f32.mrb[0].mxu0
    %v3229 = vadd.f32 0.0, %v3228
    %v3230 = vpop.f32.mrb[0].mxu0
    %3231 = vmatprep.mubr.f32.mxu0 0.0
    %v3232 = vand.u32 %v2930, 4294901760
    %v3233 = vsub.f32 %v2930, %v3232
    %v3234 = vand.u32 %v3233, 4294901760
    %v3235 = vsub.f32 %v3233, %v3234
    %v3236 = vand.u32 %v3235, 4294901760
    %3237 = vmatmul.mubr.f32.gmra.mrb[0].mxu0 %v3236
    %v3238 = vpop.f32.mrb[0].mxu0
    %v3239 = vadd.f32 0.0, %v3238
    %v3240 = vpop.f32.mrb[0].mxu0
    %3241 = vmatprep.mubr.f32.mxu0 0.0
    %v3242 = vand.u32 %v2931, 4294901760
    %v3243 = vsub.f32 %v2931, %v3242
    %v3244 = vand.u32 %v3243, 4294901760
    %v3245 = vsub.f32 %v3243, %v3244
    %v3246 = vand.u32 %v3245, 4294901760
    %3247 = vmatmul.mubr.f32.gmra.mrb[0].mxu0 %v3246
    %v3248 = vpop.f32.mrb[0].mxu0
    %v3249 = vadd.f32 0.0, %v3248
    %v3250 = vpop.f32.mrb[0].mxu0
    %3251 = vmatprep.mubr.f32.mxu0 0.0
    %v3252 = vand.u32 %v2932, 4294901760
    %v3253 = vsub.f32 %v2932, %v3252
    %v3254 = vand.u32 %v3253, 4294901760
    %v3255 = vsub.f32 %v3253, %v3254
    %v3256 = vand.u32 %v3255, 4294901760
    %3257 = vmatmul.mubr.f32.gmra.mrb[0].mxu0 %v3256
    %v3258 = vpop.f32.mrb[0].mxu0
    %v3259 = vadd.f32 0.0, %v3258
    %v3260 = vpop.f32.mrb[0].mxu0
    %3261 = vmatprep.mubr.f32.mxu0 0.0
    %v3262 = vand.u32 %v2933, 4294901760
    %v3263 = vsub.f32 %v2933, %v3262
    %v3264 = vand.u32 %v3263, 4294901760
    %v3265 = vsub.f32 %v3263, %v3264
    %v3266 = vand.u32 %v3265, 4294901760
    %3267 = vmatmul.mubr.f32.gmra.mrb[0].mxu0 %v3266
    %v3268 = vpop.f32.mrb[0].mxu0
    %v3269 = vadd.f32 0.0, %v3268
    %v3270 = vpop.f32.mrb[0].mxu0
    %3271 = vmatprep.mubr.f32.mxu0 0.0
    %v3272 = vand.u32 %v2934, 4294901760
    %v3273 = vsub.f32 %v2934, %v3272
    %v3274 = vand.u32 %v3273, 4294901760
    %v3275 = vsub.f32 %v3273, %v3274
    %v3276 = vand.u32 %v3275, 4294901760
    %3277 = vmatmul.mubr.f32.gmra.mrb[0].mxu0 %v3276
    %v3278 = vpop.f32.mrb[0].mxu0
    %v3279 = vadd.f32 0.0, %v3278
    %v3280 = vpop.f32.mrb[0].mxu0
    %3281 = vmatprep.mubr.f32.mxu0 0.0
    %v3282 = vand.u32 %v2935, 4294901760
    %v3283 = vsub.f32 %v2935, %v3282
    %v3284 = vand.u32 %v3283, 4294901760
    %v3285 = vsub.f32 %v3283, %v3284
    %v3286 = vand.u32 %v3285, 4294901760
    %3287 = vmatmul.mubr.f32.gmra.mrb[0].mxu0 %v3286
    %v3288 = vpop.f32.mrb[0].mxu0
    %v3289 = vadd.f32 0.0, %v3288
    %v3290 = vpop.f32.mrb[0].mxu0
    %3291 = vmatprep.mubr.f32.mxu0 0.0
    %v3292 = vand.u32 %v2936, 4294901760
    %v3293 = vsub.f32 %v2936, %v3292
    %v3294 = vand.u32 %v3293, 4294901760
    %v3295 = vsub.f32 %v3293, %v3294
    %v3296 = vand.u32 %v3295, 4294901760
    %3297 = vmatmul.mubr.f32.gmra.mrb[0].mxu0 %v3296
    %v3298 = vpop.f32.mrb[0].mxu0
    %v3299 = vadd.f32 0.0, %v3298
    %v3300 = vpop.f32.mrb[0].mxu0
    %3301 = vmatprep.mubr.f32.mxu0 0.0
    %v3302 = vand.u32 %v2937, 4294901760
    %v3303 = vsub.f32 %v2937, %v3302
    %v3304 = vand.u32 %v3303, 4294901760
    %v3305 = vsub.f32 %v3303, %v3304
    %v3306 = vand.u32 %v3305, 4294901760
    %3307 = vmatmul.mubr.f32.gmra.mrb[0].mxu0 %v3306
    %v3308 = vpop.f32.mrb[0].mxu0
    %v3309 = vadd.f32 0.0, %v3308
    %v3310 = vpop.f32.mrb[0].mxu0
    %3311 = vmatprep.mubr.f32.mxu0 0.0
    %v3312 = vand.u32 %v2938, 4294901760
    %v3313 = vsub.f32 %v2938, %v3312
    %v3314 = vand.u32 %v3313, 4294901760
    %v3315 = vsub.f32 %v3313, %v3314
    %v3316 = vand.u32 %v3315, 4294901760
    %3317 = vmatmul.mubr.f32.gmra.mrb[0].mxu0 %v3316
    %v3318 = vpop.f32.mrb[0].mxu0
    %v3319 = vadd.f32 0.0, %v3318
    %v3320 = vpop.f32.mrb[0].mxu0
    %3321 = vmatprep.mubr.f32.mxu0 0.0
    %v3322 = vand.u32 %v2939, 4294901760
    %v3323 = vsub.f32 %v2939, %v3322
    %v3324 = vand.u32 %v3323, 4294901760
    %v3325 = vsub.f32 %v3323, %v3324
    %v3326 = vand.u32 %v3325, 4294901760
    %3327 = vmatmul.mubr.f32.gmra.mrb[0].mxu0 %v3326
    %v3328 = vpop.f32.mrb[0].mxu0
    %v3329 = vadd.f32 0.0, %v3328
    %v3330 = vpop.f32.mrb[0].mxu0
    %3331 = vmatprep.mubr.f32.mxu0 0.0
    %v3332 = vand.u32 %v2940, 4294901760
    %v3333 = vsub.f32 %v2940, %v3332
    %v3334 = vand.u32 %v3333, 4294901760
    %v3335 = vsub.f32 %v3333, %v3334
    %v3336 = vand.u32 %v3335, 4294901760
    %3337 = vmatmul.mubr.f32.gmra.mrb[0].mxu0 %v3336
    %v3338 = vpop.f32.mrb[0].mxu0
    %v3339 = vadd.f32 0.0, %v3338
    %v3340 = vpop.f32.mrb[0].mxu0
    %3341 = vdwg.mxu0
    %3342 = vmatprep.subr.mxu0 0.0
    %v3343 = vand.u32 %v60, 4294901760
    %v3344 = vsub.f32 %v60, %v3343
    %v3345 = vand.u32 %v3344, 4294901760
    %v3346 = vsub.f32 %v3344, %v3345
    %v3347 = vand.u32 %v3346, 4294901760
    %3348 = vmatpush1.msra.mxu0 %v3347
    %3349 = vmatprep.subr.mxu0 0.0
    %v3350 = vand.u32 %v61, 4294901760
    %v3351 = vsub.f32 %v61, %v3350
    %v3352 = vand.u32 %v3351, 4294901760
    %v3353 = vsub.f32 %v3351, %v3352
    %v3354 = vand.u32 %v3353, 4294901760
    %3355 = vmatpush1.msra.mxu0 %v3354
    %3356 = vmatprep.subr.mxu0 0.0
    %v3357 = vand.u32 %v62, 4294901760
    %v3358 = vsub.f32 %v62, %v3357
    %v3359 = vand.u32 %v3358, 4294901760
    %v3360 = vsub.f32 %v3358, %v3359
    %v3361 = vand.u32 %v3360, 4294901760
    %3362 = vmatpush1.msra.mxu0 %v3361
    %3363 = vmatprep.subr.mxu0 0.0
    %v3364 = vand.u32 %v63, 4294901760
    %v3365 = vsub.f32 %v63, %v3364
    %v3366 = vand.u32 %v3365, 4294901760
    %v3367 = vsub.f32 %v3365, %v3366
    %v3368 = vand.u32 %v3367, 4294901760
    %3369 = vmatpush1.msra.mxu0 %v3368
    %3370 = vmatprep.subr.mxu0 0.0
    %v3371 = vand.u32 %v64, 4294901760
    %v3372 = vsub.f32 %v64, %v3371
    %v3373 = vand.u32 %v3372, 4294901760
    %v3374 = vsub.f32 %v3372, %v3373
    %v3375 = vand.u32 %v3374, 4294901760
    %3376 = vmatpush1.msra.mxu0 %v3375
    %3377 = vmatprep.subr.mxu0 0.0
    %v3378 = vand.u32 %v65, 4294901760
    %v3379 = vsub.f32 %v65, %v3378
    %v3380 = vand.u32 %v3379, 4294901760
    %v3381 = vsub.f32 %v3379, %v3380
    %v3382 = vand.u32 %v3381, 4294901760
    %3383 = vmatpush1.msra.mxu0 %v3382
    %3384 = vmatprep.subr.mxu0 0.0
    %v3385 = vand.u32 %v66, 4294901760
    %v3386 = vsub.f32 %v66, %v3385
    %v3387 = vand.u32 %v3386, 4294901760
    %v3388 = vsub.f32 %v3386, %v3387
    %v3389 = vand.u32 %v3388, 4294901760
    %3390 = vmatpush1.msra.mxu0 %v3389
    %3391 = vmatprep.subr.mxu0 0.0
    %v3392 = vand.u32 %v67, 4294901760
    %v3393 = vsub.f32 %v67, %v3392
    %v3394 = vand.u32 %v3393, 4294901760
    %v3395 = vsub.f32 %v3393, %v3394
    %v3396 = vand.u32 %v3395, 4294901760
    %3397 = vmatpush1.msra.mxu0 %v3396
    %3398 = vmatprep.subr.mxu0 0.0
    %v3399 = vand.u32 %v68, 4294901760
    %v3400 = vsub.f32 %v68, %v3399
    %v3401 = vand.u32 %v3400, 4294901760
    %v3402 = vsub.f32 %v3400, %v3401
    %v3403 = vand.u32 %v3402, 4294901760
    %3404 = vmatpush1.msra.mxu0 %v3403
    %3405 = vmatprep.subr.mxu0 0.0
    %v3406 = vand.u32 %v69, 4294901760
    %v3407 = vsub.f32 %v69, %v3406
    %v3408 = vand.u32 %v3407, 4294901760
    %v3409 = vsub.f32 %v3407, %v3408
    %v3410 = vand.u32 %v3409, 4294901760
    %3411 = vmatpush1.msra.mxu0 %v3410
    %3412 = vmatprep.subr.mxu0 0.0
    %v3413 = vand.u32 %v70, 4294901760
    %v3414 = vsub.f32 %v70, %v3413
    %v3415 = vand.u32 %v3414, 4294901760
    %v3416 = vsub.f32 %v3414, %v3415
    %v3417 = vand.u32 %v3416, 4294901760
    %3418 = vmatpush1.msra.mxu0 %v3417
    %3419 = vmatprep.subr.mxu0 0.0
    %v3420 = vand.u32 %v71, 4294901760
    %v3421 = vsub.f32 %v71, %v3420
    %v3422 = vand.u32 %v3421, 4294901760
    %v3423 = vsub.f32 %v3421, %v3422
    %v3424 = vand.u32 %v3423, 4294901760
    %3425 = vmatpush1.msra.mxu0 %v3424
    %3426 = vmatprep.subr.mxu0 0.0
    %v3427 = vand.u32 %v72, 4294901760
    %v3428 = vsub.f32 %v72, %v3427
    %v3429 = vand.u32 %v3428, 4294901760
    %v3430 = vsub.f32 %v3428, %v3429
    %v3431 = vand.u32 %v3430, 4294901760
    %3432 = vmatpush1.msra.mxu0 %v3431
    %3433 = vmatprep.subr.mxu0 0.0
    %v3434 = vand.u32 %v73, 4294901760
    %v3435 = vsub.f32 %v73, %v3434
    %v3436 = vand.u32 %v3435, 4294901760
    %v3437 = vsub.f32 %v3435, %v3436
    %v3438 = vand.u32 %v3437, 4294901760
    %3439 = vmatpush1.msra.mxu0 %v3438
    %3440 = vmatprep.subr.mxu0 0.0
    %v3441 = vand.u32 %v74, 4294901760
    %v3442 = vsub.f32 %v74, %v3441
    %v3443 = vand.u32 %v3442, 4294901760
    %v3444 = vsub.f32 %v3442, %v3443
    %v3445 = vand.u32 %v3444, 4294901760
    %3446 = vmatpush1.msra.mxu0 %v3445
    %3447 = vmatprep.subr.mxu0 0.0
    %v3448 = vand.u32 %v75, 4294901760
    %v3449 = vsub.f32 %v75, %v3448
    %v3450 = vand.u32 %v3449, 4294901760
    %v3451 = vsub.f32 %v3449, %v3450
    %v3452 = vand.u32 %v3451, 4294901760
    %3453 = vmatpush1.msra.mxu0 %v3452
    %3454 = vmatprep.subr.mxu0 0.0
    %3455 = vmatpush1.msra.mxu0 0.0
    %3456 = vmatprep.subr.mxu0 0.0
    %3457 = vmatpush1.msra.mxu0 0.0
    %3458 = vmatprep.subr.mxu0 0.0
    %3459 = vmatpush1.msra.mxu0 0.0
    %3460 = vmatprep.subr.mxu0 0.0
    %3461 = vmatpush1.msra.mxu0 0.0
    %3462 = vmatprep.subr.mxu0 0.0
    %3463 = vmatpush1.msra.mxu0 0.0
    %3464 = vmatprep.subr.mxu0 0.0
    %3465 = vmatpush1.msra.mxu0 0.0
    %3466 = vmatprep.subr.mxu0 0.0
    %3467 = vmatpush1.msra.mxu0 0.0
    %3468 = vmatprep.subr.mxu0 0.0
    %3469 = vmatpush1.msra.mxu0 0.0
    %3470 = vmatprep.subr.mxu0 0.0
    %3471 = vmatpush1.msra.mxu0 0.0
    %3472 = vmatprep.subr.mxu0 0.0
    %3473 = vmatpush1.msra.mxu0 0.0
    %3474 = vmatprep.subr.mxu0 0.0
    %3475 = vmatpush1.msra.mxu0 0.0
    %3476 = vmatprep.subr.mxu0 0.0
    %3477 = vmatpush1.msra.mxu0 0.0
    %3478 = vmatprep.subr.mxu0 0.0
    %3479 = vmatpush1.msra.mxu0 0.0
    %3480 = vmatprep.subr.mxu0 0.0
    %3481 = vmatpush1.msra.mxu0 0.0
    %3482 = vmatprep.subr.mxu0 0.0
    %3483 = vmatpush1.msra.mxu0 0.0
    %3484 = vmatprep.subr.mxu0 0.0
    %3485 = vmatpush1.msra.mxu0 0.0
    %3486 = vmatprep.mubr.f32.mxu0 0.0
    %v3487 = vand.u32 %v2909, 4294901760
    %3488 = vmatmul.mubr.f32.gmra.mrb[0].mxu0 %v3487
    %v3489 = vpop.f32.mrb[0].mxu0
    %v3490 = vadd.f32 %v3029, %v3489
    %v3491 = vpop.f32.mrb[0].mxu0
    %3492 = vmatprep.mubr.f32.mxu0 0.0
    %v3493 = vand.u32 %v2910, 4294901760
    %3494 = vmatmul.mubr.f32.gmra.mrb[0].mxu0 %v3493
    %v3495 = vpop.f32.mrb[0].mxu0
    %v3496 = vadd.f32 %v3039, %v3495
    %v3497 = vpop.f32.mrb[0].mxu0
    %3498 = vmatprep.mubr.f32.mxu0 0.0
    %v3499 = vand.u32 %v2911, 4294901760
    %3500 = vmatmul.mubr.f32.gmra.mrb[0].mxu0 %v3499
    %v3501 = vpop.f32.mrb[0].mxu0
    %v3502 = vadd.f32 %v3049, %v3501
    %v3503 = vpop.f32.mrb[0].mxu0
    %3504 = vmatprep.mubr.f32.mxu0 0.0
    %v3505 = vand.u32 %v2912, 4294901760
    %3506 = vmatmul.mubr.f32.gmra.mrb[0].mxu0 %v3505
    %v3507 = vpop.f32.mrb[0].mxu0
    %v3508 = vadd.f32 %v3059, %v3507
    %v3509 = vpop.f32.mrb[0].mxu0
    %3510 = vmatprep.mubr.f32.mxu0 0.0
    %v3511 = vand.u32 %v2913, 4294901760
    %3512 = vmatmul.mubr.f32.gmra.mrb[0].mxu0 %v3511
    %v3513 = vpop.f32.mrb[0].mxu0
    %v3514 = vadd.f32 %v3069, %v3513
    %v3515 = vpop.f32.mrb[0].mxu0
    %3516 = vmatprep.mubr.f32.mxu0 0.0
    %v3517 = vand.u32 %v2914, 4294901760
    %3518 = vmatmul.mubr.f32.gmra.mrb[0].mxu0 %v3517
    %v3519 = vpop.f32.mrb[0].mxu0
    %v3520 = vadd.f32 %v3079, %v3519
    %v3521 = vpop.f32.mrb[0].mxu0
    %3522 = vmatprep.mubr.f32.mxu0 0.0
    %v3523 = vand.u32 %v2915, 4294901760
    %3524 = vmatmul.mubr.f32.gmra.mrb[0].mxu0 %v3523
    %v3525 = vpop.f32.mrb[0].mxu0
    %v3526 = vadd.f32 %v3089, %v3525
    %v3527 = vpop.f32.mrb[0].mxu0
    %3528 = vmatprep.mubr.f32.mxu0 0.0
    %v3529 = vand.u32 %v2916, 4294901760
    %3530 = vmatmul.mubr.f32.gmra.mrb[0].mxu0 %v3529
    %v3531 = vpop.f32.mrb[0].mxu0
    %v3532 = vadd.f32 %v3099, %v3531
    %v3533 = vpop.f32.mrb[0].mxu0
    %3534 = vmatprep.mubr.f32.mxu0 0.0
    %v3535 = vand.u32 %v2917, 4294901760
    %3536 = vmatmul.mubr.f32.gmra.mrb[0].mxu0 %v3535
    %v3537 = vpop.f32.mrb[0].mxu0
    %v3538 = vadd.f32 %v3109, %v3537
    %v3539 = vpop.f32.mrb[0].mxu0
    %3540 = vmatprep.mubr.f32.mxu0 0.0
    %v3541 = vand.u32 %v2918, 4294901760
    %3542 = vmatmul.mubr.f32.gmra.mrb[0].mxu0 %v3541
    %v3543 = vpop.f32.mrb[0].mxu0
    %v3544 = vadd.f32 %v3119, %v3543
    %v3545 = vpop.f32.mrb[0].mxu0
    %3546 = vmatprep.mubr.f32.mxu0 0.0
    %v3547 = vand.u32 %v2919, 4294901760
    %3548 = vmatmul.mubr.f32.gmra.mrb[0].mxu0 %v3547
    %v3549 = vpop.f32.mrb[0].mxu0
    %v3550 = vadd.f32 %v3129, %v3549
    %v3551 = vpop.f32.mrb[0].mxu0
    %3552 = vmatprep.mubr.f32.mxu0 0.0
    %v3553 = vand.u32 %v2920, 4294901760
    %3554 = vmatmul.mubr.f32.gmra.mrb[0].mxu0 %v3553
    %v3555 = vpop.f32.mrb[0].mxu0
    %v3556 = vadd.f32 %v3139, %v3555
    %v3557 = vpop.f32.mrb[0].mxu0
    %3558 = vmatprep.mubr.f32.mxu0 0.0
    %v3559 = vand.u32 %v2921, 4294901760
    %3560 = vmatmul.mubr.f32.gmra.mrb[0].mxu0 %v3559
    %v3561 = vpop.f32.mrb[0].mxu0
    %v3562 = vadd.f32 %v3149, %v3561
    %v3563 = vpop.f32.mrb[0].mxu0
    %3564 = vmatprep.mubr.f32.mxu0 0.0
    %v3565 = vand.u32 %v2922, 4294901760
    %3566 = vmatmul.mubr.f32.gmra.mrb[0].mxu0 %v3565
    %v3567 = vpop.f32.mrb[0].mxu0
    %v3568 = vadd.f32 %v3159, %v3567
    %v3569 = vpop.f32.mrb[0].mxu0
    %3570 = vmatprep.mubr.f32.mxu0 0.0
    %v3571 = vand.u32 %v2923, 4294901760
    %3572 = vmatmul.mubr.f32.gmra.mrb[0].mxu0 %v3571
    %v3573 = vpop.f32.mrb[0].mxu0
    %v3574 = vadd.f32 %v3169, %v3573
    %v3575 = vpop.f32.mrb[0].mxu0
    %3576 = vmatprep.mubr.f32.mxu0 0.0
    %v3577 = vand.u32 %v2924, 4294901760
    %3578 = vmatmul.mubr.f32.gmra.mrb[0].mxu0 %v3577
    %v3579 = vpop.f32.mrb[0].mxu0
    %v3580 = vadd.f32 %v3179, %v3579
    %v3581 = vpop.f32.mrb[0].mxu0
    %3582 = vmatprep.mubr.f32.mxu0 0.0
    %v3583 = vand.u32 %v2925, 4294901760
    %3584 = vmatmul.mubr.f32.gmra.mrb[0].mxu0 %v3583
    %v3585 = vpop.f32.mrb[0].mxu0
    %v3586 = vadd.f32 %v3189, %v3585
    %v3587 = vpop.f32.mrb[0].mxu0
    %3588 = vmatprep.mubr.f32.mxu0 0.0
    %v3589 = vand.u32 %v2926, 4294901760
    %3590 = vmatmul.mubr.f32.gmra.mrb[0].mxu0 %v3589
    %v3591 = vpop.f32.mrb[0].mxu0
    %v3592 = vadd.f32 %v3199, %v3591
    %v3593 = vpop.f32.mrb[0].mxu0
    %3594 = vmatprep.mubr.f32.mxu0 0.0
    %v3595 = vand.u32 %v2927, 4294901760
    %3596 = vmatmul.mubr.f32.gmra.mrb[0].mxu0 %v3595
    %v3597 = vpop.f32.mrb[0].mxu0
    %v3598 = vadd.f32 %v3209, %v3597
    %v3599 = vpop.f32.mrb[0].mxu0
    %3600 = vmatprep.mubr.f32.mxu0 0.0
    %v3601 = vand.u32 %v2928, 4294901760
    %3602 = vmatmul.mubr.f32.gmra.mrb[0].mxu0 %v3601
    %v3603 = vpop.f32.mrb[0].mxu0
    %v3604 = vadd.f32 %v3219, %v3603
    %v3605 = vpop.f32.mrb[0].mxu0
    %3606 = vmatprep.mubr.f32.mxu0 0.0
    %v3607 = vand.u32 %v2929, 4294901760
    %3608 = vmatmul.mubr.f32.gmra.mrb[0].mxu0 %v3607
    %v3609 = vpop.f32.mrb[0].mxu0
    %v3610 = vadd.f32 %v3229, %v3609
    %v3611 = vpop.f32.mrb[0].mxu0
    %3612 = vmatprep.mubr.f32.mxu0 0.0
    %v3613 = vand.u32 %v2930, 4294901760
    %3614 = vmatmul.mubr.f32.gmra.mrb[0].mxu0 %v3613
    %v3615 = vpop.f32.mrb[0].mxu0
    %v3616 = vadd.f32 %v3239, %v3615
    %v3617 = vpop.f32.mrb[0].mxu0
    %3618 = vmatprep.mubr.f32.mxu0 0.0
    %v3619 = vand.u32 %v2931, 4294901760
    %3620 = vmatmul.mubr.f32.gmra.mrb[0].mxu0 %v3619
    %v3621 = vpop.f32.mrb[0].mxu0
    %v3622 = vadd.f32 %v3249, %v3621
    %v3623 = vpop.f32.mrb[0].mxu0
    %3624 = vmatprep.mubr.f32.mxu0 0.0
    %v3625 = vand.u32 %v2932, 4294901760
    %3626 = vmatmul.mubr.f32.gmra.mrb[0].mxu0 %v3625
    %v3627 = vpop.f32.mrb[0].mxu0
    %v3628 = vadd.f32 %v3259, %v3627
    %v3629 = vpop.f32.mrb[0].mxu0
    %3630 = vmatprep.mubr.f32.mxu0 0.0
    %v3631 = vand.u32 %v2933, 4294901760
    %3632 = vmatmul.mubr.f32.gmra.mrb[0].mxu0 %v3631
    %v3633 = vpop.f32.mrb[0].mxu0
    %v3634 = vadd.f32 %v3269, %v3633
    %v3635 = vpop.f32.mrb[0].mxu0
    %3636 = vmatprep.mubr.f32.mxu0 0.0
    %v3637 = vand.u32 %v2934, 4294901760
    %3638 = vmatmul.mubr.f32.gmra.mrb[0].mxu0 %v3637
    %v3639 = vpop.f32.mrb[0].mxu0
    %v3640 = vadd.f32 %v3279, %v3639
    %v3641 = vpop.f32.mrb[0].mxu0
    %3642 = vmatprep.mubr.f32.mxu0 0.0
    %v3643 = vand.u32 %v2935, 4294901760
    %3644 = vmatmul.mubr.f32.gmra.mrb[0].mxu0 %v3643
    %v3645 = vpop.f32.mrb[0].mxu0
    %v3646 = vadd.f32 %v3289, %v3645
    %v3647 = vpop.f32.mrb[0].mxu0
    %3648 = vmatprep.mubr.f32.mxu0 0.0
    %v3649 = vand.u32 %v2936, 4294901760
    %3650 = vmatmul.mubr.f32.gmra.mrb[0].mxu0 %v3649
    %v3651 = vpop.f32.mrb[0].mxu0
    %v3652 = vadd.f32 %v3299, %v3651
    %v3653 = vpop.f32.mrb[0].mxu0
    %3654 = vmatprep.mubr.f32.mxu0 0.0
    %v3655 = vand.u32 %v2937, 4294901760
    %3656 = vmatmul.mubr.f32.gmra.mrb[0].mxu0 %v3655
    %v3657 = vpop.f32.mrb[0].mxu0
    %v3658 = vadd.f32 %v3309, %v3657
    %v3659 = vpop.f32.mrb[0].mxu0
    %3660 = vmatprep.mubr.f32.mxu0 0.0
    %v3661 = vand.u32 %v2938, 4294901760
    %3662 = vmatmul.mubr.f32.gmra.mrb[0].mxu0 %v3661
    %v3663 = vpop.f32.mrb[0].mxu0
    %v3664 = vadd.f32 %v3319, %v3663
    %v3665 = vpop.f32.mrb[0].mxu0
    %3666 = vmatprep.mubr.f32.mxu0 0.0
    %v3667 = vand.u32 %v2939, 4294901760
    %3668 = vmatmul.mubr.f32.gmra.mrb[0].mxu0 %v3667
    %v3669 = vpop.f32.mrb[0].mxu0
    %v3670 = vadd.f32 %v3329, %v3669
    %v3671 = vpop.f32.mrb[0].mxu0
    %3672 = vmatprep.mubr.f32.mxu0 0.0
    %v3673 = vand.u32 %v2940, 4294901760
    %3674 = vmatmul.mubr.f32.gmra.mrb[0].mxu0 %v3673
    %v3675 = vpop.f32.mrb[0].mxu0
    %v3676 = vadd.f32 %v3339, %v3675
    %v3677 = vpop.f32.mrb[0].mxu0
    %3678 = vdwg.mxu0
    %3679 = vmatprep.subr.mxu0 0.0
    %v3680 = vand.u32 %v60, 4294901760
    %v3681 = vsub.f32 %v60, %v3680
    %3682 = vmatpush1.msra.mxu0 %v3681
    %3683 = vmatprep.subr.mxu0 0.0
    %v3684 = vand.u32 %v61, 4294901760
    %v3685 = vsub.f32 %v61, %v3684
    %3686 = vmatpush1.msra.mxu0 %v3685
    %3687 = vmatprep.subr.mxu0 0.0
    %v3688 = vand.u32 %v62, 4294901760
    %v3689 = vsub.f32 %v62, %v3688
    %3690 = vmatpush1.msra.mxu0 %v3689
    %3691 = vmatprep.subr.mxu0 0.0
    %v3692 = vand.u32 %v63, 4294901760
    %v3693 = vsub.f32 %v63, %v3692
    %3694 = vmatpush1.msra.mxu0 %v3693
    %3695 = vmatprep.subr.mxu0 0.0
    %v3696 = vand.u32 %v64, 4294901760
    %v3697 = vsub.f32 %v64, %v3696
    %3698 = vmatpush1.msra.mxu0 %v3697
    %3699 = vmatprep.subr.mxu0 0.0
    %v3700 = vand.u32 %v65, 4294901760
    %v3701 = vsub.f32 %v65, %v3700
    %3702 = vmatpush1.msra.mxu0 %v3701
    %3703 = vmatprep.subr.mxu0 0.0
    %v3704 = vand.u32 %v66, 4294901760
    %v3705 = vsub.f32 %v66, %v3704
    %3706 = vmatpush1.msra.mxu0 %v3705
    %3707 = vmatprep.subr.mxu0 0.0
    %v3708 = vand.u32 %v67, 4294901760
    %v3709 = vsub.f32 %v67, %v3708
    %3710 = vmatpush1.msra.mxu0 %v3709
    %3711 = vmatprep.subr.mxu0 0.0
    %v3712 = vand.u32 %v68, 4294901760
    %v3713 = vsub.f32 %v68, %v3712
    %3714 = vmatpush1.msra.mxu0 %v3713
    %3715 = vmatprep.subr.mxu0 0.0
    %v3716 = vand.u32 %v69, 4294901760
    %v3717 = vsub.f32 %v69, %v3716
    %3718 = vmatpush1.msra.mxu0 %v3717
    %3719 = vmatprep.subr.mxu0 0.0
    %v3720 = vand.u32 %v70, 4294901760
    %v3721 = vsub.f32 %v70, %v3720
    %3722 = vmatpush1.msra.mxu0 %v3721
    %3723 = vmatprep.subr.mxu0 0.0
    %v3724 = vand.u32 %v71, 4294901760
    %v3725 = vsub.f32 %v71, %v3724
    %3726 = vmatpush1.msra.mxu0 %v3725
    %3727 = vmatprep.subr.mxu0 0.0
    %v3728 = vand.u32 %v72, 4294901760
    %v3729 = vsub.f32 %v72, %v3728
    %3730 = vmatpush1.msra.mxu0 %v3729
    %3731 = vmatprep.subr.mxu0 0.0
    %v3732 = vand.u32 %v73, 4294901760
    %v3733 = vsub.f32 %v73, %v3732
    %3734 = vmatpush1.msra.mxu0 %v3733
    %3735 = vmatprep.subr.mxu0 0.0
    %v3736 = vand.u32 %v74, 4294901760
    %v3737 = vsub.f32 %v74, %v3736
    %3738 = vmatpush1.msra.mxu0 %v3737
    %3739 = vmatprep.subr.mxu0 0.0
    %v3740 = vand.u32 %v75, 4294901760
    %v3741 = vsub.f32 %v75, %v3740
    %3742 = vmatpush1.msra.mxu0 %v3741
    %3743 = vmatprep.subr.mxu0 0.0
    %3744 = vmatpush1.msra.mxu0 0.0
    %3745 = vmatprep.subr.mxu0 0.0
    %3746 = vmatpush1.msra.mxu0 0.0
    %3747 = vmatprep.subr.mxu0 0.0
    %3748 = vmatpush1.msra.mxu0 0.0
    %3749 = vmatprep.subr.mxu0 0.0
    %3750 = vmatpush1.msra.mxu0 0.0
    %3751 = vmatprep.subr.mxu0 0.0
    %3752 = vmatpush1.msra.mxu0 0.0
    %3753 = vmatprep.subr.mxu0 0.0
    %3754 = vmatpush1.msra.mxu0 0.0
    %3755 = vmatprep.subr.mxu0 0.0
    %3756 = vmatpush1.msra.mxu0 0.0
    %3757 = vmatprep.subr.mxu0 0.0
    %3758 = vmatpush1.msra.mxu0 0.0
    %3759 = vmatprep.subr.mxu0 0.0
    %3760 = vmatpush1.msra.mxu0 0.0
    %3761 = vmatprep.subr.mxu0 0.0
    %3762 = vmatpush1.msra.mxu0 0.0
    %3763 = vmatprep.subr.mxu0 0.0
    %3764 = vmatpush1.msra.mxu0 0.0
    %3765 = vmatprep.subr.mxu0 0.0
    %3766 = vmatpush1.msra.mxu0 0.0
    %3767 = vmatprep.subr.mxu0 0.0
    %3768 = vmatpush1.msra.mxu0 0.0
    %3769 = vmatprep.subr.mxu0 0.0
    %3770 = vmatpush1.msra.mxu0 0.0
    %3771 = vmatprep.subr.mxu0 0.0
    %3772 = vmatpush1.msra.mxu0 0.0
    %3773 = vmatprep.subr.mxu0 0.0
    %3774 = vmatpush1.msra.mxu0 0.0
    %3775 = vmatprep.mubr.f32.mxu0 0.0
    %v3776 = vand.u32 %v2909, 4294901760
    %v3777 = vsub.f32 %v2909, %v3776
    %3778 = vmatmul.mubr.f32.gmra.mrb[0].mxu0 %v3777
    %v3779 = vpop.f32.mrb[0].mxu0
    %v3780 = vadd.f32 %v3490, %v3779
    %v3781 = vpop.f32.mrb[0].mxu0
    %3782 = vmatprep.mubr.f32.mxu0 0.0
    %v3783 = vand.u32 %v2910, 4294901760
    %v3784 = vsub.f32 %v2910, %v3783
    %3785 = vmatmul.mubr.f32.gmra.mrb[0].mxu0 %v3784
    %v3786 = vpop.f32.mrb[0].mxu0
    %v3787 = vadd.f32 %v3496, %v3786
    %v3788 = vpop.f32.mrb[0].mxu0
    %3789 = vmatprep.mubr.f32.mxu0 0.0
    %v3790 = vand.u32 %v2911, 4294901760
    %v3791 = vsub.f32 %v2911, %v3790
    %3792 = vmatmul.mubr.f32.gmra.mrb[0].mxu0 %v3791
    %v3793 = vpop.f32.mrb[0].mxu0
    %v3794 = vadd.f32 %v3502, %v3793
    %v3795 = vpop.f32.mrb[0].mxu0
    %3796 = vmatprep.mubr.f32.mxu0 0.0
    %v3797 = vand.u32 %v2912, 4294901760
    %v3798 = vsub.f32 %v2912, %v3797
    %3799 = vmatmul.mubr.f32.gmra.mrb[0].mxu0 %v3798
    %v3800 = vpop.f32.mrb[0].mxu0
    %v3801 = vadd.f32 %v3508, %v3800
    %v3802 = vpop.f32.mrb[0].mxu0
    %3803 = vmatprep.mubr.f32.mxu0 0.0
    %v3804 = vand.u32 %v2913, 4294901760
    %v3805 = vsub.f32 %v2913, %v3804
    %3806 = vmatmul.mubr.f32.gmra.mrb[0].mxu0 %v3805
    %v3807 = vpop.f32.mrb[0].mxu0
    %v3808 = vadd.f32 %v3514, %v3807
    %v3809 = vpop.f32.mrb[0].mxu0
    %3810 = vmatprep.mubr.f32.mxu0 0.0
    %v3811 = vand.u32 %v2914, 4294901760
    %v3812 = vsub.f32 %v2914, %v3811
    %3813 = vmatmul.mubr.f32.gmra.mrb[0].mxu0 %v3812
    %v3814 = vpop.f32.mrb[0].mxu0
    %v3815 = vadd.f32 %v3520, %v3814
    %v3816 = vpop.f32.mrb[0].mxu0
    %3817 = vmatprep.mubr.f32.mxu0 0.0
    %v3818 = vand.u32 %v2915, 4294901760
    %v3819 = vsub.f32 %v2915, %v3818
    %3820 = vmatmul.mubr.f32.gmra.mrb[0].mxu0 %v3819
    %v3821 = vpop.f32.mrb[0].mxu0
    %v3822 = vadd.f32 %v3526, %v3821
    %v3823 = vpop.f32.mrb[0].mxu0
    %3824 = vmatprep.mubr.f32.mxu0 0.0
    %v3825 = vand.u32 %v2916, 4294901760
    %v3826 = vsub.f32 %v2916, %v3825
    %3827 = vmatmul.mubr.f32.gmra.mrb[0].mxu0 %v3826
    %v3828 = vpop.f32.mrb[0].mxu0
    %v3829 = vadd.f32 %v3532, %v3828
    %v3830 = vpop.f32.mrb[0].mxu0
    %3831 = vmatprep.mubr.f32.mxu0 0.0
    %v3832 = vand.u32 %v2917, 4294901760
    %v3833 = vsub.f32 %v2917, %v3832
    %3834 = vmatmul.mubr.f32.gmra.mrb[0].mxu0 %v3833
    %v3835 = vpop.f32.mrb[0].mxu0
    %v3836 = vadd.f32 %v3538, %v3835
    %v3837 = vpop.f32.mrb[0].mxu0
    %3838 = vmatprep.mubr.f32.mxu0 0.0
    %v3839 = vand.u32 %v2918, 4294901760
    %v3840 = vsub.f32 %v2918, %v3839
    %3841 = vmatmul.mubr.f32.gmra.mrb[0].mxu0 %v3840
    %v3842 = vpop.f32.mrb[0].mxu0
    %v3843 = vadd.f32 %v3544, %v3842
    %v3844 = vpop.f32.mrb[0].mxu0
    %3845 = vmatprep.mubr.f32.mxu0 0.0
    %v3846 = vand.u32 %v2919, 4294901760
    %v3847 = vsub.f32 %v2919, %v3846
    %3848 = vmatmul.mubr.f32.gmra.mrb[0].mxu0 %v3847
    %v3849 = vpop.f32.mrb[0].mxu0
    %v3850 = vadd.f32 %v3550, %v3849
    %v3851 = vpop.f32.mrb[0].mxu0
    %3852 = vmatprep.mubr.f32.mxu0 0.0
    %v3853 = vand.u32 %v2920, 4294901760
    %v3854 = vsub.f32 %v2920, %v3853
    %3855 = vmatmul.mubr.f32.gmra.mrb[0].mxu0 %v3854
    %v3856 = vpop.f32.mrb[0].mxu0
    %v3857 = vadd.f32 %v3556, %v3856
    %v3858 = vpop.f32.mrb[0].mxu0
    %3859 = vmatprep.mubr.f32.mxu0 0.0
    %v3860 = vand.u32 %v2921, 4294901760
    %v3861 = vsub.f32 %v2921, %v3860
    %3862 = vmatmul.mubr.f32.gmra.mrb[0].mxu0 %v3861
    %v3863 = vpop.f32.mrb[0].mxu0
    %v3864 = vadd.f32 %v3562, %v3863
    %v3865 = vpop.f32.mrb[0].mxu0
    %3866 = vmatprep.mubr.f32.mxu0 0.0
    %v3867 = vand.u32 %v2922, 4294901760
    %v3868 = vsub.f32 %v2922, %v3867
    %3869 = vmatmul.mubr.f32.gmra.mrb[0].mxu0 %v3868
    %v3870 = vpop.f32.mrb[0].mxu0
    %v3871 = vadd.f32 %v3568, %v3870
    %v3872 = vpop.f32.mrb[0].mxu0
    %3873 = vmatprep.mubr.f32.mxu0 0.0
    %v3874 = vand.u32 %v2923, 4294901760
    %v3875 = vsub.f32 %v2923, %v3874
    %3876 = vmatmul.mubr.f32.gmra.mrb[0].mxu0 %v3875
    %v3877 = vpop.f32.mrb[0].mxu0
    %v3878 = vadd.f32 %v3574, %v3877
    %v3879 = vpop.f32.mrb[0].mxu0
    %3880 = vmatprep.mubr.f32.mxu0 0.0
    %v3881 = vand.u32 %v2924, 4294901760
    %v3882 = vsub.f32 %v2924, %v3881
    %3883 = vmatmul.mubr.f32.gmra.mrb[0].mxu0 %v3882
    %v3884 = vpop.f32.mrb[0].mxu0
    %v3885 = vadd.f32 %v3580, %v3884
    %v3886 = vpop.f32.mrb[0].mxu0
    %3887 = vmatprep.mubr.f32.mxu0 0.0
    %v3888 = vand.u32 %v2925, 4294901760
    %v3889 = vsub.f32 %v2925, %v3888
    %3890 = vmatmul.mubr.f32.gmra.mrb[0].mxu0 %v3889
    %v3891 = vpop.f32.mrb[0].mxu0
    %v3892 = vadd.f32 %v3586, %v3891
    %v3893 = vpop.f32.mrb[0].mxu0
    %3894 = vmatprep.mubr.f32.mxu0 0.0
    %v3895 = vand.u32 %v2926, 4294901760
    %v3896 = vsub.f32 %v2926, %v3895
    %3897 = vmatmul.mubr.f32.gmra.mrb[0].mxu0 %v3896
    %v3898 = vpop.f32.mrb[0].mxu0
    %v3899 = vadd.f32 %v3592, %v3898
    %v3900 = vpop.f32.mrb[0].mxu0
    %3901 = vmatprep.mubr.f32.mxu0 0.0
    %v3902 = vand.u32 %v2927, 4294901760
    %v3903 = vsub.f32 %v2927, %v3902
    %3904 = vmatmul.mubr.f32.gmra.mrb[0].mxu0 %v3903
    %v3905 = vpop.f32.mrb[0].mxu0
    %v3906 = vadd.f32 %v3598, %v3905
    %v3907 = vpop.f32.mrb[0].mxu0
    %3908 = vmatprep.mubr.f32.mxu0 0.0
    %v3909 = vand.u32 %v2928, 4294901760
    %v3910 = vsub.f32 %v2928, %v3909
    %3911 = vmatmul.mubr.f32.gmra.mrb[0].mxu0 %v3910
    %v3912 = vpop.f32.mrb[0].mxu0
    %v3913 = vadd.f32 %v3604, %v3912
    %v3914 = vpop.f32.mrb[0].mxu0
    %3915 = vmatprep.mubr.f32.mxu0 0.0
    %v3916 = vand.u32 %v2929, 4294901760
    %v3917 = vsub.f32 %v2929, %v3916
    %3918 = vmatmul.mubr.f32.gmra.mrb[0].mxu0 %v3917
    %v3919 = vpop.f32.mrb[0].mxu0
    %v3920 = vadd.f32 %v3610, %v3919
    %v3921 = vpop.f32.mrb[0].mxu0
    %3922 = vmatprep.mubr.f32.mxu0 0.0
    %v3923 = vand.u32 %v2930, 4294901760
    %v3924 = vsub.f32 %v2930, %v3923
    %3925 = vmatmul.mubr.f32.gmra.mrb[0].mxu0 %v3924
    %v3926 = vpop.f32.mrb[0].mxu0
    %v3927 = vadd.f32 %v3616, %v3926
    %v3928 = vpop.f32.mrb[0].mxu0
    %3929 = vmatprep.mubr.f32.mxu0 0.0
    %v3930 = vand.u32 %v2931, 4294901760
    %v3931 = vsub.f32 %v2931, %v3930
    %3932 = vmatmul.mubr.f32.gmra.mrb[0].mxu0 %v3931
    %v3933 = vpop.f32.mrb[0].mxu0
    %v3934 = vadd.f32 %v3622, %v3933
    %v3935 = vpop.f32.mrb[0].mxu0
    %3936 = vmatprep.mubr.f32.mxu0 0.0
    %v3937 = vand.u32 %v2932, 4294901760
    %v3938 = vsub.f32 %v2932, %v3937
    %3939 = vmatmul.mubr.f32.gmra.mrb[0].mxu0 %v3938
    %v3940 = vpop.f32.mrb[0].mxu0
    %v3941 = vadd.f32 %v3628, %v3940
    %v3942 = vpop.f32.mrb[0].mxu0
    %3943 = vmatprep.mubr.f32.mxu0 0.0
    %v3944 = vand.u32 %v2933, 4294901760
    %v3945 = vsub.f32 %v2933, %v3944
    %3946 = vmatmul.mubr.f32.gmra.mrb[0].mxu0 %v3945
    %v3947 = vpop.f32.mrb[0].mxu0
    %v3948 = vadd.f32 %v3634, %v3947
    %v3949 = vpop.f32.mrb[0].mxu0
    %3950 = vmatprep.mubr.f32.mxu0 0.0
    %v3951 = vand.u32 %v2934, 4294901760
    %v3952 = vsub.f32 %v2934, %v3951
    %3953 = vmatmul.mubr.f32.gmra.mrb[0].mxu0 %v3952
    %v3954 = vpop.f32.mrb[0].mxu0
    %v3955 = vadd.f32 %v3640, %v3954
    %v3956 = vpop.f32.mrb[0].mxu0
    %3957 = vmatprep.mubr.f32.mxu0 0.0
    %v3958 = vand.u32 %v2935, 4294901760
    %v3959 = vsub.f32 %v2935, %v3958
    %3960 = vmatmul.mubr.f32.gmra.mrb[0].mxu0 %v3959
    %v3961 = vpop.f32.mrb[0].mxu0
    %v3962 = vadd.f32 %v3646, %v3961
    %v3963 = vpop.f32.mrb[0].mxu0
    %3964 = vmatprep.mubr.f32.mxu0 0.0
    %v3965 = vand.u32 %v2936, 4294901760
    %v3966 = vsub.f32 %v2936, %v3965
    %3967 = vmatmul.mubr.f32.gmra.mrb[0].mxu0 %v3966
    %v3968 = vpop.f32.mrb[0].mxu0
    %v3969 = vadd.f32 %v3652, %v3968
    %v3970 = vpop.f32.mrb[0].mxu0
    %3971 = vmatprep.mubr.f32.mxu0 0.0
    %v3972 = vand.u32 %v2937, 4294901760
    %v3973 = vsub.f32 %v2937, %v3972
    %3974 = vmatmul.mubr.f32.gmra.mrb[0].mxu0 %v3973
    %v3975 = vpop.f32.mrb[0].mxu0
    %v3976 = vadd.f32 %v3658, %v3975
    %v3977 = vpop.f32.mrb[0].mxu0
    %3978 = vmatprep.mubr.f32.mxu0 0.0
    %v3979 = vand.u32 %v2938, 4294901760
    %v3980 = vsub.f32 %v2938, %v3979
    %3981 = vmatmul.mubr.f32.gmra.mrb[0].mxu0 %v3980
    %v3982 = vpop.f32.mrb[0].mxu0
    %v3983 = vadd.f32 %v3664, %v3982
    %v3984 = vpop.f32.mrb[0].mxu0
    %3985 = vmatprep.mubr.f32.mxu0 0.0
    %v3986 = vand.u32 %v2939, 4294901760
    %v3987 = vsub.f32 %v2939, %v3986
    %3988 = vmatmul.mubr.f32.gmra.mrb[0].mxu0 %v3987
    %v3989 = vpop.f32.mrb[0].mxu0
    %v3990 = vadd.f32 %v3670, %v3989
    %v3991 = vpop.f32.mrb[0].mxu0
    %3992 = vmatprep.mubr.f32.mxu0 0.0
    %v3993 = vand.u32 %v2940, 4294901760
    %v3994 = vsub.f32 %v2940, %v3993
    %3995 = vmatmul.mubr.f32.gmra.mrb[0].mxu0 %v3994
    %v3996 = vpop.f32.mrb[0].mxu0
    %v3997 = vadd.f32 %v3676, %v3996
    %v3998 = vpop.f32.mrb[0].mxu0
    %3999 = vdwg.mxu0
    %4000 = vmatprep.subr.mxu0 0.0
    %v4001 = vand.u32 %v60, 4294901760
    %4002 = vmatpush1.msra.mxu0 %v4001
    %4003 = vmatprep.subr.mxu0 0.0
    %v4004 = vand.u32 %v61, 4294901760
    %4005 = vmatpush1.msra.mxu0 %v4004
    %4006 = vmatprep.subr.mxu0 0.0
    %v4007 = vand.u32 %v62, 4294901760
    %4008 = vmatpush1.msra.mxu0 %v4007
    %4009 = vmatprep.subr.mxu0 0.0
    %v4010 = vand.u32 %v63, 4294901760
    %4011 = vmatpush1.msra.mxu0 %v4010
    %4012 = vmatprep.subr.mxu0 0.0
    %v4013 = vand.u32 %v64, 4294901760
    %4014 = vmatpush1.msra.mxu0 %v4013
    %4015 = vmatprep.subr.mxu0 0.0
    %v4016 = vand.u32 %v65, 4294901760
    %4017 = vmatpush1.msra.mxu0 %v4016
    %4018 = vmatprep.subr.mxu0 0.0
    %v4019 = vand.u32 %v66, 4294901760
    %4020 = vmatpush1.msra.mxu0 %v4019
    %4021 = vmatprep.subr.mxu0 0.0
    %v4022 = vand.u32 %v67, 4294901760
    %4023 = vmatpush1.msra.mxu0 %v4022
    %4024 = vmatprep.subr.mxu0 0.0
    %v4025 = vand.u32 %v68, 4294901760
    %4026 = vmatpush1.msra.mxu0 %v4025
    %4027 = vmatprep.subr.mxu0 0.0
    %v4028 = vand.u32 %v69, 4294901760
    %4029 = vmatpush1.msra.mxu0 %v4028
    %4030 = vmatprep.subr.mxu0 0.0
    %v4031 = vand.u32 %v70, 4294901760
    %4032 = vmatpush1.msra.mxu0 %v4031
    %4033 = vmatprep.subr.mxu0 0.0
    %v4034 = vand.u32 %v71, 4294901760
    %4035 = vmatpush1.msra.mxu0 %v4034
    %4036 = vmatprep.subr.mxu0 0.0
    %v4037 = vand.u32 %v72, 4294901760
    %4038 = vmatpush1.msra.mxu0 %v4037
    %4039 = vmatprep.subr.mxu0 0.0
    %v4040 = vand.u32 %v73, 4294901760
    %4041 = vmatpush1.msra.mxu0 %v4040
    %4042 = vmatprep.subr.mxu0 0.0
    %v4043 = vand.u32 %v74, 4294901760
    %4044 = vmatpush1.msra.mxu0 %v4043
    %4045 = vmatprep.subr.mxu0 0.0
    %v4046 = vand.u32 %v75, 4294901760
    %4047 = vmatpush1.msra.mxu0 %v4046
    %4048 = vmatprep.subr.mxu0 0.0
    %4049 = vmatpush1.msra.mxu0 0.0
    %4050 = vmatprep.subr.mxu0 0.0
    %4051 = vmatpush1.msra.mxu0 0.0
    %4052 = vmatprep.subr.mxu0 0.0
    %4053 = vmatpush1.msra.mxu0 0.0
    %4054 = vmatprep.subr.mxu0 0.0
    %4055 = vmatpush1.msra.mxu0 0.0
    %4056 = vmatprep.subr.mxu0 0.0
    %4057 = vmatpush1.msra.mxu0 0.0
    %4058 = vmatprep.subr.mxu0 0.0
    %4059 = vmatpush1.msra.mxu0 0.0
    %4060 = vmatprep.subr.mxu0 0.0
    %4061 = vmatpush1.msra.mxu0 0.0
    %4062 = vmatprep.subr.mxu0 0.0
    %4063 = vmatpush1.msra.mxu0 0.0
    %4064 = vmatprep.subr.mxu0 0.0
    %4065 = vmatpush1.msra.mxu0 0.0
    %4066 = vmatprep.subr.mxu0 0.0
    %4067 = vmatpush1.msra.mxu0 0.0
    %4068 = vmatprep.subr.mxu0 0.0
    %4069 = vmatpush1.msra.mxu0 0.0
    %4070 = vmatprep.subr.mxu0 0.0
    %4071 = vmatpush1.msra.mxu0 0.0
    %4072 = vmatprep.subr.mxu0 0.0
    %4073 = vmatpush1.msra.mxu0 0.0
    %4074 = vmatprep.subr.mxu0 0.0
    %4075 = vmatpush1.msra.mxu0 0.0
    %4076 = vmatprep.subr.mxu0 0.0
    %4077 = vmatpush1.msra.mxu0 0.0
    %4078 = vmatprep.subr.mxu0 0.0
    %4079 = vmatpush1.msra.mxu0 0.0
    %4080 = vmatprep.mubr.f32.mxu0 0.0
    %v4081 = vand.u32 %v2909, 4294901760
    %v4082 = vsub.f32 %v2909, %v4081
    %v4083 = vand.u32 %v4082, 4294901760
    %4084 = vmatmul.mubr.f32.gmra.mrb[0].mxu0 %v4083
    %v4085 = vpop.f32.mrb[0].mxu0
    %v4086 = vadd.f32 %v3780, %v4085
    %v4087 = vpop.f32.mrb[0].mxu0
    %4088 = vmatprep.mubr.f32.mxu0 0.0
    %v4089 = vand.u32 %v2910, 4294901760
    %v4090 = vsub.f32 %v2910, %v4089
    %v4091 = vand.u32 %v4090, 4294901760
    %4092 = vmatmul.mubr.f32.gmra.mrb[0].mxu0 %v4091
    %v4093 = vpop.f32.mrb[0].mxu0
    %v4094 = vadd.f32 %v3787, %v4093
    %v4095 = vpop.f32.mrb[0].mxu0
    %4096 = vmatprep.mubr.f32.mxu0 0.0
    %v4097 = vand.u32 %v2911, 4294901760
    %v4098 = vsub.f32 %v2911, %v4097
    %v4099 = vand.u32 %v4098, 4294901760
    %4100 = vmatmul.mubr.f32.gmra.mrb[0].mxu0 %v4099
    %v4101 = vpop.f32.mrb[0].mxu0
    %v4102 = vadd.f32 %v3794, %v4101
    %v4103 = vpop.f32.mrb[0].mxu0
    %4104 = vmatprep.mubr.f32.mxu0 0.0
    %v4105 = vand.u32 %v2912, 4294901760
    %v4106 = vsub.f32 %v2912, %v4105
    %v4107 = vand.u32 %v4106, 4294901760
    %4108 = vmatmul.mubr.f32.gmra.mrb[0].mxu0 %v4107
    %v4109 = vpop.f32.mrb[0].mxu0
    %v4110 = vadd.f32 %v3801, %v4109
    %v4111 = vpop.f32.mrb[0].mxu0
    %4112 = vmatprep.mubr.f32.mxu0 0.0
    %v4113 = vand.u32 %v2913, 4294901760
    %v4114 = vsub.f32 %v2913, %v4113
    %v4115 = vand.u32 %v4114, 4294901760
    %4116 = vmatmul.mubr.f32.gmra.mrb[0].mxu0 %v4115
    %v4117 = vpop.f32.mrb[0].mxu0
    %v4118 = vadd.f32 %v3808, %v4117
    %v4119 = vpop.f32.mrb[0].mxu0
    %4120 = vmatprep.mubr.f32.mxu0 0.0
    %v4121 = vand.u32 %v2914, 4294901760
    %v4122 = vsub.f32 %v2914, %v4121
    %v4123 = vand.u32 %v4122, 4294901760
    %4124 = vmatmul.mubr.f32.gmra.mrb[0].mxu0 %v4123
    %v4125 = vpop.f32.mrb[0].mxu0
    %v4126 = vadd.f32 %v3815, %v4125
    %v4127 = vpop.f32.mrb[0].mxu0
    %4128 = vmatprep.mubr.f32.mxu0 0.0
    %v4129 = vand.u32 %v2915, 4294901760
    %v4130 = vsub.f32 %v2915, %v4129
    %v4131 = vand.u32 %v4130, 4294901760
    %4132 = vmatmul.mubr.f32.gmra.mrb[0].mxu0 %v4131
    %v4133 = vpop.f32.mrb[0].mxu0
    %v4134 = vadd.f32 %v3822, %v4133
    %v4135 = vpop.f32.mrb[0].mxu0
    %4136 = vmatprep.mubr.f32.mxu0 0.0
    %v4137 = vand.u32 %v2916, 4294901760
    %v4138 = vsub.f32 %v2916, %v4137
    %v4139 = vand.u32 %v4138, 4294901760
    %4140 = vmatmul.mubr.f32.gmra.mrb[0].mxu0 %v4139
    %v4141 = vpop.f32.mrb[0].mxu0
    %v4142 = vadd.f32 %v3829, %v4141
    %v4143 = vpop.f32.mrb[0].mxu0
    %4144 = vmatprep.mubr.f32.mxu0 0.0
    %v4145 = vand.u32 %v2917, 4294901760
    %v4146 = vsub.f32 %v2917, %v4145
    %v4147 = vand.u32 %v4146, 4294901760
    %4148 = vmatmul.mubr.f32.gmra.mrb[0].mxu0 %v4147
    %v4149 = vpop.f32.mrb[0].mxu0
    %v4150 = vadd.f32 %v3836, %v4149
    %v4151 = vpop.f32.mrb[0].mxu0
    %4152 = vmatprep.mubr.f32.mxu0 0.0
    %v4153 = vand.u32 %v2918, 4294901760
    %v4154 = vsub.f32 %v2918, %v4153
    %v4155 = vand.u32 %v4154, 4294901760
    %4156 = vmatmul.mubr.f32.gmra.mrb[0].mxu0 %v4155
    %v4157 = vpop.f32.mrb[0].mxu0
    %v4158 = vadd.f32 %v3843, %v4157
    %v4159 = vpop.f32.mrb[0].mxu0
    %4160 = vmatprep.mubr.f32.mxu0 0.0
    %v4161 = vand.u32 %v2919, 4294901760
    %v4162 = vsub.f32 %v2919, %v4161
    %v4163 = vand.u32 %v4162, 4294901760
    %4164 = vmatmul.mubr.f32.gmra.mrb[0].mxu0 %v4163
    %v4165 = vpop.f32.mrb[0].mxu0
    %v4166 = vadd.f32 %v3850, %v4165
    %v4167 = vpop.f32.mrb[0].mxu0
    %4168 = vmatprep.mubr.f32.mxu0 0.0
    %v4169 = vand.u32 %v2920, 4294901760
    %v4170 = vsub.f32 %v2920, %v4169
    %v4171 = vand.u32 %v4170, 4294901760
    %4172 = vmatmul.mubr.f32.gmra.mrb[0].mxu0 %v4171
    %v4173 = vpop.f32.mrb[0].mxu0
    %v4174 = vadd.f32 %v3857, %v4173
    %v4175 = vpop.f32.mrb[0].mxu0
    %4176 = vmatprep.mubr.f32.mxu0 0.0
    %v4177 = vand.u32 %v2921, 4294901760
    %v4178 = vsub.f32 %v2921, %v4177
    %v4179 = vand.u32 %v4178, 4294901760
    %4180 = vmatmul.mubr.f32.gmra.mrb[0].mxu0 %v4179
    %v4181 = vpop.f32.mrb[0].mxu0
    %v4182 = vadd.f32 %v3864, %v4181
    %v4183 = vpop.f32.mrb[0].mxu0
    %4184 = vmatprep.mubr.f32.mxu0 0.0
    %v4185 = vand.u32 %v2922, 4294901760
    %v4186 = vsub.f32 %v2922, %v4185
    %v4187 = vand.u32 %v4186, 4294901760
    %4188 = vmatmul.mubr.f32.gmra.mrb[0].mxu0 %v4187
    %v4189 = vpop.f32.mrb[0].mxu0
    %v4190 = vadd.f32 %v3871, %v4189
    %v4191 = vpop.f32.mrb[0].mxu0
    %4192 = vmatprep.mubr.f32.mxu0 0.0
    %v4193 = vand.u32 %v2923, 4294901760
    %v4194 = vsub.f32 %v2923, %v4193
    %v4195 = vand.u32 %v4194, 4294901760
    %4196 = vmatmul.mubr.f32.gmra.mrb[0].mxu0 %v4195
    %v4197 = vpop.f32.mrb[0].mxu0
    %v4198 = vadd.f32 %v3878, %v4197
    %v4199 = vpop.f32.mrb[0].mxu0
    %4200 = vmatprep.mubr.f32.mxu0 0.0
    %v4201 = vand.u32 %v2924, 4294901760
    %v4202 = vsub.f32 %v2924, %v4201
    %v4203 = vand.u32 %v4202, 4294901760
    %4204 = vmatmul.mubr.f32.gmra.mrb[0].mxu0 %v4203
    %v4205 = vpop.f32.mrb[0].mxu0
    %v4206 = vadd.f32 %v3885, %v4205
    %v4207 = vpop.f32.mrb[0].mxu0
    %4208 = vmatprep.mubr.f32.mxu0 0.0
    %v4209 = vand.u32 %v2925, 4294901760
    %v4210 = vsub.f32 %v2925, %v4209
    %v4211 = vand.u32 %v4210, 4294901760
    %4212 = vmatmul.mubr.f32.gmra.mrb[0].mxu0 %v4211
    %v4213 = vpop.f32.mrb[0].mxu0
    %v4214 = vadd.f32 %v3892, %v4213
    %v4215 = vpop.f32.mrb[0].mxu0
    %4216 = vmatprep.mubr.f32.mxu0 0.0
    %v4217 = vand.u32 %v2926, 4294901760
    %v4218 = vsub.f32 %v2926, %v4217
    %v4219 = vand.u32 %v4218, 4294901760
    %4220 = vmatmul.mubr.f32.gmra.mrb[0].mxu0 %v4219
    %v4221 = vpop.f32.mrb[0].mxu0
    %v4222 = vadd.f32 %v3899, %v4221
    %v4223 = vpop.f32.mrb[0].mxu0
    %4224 = vmatprep.mubr.f32.mxu0 0.0
    %v4225 = vand.u32 %v2927, 4294901760
    %v4226 = vsub.f32 %v2927, %v4225
    %v4227 = vand.u32 %v4226, 4294901760
    %4228 = vmatmul.mubr.f32.gmra.mrb[0].mxu0 %v4227
    %v4229 = vpop.f32.mrb[0].mxu0
    %v4230 = vadd.f32 %v3906, %v4229
    %v4231 = vpop.f32.mrb[0].mxu0
    %4232 = vmatprep.mubr.f32.mxu0 0.0
    %v4233 = vand.u32 %v2928, 4294901760
    %v4234 = vsub.f32 %v2928, %v4233
    %v4235 = vand.u32 %v4234, 4294901760
    %4236 = vmatmul.mubr.f32.gmra.mrb[0].mxu0 %v4235
    %v4237 = vpop.f32.mrb[0].mxu0
    %v4238 = vadd.f32 %v3913, %v4237
    %v4239 = vpop.f32.mrb[0].mxu0
    %4240 = vmatprep.mubr.f32.mxu0 0.0
    %v4241 = vand.u32 %v2929, 4294901760
    %v4242 = vsub.f32 %v2929, %v4241
    %v4243 = vand.u32 %v4242, 4294901760
    %4244 = vmatmul.mubr.f32.gmra.mrb[0].mxu0 %v4243
    %v4245 = vpop.f32.mrb[0].mxu0
    %v4246 = vadd.f32 %v3920, %v4245
    %v4247 = vpop.f32.mrb[0].mxu0
    %4248 = vmatprep.mubr.f32.mxu0 0.0
    %v4249 = vand.u32 %v2930, 4294901760
    %v4250 = vsub.f32 %v2930, %v4249
    %v4251 = vand.u32 %v4250, 4294901760
    %4252 = vmatmul.mubr.f32.gmra.mrb[0].mxu0 %v4251
    %v4253 = vpop.f32.mrb[0].mxu0
    %v4254 = vadd.f32 %v3927, %v4253
    %v4255 = vpop.f32.mrb[0].mxu0
    %4256 = vmatprep.mubr.f32.mxu0 0.0
    %v4257 = vand.u32 %v2931, 4294901760
    %v4258 = vsub.f32 %v2931, %v4257
    %v4259 = vand.u32 %v4258, 4294901760
    %4260 = vmatmul.mubr.f32.gmra.mrb[0].mxu0 %v4259
    %v4261 = vpop.f32.mrb[0].mxu0
    %v4262 = vadd.f32 %v3934, %v4261
    %v4263 = vpop.f32.mrb[0].mxu0
    %4264 = vmatprep.mubr.f32.mxu0 0.0
    %v4265 = vand.u32 %v2932, 4294901760
    %v4266 = vsub.f32 %v2932, %v4265
    %v4267 = vand.u32 %v4266, 4294901760
    %4268 = vmatmul.mubr.f32.gmra.mrb[0].mxu0 %v4267
    %v4269 = vpop.f32.mrb[0].mxu0
    %v4270 = vadd.f32 %v3941, %v4269
    %v4271 = vpop.f32.mrb[0].mxu0
    %4272 = vmatprep.mubr.f32.mxu0 0.0
    %v4273 = vand.u32 %v2933, 4294901760
    %v4274 = vsub.f32 %v2933, %v4273
    %v4275 = vand.u32 %v4274, 4294901760
    %4276 = vmatmul.mubr.f32.gmra.mrb[0].mxu0 %v4275
    %v4277 = vpop.f32.mrb[0].mxu0
    %v4278 = vadd.f32 %v3948, %v4277
    %v4279 = vpop.f32.mrb[0].mxu0
    %4280 = vmatprep.mubr.f32.mxu0 0.0
    %v4281 = vand.u32 %v2934, 4294901760
    %v4282 = vsub.f32 %v2934, %v4281
    %v4283 = vand.u32 %v4282, 4294901760
    %4284 = vmatmul.mubr.f32.gmra.mrb[0].mxu0 %v4283
    %v4285 = vpop.f32.mrb[0].mxu0
    %v4286 = vadd.f32 %v3955, %v4285
    %v4287 = vpop.f32.mrb[0].mxu0
    %4288 = vmatprep.mubr.f32.mxu0 0.0
    %v4289 = vand.u32 %v2935, 4294901760
    %v4290 = vsub.f32 %v2935, %v4289
    %v4291 = vand.u32 %v4290, 4294901760
    %4292 = vmatmul.mubr.f32.gmra.mrb[0].mxu0 %v4291
    %v4293 = vpop.f32.mrb[0].mxu0
    %v4294 = vadd.f32 %v3962, %v4293
    %v4295 = vpop.f32.mrb[0].mxu0
    %4296 = vmatprep.mubr.f32.mxu0 0.0
    %v4297 = vand.u32 %v2936, 4294901760
    %v4298 = vsub.f32 %v2936, %v4297
    %v4299 = vand.u32 %v4298, 4294901760
    %4300 = vmatmul.mubr.f32.gmra.mrb[0].mxu0 %v4299
    %v4301 = vpop.f32.mrb[0].mxu0
    %v4302 = vadd.f32 %v3969, %v4301
    %v4303 = vpop.f32.mrb[0].mxu0
    %4304 = vmatprep.mubr.f32.mxu0 0.0
    %v4305 = vand.u32 %v2937, 4294901760
    %v4306 = vsub.f32 %v2937, %v4305
    %v4307 = vand.u32 %v4306, 4294901760
    %4308 = vmatmul.mubr.f32.gmra.mrb[0].mxu0 %v4307
    %v4309 = vpop.f32.mrb[0].mxu0
    %v4310 = vadd.f32 %v3976, %v4309
    %v4311 = vpop.f32.mrb[0].mxu0
    %4312 = vmatprep.mubr.f32.mxu0 0.0
    %v4313 = vand.u32 %v2938, 4294901760
    %v4314 = vsub.f32 %v2938, %v4313
    %v4315 = vand.u32 %v4314, 4294901760
    %4316 = vmatmul.mubr.f32.gmra.mrb[0].mxu0 %v4315
    %v4317 = vpop.f32.mrb[0].mxu0
    %v4318 = vadd.f32 %v3983, %v4317
    %v4319 = vpop.f32.mrb[0].mxu0
    %4320 = vmatprep.mubr.f32.mxu0 0.0
    %v4321 = vand.u32 %v2939, 4294901760
    %v4322 = vsub.f32 %v2939, %v4321
    %v4323 = vand.u32 %v4322, 4294901760
    %4324 = vmatmul.mubr.f32.gmra.mrb[0].mxu0 %v4323
    %v4325 = vpop.f32.mrb[0].mxu0
    %v4326 = vadd.f32 %v3990, %v4325
    %v4327 = vpop.f32.mrb[0].mxu0
    %4328 = vmatprep.mubr.f32.mxu0 0.0
    %v4329 = vand.u32 %v2940, 4294901760
    %v4330 = vsub.f32 %v2940, %v4329
    %v4331 = vand.u32 %v4330, 4294901760
    %4332 = vmatmul.mubr.f32.gmra.mrb[0].mxu0 %v4331
    %v4333 = vpop.f32.mrb[0].mxu0
    %v4334 = vadd.f32 %v3997, %v4333
    %v4335 = vpop.f32.mrb[0].mxu0
    %4336 = vdwg.mxu0
    %4337 = vmatprep.subr.mxu0 0.0
    %v4338 = vand.u32 %v60, 4294901760
    %v4339 = vsub.f32 %v60, %v4338
    %v4340 = vand.u32 %v4339, 4294901760
    %4341 = vmatpush1.msra.mxu0 %v4340
    %4342 = vmatprep.subr.mxu0 0.0
    %v4343 = vand.u32 %v61, 4294901760
    %v4344 = vsub.f32 %v61, %v4343
    %v4345 = vand.u32 %v4344, 4294901760
    %4346 = vmatpush1.msra.mxu0 %v4345
    %4347 = vmatprep.subr.mxu0 0.0
    %v4348 = vand.u32 %v62, 4294901760
    %v4349 = vsub.f32 %v62, %v4348
    %v4350 = vand.u32 %v4349, 4294901760
    %4351 = vmatpush1.msra.mxu0 %v4350
    %4352 = vmatprep.subr.mxu0 0.0
    %v4353 = vand.u32 %v63, 4294901760
    %v4354 = vsub.f32 %v63, %v4353
    %v4355 = vand.u32 %v4354, 4294901760
    %4356 = vmatpush1.msra.mxu0 %v4355
    %4357 = vmatprep.subr.mxu0 0.0
    %v4358 = vand.u32 %v64, 4294901760
    %v4359 = vsub.f32 %v64, %v4358
    %v4360 = vand.u32 %v4359, 4294901760
    %4361 = vmatpush1.msra.mxu0 %v4360
    %4362 = vmatprep.subr.mxu0 0.0
    %v4363 = vand.u32 %v65, 4294901760
    %v4364 = vsub.f32 %v65, %v4363
    %v4365 = vand.u32 %v4364, 4294901760
    %4366 = vmatpush1.msra.mxu0 %v4365
    %4367 = vmatprep.subr.mxu0 0.0
    %v4368 = vand.u32 %v66, 4294901760
    %v4369 = vsub.f32 %v66, %v4368
    %v4370 = vand.u32 %v4369, 4294901760
    %4371 = vmatpush1.msra.mxu0 %v4370
    %4372 = vmatprep.subr.mxu0 0.0
    %v4373 = vand.u32 %v67, 4294901760
    %v4374 = vsub.f32 %v67, %v4373
    %v4375 = vand.u32 %v4374, 4294901760
    %4376 = vmatpush1.msra.mxu0 %v4375
    %4377 = vmatprep.subr.mxu0 0.0
    %v4378 = vand.u32 %v68, 4294901760
    %v4379 = vsub.f32 %v68, %v4378
    %v4380 = vand.u32 %v4379, 4294901760
    %4381 = vmatpush1.msra.mxu0 %v4380
    %4382 = vmatprep.subr.mxu0 0.0
    %v4383 = vand.u32 %v69, 4294901760
    %v4384 = vsub.f32 %v69, %v4383
    %v4385 = vand.u32 %v4384, 4294901760
    %4386 = vmatpush1.msra.mxu0 %v4385
    %4387 = vmatprep.subr.mxu0 0.0
    %v4388 = vand.u32 %v70, 4294901760
    %v4389 = vsub.f32 %v70, %v4388
    %v4390 = vand.u32 %v4389, 4294901760
    %4391 = vmatpush1.msra.mxu0 %v4390
    %4392 = vmatprep.subr.mxu0 0.0
    %v4393 = vand.u32 %v71, 4294901760
    %v4394 = vsub.f32 %v71, %v4393
    %v4395 = vand.u32 %v4394, 4294901760
    %4396 = vmatpush1.msra.mxu0 %v4395
    %4397 = vmatprep.subr.mxu0 0.0
    %v4398 = vand.u32 %v72, 4294901760
    %v4399 = vsub.f32 %v72, %v4398
    %v4400 = vand.u32 %v4399, 4294901760
    %4401 = vmatpush1.msra.mxu0 %v4400
    %4402 = vmatprep.subr.mxu0 0.0
    %v4403 = vand.u32 %v73, 4294901760
    %v4404 = vsub.f32 %v73, %v4403
    %v4405 = vand.u32 %v4404, 4294901760
    %4406 = vmatpush1.msra.mxu0 %v4405
    %4407 = vmatprep.subr.mxu0 0.0
    %v4408 = vand.u32 %v74, 4294901760
    %v4409 = vsub.f32 %v74, %v4408
    %v4410 = vand.u32 %v4409, 4294901760
    %4411 = vmatpush1.msra.mxu0 %v4410
    %4412 = vmatprep.subr.mxu0 0.0
    %v4413 = vand.u32 %v75, 4294901760
    %v4414 = vsub.f32 %v75, %v4413
    %v4415 = vand.u32 %v4414, 4294901760
    %4416 = vmatpush1.msra.mxu0 %v4415
    %4417 = vmatprep.subr.mxu0 0.0
    %4418 = vmatpush1.msra.mxu0 0.0
    %4419 = vmatprep.subr.mxu0 0.0
    %4420 = vmatpush1.msra.mxu0 0.0
    %4421 = vmatprep.subr.mxu0 0.0
    %4422 = vmatpush1.msra.mxu0 0.0
    %4423 = vmatprep.subr.mxu0 0.0
    %4424 = vmatpush1.msra.mxu0 0.0
    %4425 = vmatprep.subr.mxu0 0.0
    %4426 = vmatpush1.msra.mxu0 0.0
    %4427 = vmatprep.subr.mxu0 0.0
    %4428 = vmatpush1.msra.mxu0 0.0
    %4429 = vmatprep.subr.mxu0 0.0
    %4430 = vmatpush1.msra.mxu0 0.0
    %4431 = vmatprep.subr.mxu0 0.0
    %4432 = vmatpush1.msra.mxu0 0.0
    %4433 = vmatprep.subr.mxu0 0.0
    %4434 = vmatpush1.msra.mxu0 0.0
    %4435 = vmatprep.subr.mxu0 0.0
    %4436 = vmatpush1.msra.mxu0 0.0
    %4437 = vmatprep.subr.mxu0 0.0
    %4438 = vmatpush1.msra.mxu0 0.0
    %4439 = vmatprep.subr.mxu0 0.0
    %4440 = vmatpush1.msra.mxu0 0.0
    %4441 = vmatprep.subr.mxu0 0.0
    %4442 = vmatpush1.msra.mxu0 0.0
    %4443 = vmatprep.subr.mxu0 0.0
    %4444 = vmatpush1.msra.mxu0 0.0
    %4445 = vmatprep.subr.mxu0 0.0
    %4446 = vmatpush1.msra.mxu0 0.0
    %4447 = vmatprep.subr.mxu0 0.0
    %4448 = vmatpush1.msra.mxu0 0.0
    %4449 = vmatprep.mubr.f32.mxu0 0.0
    %v4450 = vand.u32 %v2909, 4294901760
    %4451 = vmatmul.mubr.f32.gmra.mrb[0].mxu0 %v4450
    %v4452 = vpop.f32.mrb[0].mxu0
    %v4453 = vadd.f32 %v4086, %v4452
    %v4454 = vpop.f32.mrb[0].mxu0
    %4455 = vmatprep.mubr.f32.mxu0 0.0
    %v4456 = vand.u32 %v2910, 4294901760
    %4457 = vmatmul.mubr.f32.gmra.mrb[0].mxu0 %v4456
    %v4458 = vpop.f32.mrb[0].mxu0
    %v4459 = vadd.f32 %v4094, %v4458
    %v4460 = vpop.f32.mrb[0].mxu0
    %4461 = vmatprep.mubr.f32.mxu0 0.0
    %v4462 = vand.u32 %v2911, 4294901760
    %4463 = vmatmul.mubr.f32.gmra.mrb[0].mxu0 %v4462
    %v4464 = vpop.f32.mrb[0].mxu0
    %v4465 = vadd.f32 %v4102, %v4464
    %v4466 = vpop.f32.mrb[0].mxu0
    %4467 = vmatprep.mubr.f32.mxu0 0.0
    %v4468 = vand.u32 %v2912, 4294901760
    %4469 = vmatmul.mubr.f32.gmra.mrb[0].mxu0 %v4468
    %v4470 = vpop.f32.mrb[0].mxu0
    %v4471 = vadd.f32 %v4110, %v4470
    %v4472 = vpop.f32.mrb[0].mxu0
    %4473 = vmatprep.mubr.f32.mxu0 0.0
    %v4474 = vand.u32 %v2913, 4294901760
    %4475 = vmatmul.mubr.f32.gmra.mrb[0].mxu0 %v4474
    %v4476 = vpop.f32.mrb[0].mxu0
    %v4477 = vadd.f32 %v4118, %v4476
    %v4478 = vpop.f32.mrb[0].mxu0
    %4479 = vmatprep.mubr.f32.mxu0 0.0
    %v4480 = vand.u32 %v2914, 4294901760
    %4481 = vmatmul.mubr.f32.gmra.mrb[0].mxu0 %v4480
    %v4482 = vpop.f32.mrb[0].mxu0
    %v4483 = vadd.f32 %v4126, %v4482
    %v4484 = vpop.f32.mrb[0].mxu0
    %4485 = vmatprep.mubr.f32.mxu0 0.0
    %v4486 = vand.u32 %v2915, 4294901760
    %4487 = vmatmul.mubr.f32.gmra.mrb[0].mxu0 %v4486
    %v4488 = vpop.f32.mrb[0].mxu0
    %v4489 = vadd.f32 %v4134, %v4488
    %v4490 = vpop.f32.mrb[0].mxu0
    %4491 = vmatprep.mubr.f32.mxu0 0.0
    %v4492 = vand.u32 %v2916, 4294901760
    %4493 = vmatmul.mubr.f32.gmra.mrb[0].mxu0 %v4492
    %v4494 = vpop.f32.mrb[0].mxu0
    %v4495 = vadd.f32 %v4142, %v4494
    %v4496 = vpop.f32.mrb[0].mxu0
    %4497 = vmatprep.mubr.f32.mxu0 0.0
    %v4498 = vand.u32 %v2917, 4294901760
    %4499 = vmatmul.mubr.f32.gmra.mrb[0].mxu0 %v4498
    %v4500 = vpop.f32.mrb[0].mxu0
    %v4501 = vadd.f32 %v4150, %v4500
    %v4502 = vpop.f32.mrb[0].mxu0
    %4503 = vmatprep.mubr.f32.mxu0 0.0
    %v4504 = vand.u32 %v2918, 4294901760
    %4505 = vmatmul.mubr.f32.gmra.mrb[0].mxu0 %v4504
    %v4506 = vpop.f32.mrb[0].mxu0
    %v4507 = vadd.f32 %v4158, %v4506
    %v4508 = vpop.f32.mrb[0].mxu0
    %4509 = vmatprep.mubr.f32.mxu0 0.0
    %v4510 = vand.u32 %v2919, 4294901760
    %4511 = vmatmul.mubr.f32.gmra.mrb[0].mxu0 %v4510
    %v4512 = vpop.f32.mrb[0].mxu0
    %v4513 = vadd.f32 %v4166, %v4512
    %v4514 = vpop.f32.mrb[0].mxu0
    %4515 = vmatprep.mubr.f32.mxu0 0.0
    %v4516 = vand.u32 %v2920, 4294901760
    %4517 = vmatmul.mubr.f32.gmra.mrb[0].mxu0 %v4516
    %v4518 = vpop.f32.mrb[0].mxu0
    %v4519 = vadd.f32 %v4174, %v4518
    %v4520 = vpop.f32.mrb[0].mxu0
    %4521 = vmatprep.mubr.f32.mxu0 0.0
    %v4522 = vand.u32 %v2921, 4294901760
    %4523 = vmatmul.mubr.f32.gmra.mrb[0].mxu0 %v4522
    %v4524 = vpop.f32.mrb[0].mxu0
    %v4525 = vadd.f32 %v4182, %v4524
    %v4526 = vpop.f32.mrb[0].mxu0
    %4527 = vmatprep.mubr.f32.mxu0 0.0
    %v4528 = vand.u32 %v2922, 4294901760
    %4529 = vmatmul.mubr.f32.gmra.mrb[0].mxu0 %v4528
    %v4530 = vpop.f32.mrb[0].mxu0
    %v4531 = vadd.f32 %v4190, %v4530
    %v4532 = vpop.f32.mrb[0].mxu0
    %4533 = vmatprep.mubr.f32.mxu0 0.0
    %v4534 = vand.u32 %v2923, 4294901760
    %4535 = vmatmul.mubr.f32.gmra.mrb[0].mxu0 %v4534
    %v4536 = vpop.f32.mrb[0].mxu0
    %v4537 = vadd.f32 %v4198, %v4536
    %v4538 = vpop.f32.mrb[0].mxu0
    %4539 = vmatprep.mubr.f32.mxu0 0.0
    %v4540 = vand.u32 %v2924, 4294901760
    %4541 = vmatmul.mubr.f32.gmra.mrb[0].mxu0 %v4540
    %v4542 = vpop.f32.mrb[0].mxu0
    %v4543 = vadd.f32 %v4206, %v4542
    %v4544 = vpop.f32.mrb[0].mxu0
    %4545 = vmatprep.mubr.f32.mxu0 0.0
    %v4546 = vand.u32 %v2925, 4294901760
    %4547 = vmatmul.mubr.f32.gmra.mrb[0].mxu0 %v4546
    %v4548 = vpop.f32.mrb[0].mxu0
    %v4549 = vadd.f32 %v4214, %v4548
    %v4550 = vpop.f32.mrb[0].mxu0
    %4551 = vmatprep.mubr.f32.mxu0 0.0
    %v4552 = vand.u32 %v2926, 4294901760
    %4553 = vmatmul.mubr.f32.gmra.mrb[0].mxu0 %v4552
    %v4554 = vpop.f32.mrb[0].mxu0
    %v4555 = vadd.f32 %v4222, %v4554
    %v4556 = vpop.f32.mrb[0].mxu0
    %4557 = vmatprep.mubr.f32.mxu0 0.0
    %v4558 = vand.u32 %v2927, 4294901760
    %4559 = vmatmul.mubr.f32.gmra.mrb[0].mxu0 %v4558
    %v4560 = vpop.f32.mrb[0].mxu0
    %v4561 = vadd.f32 %v4230, %v4560
    %v4562 = vpop.f32.mrb[0].mxu0
    %4563 = vmatprep.mubr.f32.mxu0 0.0
    %v4564 = vand.u32 %v2928, 4294901760
    %4565 = vmatmul.mubr.f32.gmra.mrb[0].mxu0 %v4564
    %v4566 = vpop.f32.mrb[0].mxu0
    %v4567 = vadd.f32 %v4238, %v4566
    %v4568 = vpop.f32.mrb[0].mxu0
    %4569 = vmatprep.mubr.f32.mxu0 0.0
    %v4570 = vand.u32 %v2929, 4294901760
    %4571 = vmatmul.mubr.f32.gmra.mrb[0].mxu0 %v4570
    %v4572 = vpop.f32.mrb[0].mxu0
    %v4573 = vadd.f32 %v4246, %v4572
    %v4574 = vpop.f32.mrb[0].mxu0
    %4575 = vmatprep.mubr.f32.mxu0 0.0
    %v4576 = vand.u32 %v2930, 4294901760
    %4577 = vmatmul.mubr.f32.gmra.mrb[0].mxu0 %v4576
    %v4578 = vpop.f32.mrb[0].mxu0
    %v4579 = vadd.f32 %v4254, %v4578
    %v4580 = vpop.f32.mrb[0].mxu0
    %4581 = vmatprep.mubr.f32.mxu0 0.0
    %v4582 = vand.u32 %v2931, 4294901760
    %4583 = vmatmul.mubr.f32.gmra.mrb[0].mxu0 %v4582
    %v4584 = vpop.f32.mrb[0].mxu0
    %v4585 = vadd.f32 %v4262, %v4584
    %v4586 = vpop.f32.mrb[0].mxu0
    %4587 = vmatprep.mubr.f32.mxu0 0.0
    %v4588 = vand.u32 %v2932, 4294901760
    %4589 = vmatmul.mubr.f32.gmra.mrb[0].mxu0 %v4588
    %v4590 = vpop.f32.mrb[0].mxu0
    %v4591 = vadd.f32 %v4270, %v4590
    %v4592 = vpop.f32.mrb[0].mxu0
    %4593 = vmatprep.mubr.f32.mxu0 0.0
    %v4594 = vand.u32 %v2933, 4294901760
    %4595 = vmatmul.mubr.f32.gmra.mrb[0].mxu0 %v4594
    %v4596 = vpop.f32.mrb[0].mxu0
    %v4597 = vadd.f32 %v4278, %v4596
    %v4598 = vpop.f32.mrb[0].mxu0
    %4599 = vmatprep.mubr.f32.mxu0 0.0
    %v4600 = vand.u32 %v2934, 4294901760
    %4601 = vmatmul.mubr.f32.gmra.mrb[0].mxu0 %v4600
    %v4602 = vpop.f32.mrb[0].mxu0
    %v4603 = vadd.f32 %v4286, %v4602
    %v4604 = vpop.f32.mrb[0].mxu0
    %4605 = vmatprep.mubr.f32.mxu0 0.0
    %v4606 = vand.u32 %v2935, 4294901760
    %4607 = vmatmul.mubr.f32.gmra.mrb[0].mxu0 %v4606
    %v4608 = vpop.f32.mrb[0].mxu0
    %v4609 = vadd.f32 %v4294, %v4608
    %v4610 = vpop.f32.mrb[0].mxu0
    %4611 = vmatprep.mubr.f32.mxu0 0.0
    %v4612 = vand.u32 %v2936, 4294901760
    %4613 = vmatmul.mubr.f32.gmra.mrb[0].mxu0 %v4612
    %v4614 = vpop.f32.mrb[0].mxu0
    %v4615 = vadd.f32 %v4302, %v4614
    %v4616 = vpop.f32.mrb[0].mxu0
    %4617 = vmatprep.mubr.f32.mxu0 0.0
    %v4618 = vand.u32 %v2937, 4294901760
    %4619 = vmatmul.mubr.f32.gmra.mrb[0].mxu0 %v4618
    %v4620 = vpop.f32.mrb[0].mxu0
    %v4621 = vadd.f32 %v4310, %v4620
    %v4622 = vpop.f32.mrb[0].mxu0
    %4623 = vmatprep.mubr.f32.mxu0 0.0
    %v4624 = vand.u32 %v2938, 4294901760
    %4625 = vmatmul.mubr.f32.gmra.mrb[0].mxu0 %v4624
    %v4626 = vpop.f32.mrb[0].mxu0
    %v4627 = vadd.f32 %v4318, %v4626
    %v4628 = vpop.f32.mrb[0].mxu0
    %4629 = vmatprep.mubr.f32.mxu0 0.0
    %v4630 = vand.u32 %v2939, 4294901760
    %4631 = vmatmul.mubr.f32.gmra.mrb[0].mxu0 %v4630
    %v4632 = vpop.f32.mrb[0].mxu0
    %v4633 = vadd.f32 %v4326, %v4632
    %v4634 = vpop.f32.mrb[0].mxu0
    %4635 = vmatprep.mubr.f32.mxu0 0.0
    %v4636 = vand.u32 %v2940, 4294901760
    %4637 = vmatmul.mubr.f32.gmra.mrb[0].mxu0 %v4636
    %v4638 = vpop.f32.mrb[0].mxu0
    %v4639 = vadd.f32 %v4334, %v4638
    %v4640 = vpop.f32.mrb[0].mxu0
    %4641 = vdwg.mxu0
    %4642 = vmatprep.subr.mxu0 0.0
    %v4643 = vand.u32 %v60, 4294901760
    %4644 = vmatpush1.msra.mxu0 %v4643
    %4645 = vmatprep.subr.mxu0 0.0
    %v4646 = vand.u32 %v61, 4294901760
    %4647 = vmatpush1.msra.mxu0 %v4646
    %4648 = vmatprep.subr.mxu0 0.0
    %v4649 = vand.u32 %v62, 4294901760
    %4650 = vmatpush1.msra.mxu0 %v4649
    %4651 = vmatprep.subr.mxu0 0.0
    %v4652 = vand.u32 %v63, 4294901760
    %4653 = vmatpush1.msra.mxu0 %v4652
    %4654 = vmatprep.subr.mxu0 0.0
    %v4655 = vand.u32 %v64, 4294901760
    %4656 = vmatpush1.msra.mxu0 %v4655
    %4657 = vmatprep.subr.mxu0 0.0
    %v4658 = vand.u32 %v65, 4294901760
    %4659 = vmatpush1.msra.mxu0 %v4658
    %4660 = vmatprep.subr.mxu0 0.0
    %v4661 = vand.u32 %v66, 4294901760
    %4662 = vmatpush1.msra.mxu0 %v4661
    %4663 = vmatprep.subr.mxu0 0.0
    %v4664 = vand.u32 %v67, 4294901760
    %4665 = vmatpush1.msra.mxu0 %v4664
    %4666 = vmatprep.subr.mxu0 0.0
    %v4667 = vand.u32 %v68, 4294901760
    %4668 = vmatpush1.msra.mxu0 %v4667
    %4669 = vmatprep.subr.mxu0 0.0
    %v4670 = vand.u32 %v69, 4294901760
    %4671 = vmatpush1.msra.mxu0 %v4670
    %4672 = vmatprep.subr.mxu0 0.0
    %v4673 = vand.u32 %v70, 4294901760
    %4674 = vmatpush1.msra.mxu0 %v4673
    %4675 = vmatprep.subr.mxu0 0.0
    %v4676 = vand.u32 %v71, 4294901760
    %4677 = vmatpush1.msra.mxu0 %v4676
    %4678 = vmatprep.subr.mxu0 0.0
    %v4679 = vand.u32 %v72, 4294901760
    %4680 = vmatpush1.msra.mxu0 %v4679
    %4681 = vmatprep.subr.mxu0 0.0
    %v4682 = vand.u32 %v73, 4294901760
    %4683 = vmatpush1.msra.mxu0 %v4682
    %4684 = vmatprep.subr.mxu0 0.0
    %v4685 = vand.u32 %v74, 4294901760
    %4686 = vmatpush1.msra.mxu0 %v4685
    %4687 = vmatprep.subr.mxu0 0.0
    %v4688 = vand.u32 %v75, 4294901760
    %4689 = vmatpush1.msra.mxu0 %v4688
    %4690 = vmatprep.subr.mxu0 0.0
    %4691 = vmatpush1.msra.mxu0 0.0
    %4692 = vmatprep.subr.mxu0 0.0
    %4693 = vmatpush1.msra.mxu0 0.0
    %4694 = vmatprep.subr.mxu0 0.0
    %4695 = vmatpush1.msra.mxu0 0.0
    %4696 = vmatprep.subr.mxu0 0.0
    %4697 = vmatpush1.msra.mxu0 0.0
    %4698 = vmatprep.subr.mxu0 0.0
    %4699 = vmatpush1.msra.mxu0 0.0
    %4700 = vmatprep.subr.mxu0 0.0
    %4701 = vmatpush1.msra.mxu0 0.0
    %4702 = vmatprep.subr.mxu0 0.0
    %4703 = vmatpush1.msra.mxu0 0.0
    %4704 = vmatprep.subr.mxu0 0.0
    %4705 = vmatpush1.msra.mxu0 0.0
    %4706 = vmatprep.subr.mxu0 0.0
    %4707 = vmatpush1.msra.mxu0 0.0
    %4708 = vmatprep.subr.mxu0 0.0
    %4709 = vmatpush1.msra.mxu0 0.0
    %4710 = vmatprep.subr.mxu0 0.0
    %4711 = vmatpush1.msra.mxu0 0.0
    %4712 = vmatprep.subr.mxu0 0.0
    %4713 = vmatpush1.msra.mxu0 0.0
    %4714 = vmatprep.subr.mxu0 0.0
    %4715 = vmatpush1.msra.mxu0 0.0
    %4716 = vmatprep.subr.mxu0 0.0
    %4717 = vmatpush1.msra.mxu0 0.0
    %4718 = vmatprep.subr.mxu0 0.0
    %4719 = vmatpush1.msra.mxu0 0.0
    %4720 = vmatprep.subr.mxu0 0.0
    %4721 = vmatpush1.msra.mxu0 0.0
    %4722 = vmatprep.mubr.f32.mxu0 0.0
    %v4723 = vand.u32 %v2909, 4294901760
    %4724 = vmatmul.mubr.f32.gmra.mrb[0].mxu0 %v4723
    %v4725 = vpop.f32.mrb[0].mxu0
    %v4726 = vadd.f32 %v4453, %v4725
    %v4727 = vpop.f32.mrb[0].mxu0
    %4728 = vmatprep.mubr.f32.mxu0 0.0
    %v4729 = vand.u32 %v2910, 4294901760
    %4730 = vmatmul.mubr.f32.gmra.mrb[0].mxu0 %v4729
    %v4731 = vpop.f32.mrb[0].mxu0
    %v4732 = vadd.f32 %v4459, %v4731
    %v4733 = vpop.f32.mrb[0].mxu0
    %4734 = vmatprep.mubr.f32.mxu0 0.0
    %v4735 = vand.u32 %v2911, 4294901760
    %4736 = vmatmul.mubr.f32.gmra.mrb[0].mxu0 %v4735
    %v4737 = vpop.f32.mrb[0].mxu0
    %v4738 = vadd.f32 %v4465, %v4737
    %v4739 = vpop.f32.mrb[0].mxu0
    %4740 = vmatprep.mubr.f32.mxu0 0.0
    %v4741 = vand.u32 %v2912, 4294901760
    %4742 = vmatmul.mubr.f32.gmra.mrb[0].mxu0 %v4741
    %v4743 = vpop.f32.mrb[0].mxu0
    %v4744 = vadd.f32 %v4471, %v4743
    %v4745 = vpop.f32.mrb[0].mxu0
    %4746 = vmatprep.mubr.f32.mxu0 0.0
    %v4747 = vand.u32 %v2913, 4294901760
    %4748 = vmatmul.mubr.f32.gmra.mrb[0].mxu0 %v4747
    %v4749 = vpop.f32.mrb[0].mxu0
    %v4750 = vadd.f32 %v4477, %v4749
    %v4751 = vpop.f32.mrb[0].mxu0
    %4752 = vmatprep.mubr.f32.mxu0 0.0
    %v4753 = vand.u32 %v2914, 4294901760
    %4754 = vmatmul.mubr.f32.gmra.mrb[0].mxu0 %v4753
    %v4755 = vpop.f32.mrb[0].mxu0
    %v4756 = vadd.f32 %v4483, %v4755
    %v4757 = vpop.f32.mrb[0].mxu0
    %4758 = vmatprep.mubr.f32.mxu0 0.0
    %v4759 = vand.u32 %v2915, 4294901760
    %4760 = vmatmul.mubr.f32.gmra.mrb[0].mxu0 %v4759
    %v4761 = vpop.f32.mrb[0].mxu0
    %v4762 = vadd.f32 %v4489, %v4761
    %v4763 = vpop.f32.mrb[0].mxu0
    %4764 = vmatprep.mubr.f32.mxu0 0.0
    %v4765 = vand.u32 %v2916, 4294901760
    %4766 = vmatmul.mubr.f32.gmra.mrb[0].mxu0 %v4765
    %v4767 = vpop.f32.mrb[0].mxu0
    %v4768 = vadd.f32 %v4495, %v4767
    %v4769 = vpop.f32.mrb[0].mxu0
    %4770 = vmatprep.mubr.f32.mxu0 0.0
    %v4771 = vand.u32 %v2917, 4294901760
    %4772 = vmatmul.mubr.f32.gmra.mrb[0].mxu0 %v4771
    %v4773 = vpop.f32.mrb[0].mxu0
    %v4774 = vadd.f32 %v4501, %v4773
    %v4775 = vpop.f32.mrb[0].mxu0
    %4776 = vmatprep.mubr.f32.mxu0 0.0
    %v4777 = vand.u32 %v2918, 4294901760
    %4778 = vmatmul.mubr.f32.gmra.mrb[0].mxu0 %v4777
    %v4779 = vpop.f32.mrb[0].mxu0
    %v4780 = vadd.f32 %v4507, %v4779
    %v4781 = vpop.f32.mrb[0].mxu0
    %4782 = vmatprep.mubr.f32.mxu0 0.0
    %v4783 = vand.u32 %v2919, 4294901760
    %4784 = vmatmul.mubr.f32.gmra.mrb[0].mxu0 %v4783
    %v4785 = vpop.f32.mrb[0].mxu0
    %v4786 = vadd.f32 %v4513, %v4785
    %v4787 = vpop.f32.mrb[0].mxu0
    %4788 = vmatprep.mubr.f32.mxu0 0.0
    %v4789 = vand.u32 %v2920, 4294901760
    %4790 = vmatmul.mubr.f32.gmra.mrb[0].mxu0 %v4789
    %v4791 = vpop.f32.mrb[0].mxu0
    %v4792 = vadd.f32 %v4519, %v4791
    %v4793 = vpop.f32.mrb[0].mxu0
    %4794 = vmatprep.mubr.f32.mxu0 0.0
    %v4795 = vand.u32 %v2921, 4294901760
    %4796 = vmatmul.mubr.f32.gmra.mrb[0].mxu0 %v4795
    %v4797 = vpop.f32.mrb[0].mxu0
    %v4798 = vadd.f32 %v4525, %v4797
    %v4799 = vpop.f32.mrb[0].mxu0
    %4800 = vmatprep.mubr.f32.mxu0 0.0
    %v4801 = vand.u32 %v2922, 4294901760
    %4802 = vmatmul.mubr.f32.gmra.mrb[0].mxu0 %v4801
    %v4803 = vpop.f32.mrb[0].mxu0
    %v4804 = vadd.f32 %v4531, %v4803
    %v4805 = vpop.f32.mrb[0].mxu0
    %4806 = vmatprep.mubr.f32.mxu0 0.0
    %v4807 = vand.u32 %v2923, 4294901760
    %4808 = vmatmul.mubr.f32.gmra.mrb[0].mxu0 %v4807
    %v4809 = vpop.f32.mrb[0].mxu0
    %v4810 = vadd.f32 %v4537, %v4809
    %v4811 = vpop.f32.mrb[0].mxu0
    %4812 = vmatprep.mubr.f32.mxu0 0.0
    %v4813 = vand.u32 %v2924, 4294901760
    %4814 = vmatmul.mubr.f32.gmra.mrb[0].mxu0 %v4813
    %v4815 = vpop.f32.mrb[0].mxu0
    %v4816 = vadd.f32 %v4543, %v4815
    %v4817 = vpop.f32.mrb[0].mxu0
    %4818 = vmatprep.mubr.f32.mxu0 0.0
    %v4819 = vand.u32 %v2925, 4294901760
    %4820 = vmatmul.mubr.f32.gmra.mrb[0].mxu0 %v4819
    %v4821 = vpop.f32.mrb[0].mxu0
    %v4822 = vadd.f32 %v4549, %v4821
    %v4823 = vpop.f32.mrb[0].mxu0
    %4824 = vmatprep.mubr.f32.mxu0 0.0
    %v4825 = vand.u32 %v2926, 4294901760
    %4826 = vmatmul.mubr.f32.gmra.mrb[0].mxu0 %v4825
    %v4827 = vpop.f32.mrb[0].mxu0
    %v4828 = vadd.f32 %v4555, %v4827
    %v4829 = vpop.f32.mrb[0].mxu0
    %4830 = vmatprep.mubr.f32.mxu0 0.0
    %v4831 = vand.u32 %v2927, 4294901760
    %4832 = vmatmul.mubr.f32.gmra.mrb[0].mxu0 %v4831
    %v4833 = vpop.f32.mrb[0].mxu0
    %v4834 = vadd.f32 %v4561, %v4833
    %v4835 = vpop.f32.mrb[0].mxu0
    %4836 = vmatprep.mubr.f32.mxu0 0.0
    %v4837 = vand.u32 %v2928, 4294901760
    %4838 = vmatmul.mubr.f32.gmra.mrb[0].mxu0 %v4837
    %v4839 = vpop.f32.mrb[0].mxu0
    %v4840 = vadd.f32 %v4567, %v4839
    %v4841 = vpop.f32.mrb[0].mxu0
    %4842 = vmatprep.mubr.f32.mxu0 0.0
    %v4843 = vand.u32 %v2929, 4294901760
    %4844 = vmatmul.mubr.f32.gmra.mrb[0].mxu0 %v4843
    %v4845 = vpop.f32.mrb[0].mxu0
    %v4846 = vadd.f32 %v4573, %v4845
    %v4847 = vpop.f32.mrb[0].mxu0
    %4848 = vmatprep.mubr.f32.mxu0 0.0
    %v4849 = vand.u32 %v2930, 4294901760
    %4850 = vmatmul.mubr.f32.gmra.mrb[0].mxu0 %v4849
    %v4851 = vpop.f32.mrb[0].mxu0
    %v4852 = vadd.f32 %v4579, %v4851
    %v4853 = vpop.f32.mrb[0].mxu0
    %4854 = vmatprep.mubr.f32.mxu0 0.0
    %v4855 = vand.u32 %v2931, 4294901760
    %4856 = vmatmul.mubr.f32.gmra.mrb[0].mxu0 %v4855
    %v4857 = vpop.f32.mrb[0].mxu0
    %v4858 = vadd.f32 %v4585, %v4857
    %v4859 = vpop.f32.mrb[0].mxu0
    %4860 = vmatprep.mubr.f32.mxu0 0.0
    %v4861 = vand.u32 %v2932, 4294901760
    %4862 = vmatmul.mubr.f32.gmra.mrb[0].mxu0 %v4861
    %v4863 = vpop.f32.mrb[0].mxu0
    %v4864 = vadd.f32 %v4591, %v4863
    %v4865 = vpop.f32.mrb[0].mxu0
    %4866 = vmatprep.mubr.f32.mxu0 0.0
    %v4867 = vand.u32 %v2933, 4294901760
    %4868 = vmatmul.mubr.f32.gmra.mrb[0].mxu0 %v4867
    %v4869 = vpop.f32.mrb[0].mxu0
    %v4870 = vadd.f32 %v4597, %v4869
    %v4871 = vpop.f32.mrb[0].mxu0
    %4872 = vmatprep.mubr.f32.mxu0 0.0
    %v4873 = vand.u32 %v2934, 4294901760
    %4874 = vmatmul.mubr.f32.gmra.mrb[0].mxu0 %v4873
    %v4875 = vpop.f32.mrb[0].mxu0
    %v4876 = vadd.f32 %v4603, %v4875
    %v4877 = vpop.f32.mrb[0].mxu0
    %4878 = vmatprep.mubr.f32.mxu0 0.0
    %v4879 = vand.u32 %v2935, 4294901760
    %4880 = vmatmul.mubr.f32.gmra.mrb[0].mxu0 %v4879
    %v4881 = vpop.f32.mrb[0].mxu0
    %v4882 = vadd.f32 %v4609, %v4881
    %v4883 = vpop.f32.mrb[0].mxu0
    %4884 = vmatprep.mubr.f32.mxu0 0.0
    %v4885 = vand.u32 %v2936, 4294901760
    %4886 = vmatmul.mubr.f32.gmra.mrb[0].mxu0 %v4885
    %v4887 = vpop.f32.mrb[0].mxu0
    %v4888 = vadd.f32 %v4615, %v4887
    %v4889 = vpop.f32.mrb[0].mxu0
    %4890 = vmatprep.mubr.f32.mxu0 0.0
    %v4891 = vand.u32 %v2937, 4294901760
    %4892 = vmatmul.mubr.f32.gmra.mrb[0].mxu0 %v4891
    %v4893 = vpop.f32.mrb[0].mxu0
    %v4894 = vadd.f32 %v4621, %v4893
    %v4895 = vpop.f32.mrb[0].mxu0
    %4896 = vmatprep.mubr.f32.mxu0 0.0
    %v4897 = vand.u32 %v2938, 4294901760
    %4898 = vmatmul.mubr.f32.gmra.mrb[0].mxu0 %v4897
    %v4899 = vpop.f32.mrb[0].mxu0
    %v4900 = vadd.f32 %v4627, %v4899
    %v4901 = vpop.f32.mrb[0].mxu0
    %4902 = vmatprep.mubr.f32.mxu0 0.0
    %v4903 = vand.u32 %v2939, 4294901760
    %4904 = vmatmul.mubr.f32.gmra.mrb[0].mxu0 %v4903
    %v4905 = vpop.f32.mrb[0].mxu0
    %v4906 = vadd.f32 %v4633, %v4905
    %v4907 = vpop.f32.mrb[0].mxu0
    %4908 = vmatprep.mubr.f32.mxu0 0.0
    %v4909 = vand.u32 %v2940, 4294901760
    %4910 = vmatmul.mubr.f32.gmra.mrb[0].mxu0 %v4909
    %v4911 = vpop.f32.mrb[0].mxu0
    %v4912 = vadd.f32 %v4639, %v4911
    %v4913 = vpop.f32.mrb[0].mxu0
    %4914 = vdwg.mxu0
    %4915 = vst.msk [vmem:[%s3] sm:$0xff] %vm108, %v4726
    %4916 = vst.msk [vmem:[%s3 + $0x8] sm:$0xff] %vm108, %v4732
    %4917 = vst.msk [vmem:[%s3 + $0x10] sm:$0xff] %vm108, %v4738
    %4918 = vst.msk [vmem:[%s3 + $0x18] sm:$0xff] %vm108, %v4744
    %4919 = vst.msk [vmem:[%s3 + $0x20] sm:$0xff] %vm108, %v4750
    %4920 = vst.msk [vmem:[%s3 + $0x28] sm:$0xff] %vm108, %v4756
    %4921 = vst.msk [vmem:[%s3 + $0x30] sm:$0xff] %vm108, %v4762
    %4922 = vst.msk [vmem:[%s3 + $0x38] sm:$0xff] %vm108, %v4768
    %4923 = vst.msk [vmem:[%s3 + $0x40] sm:$0xff] %vm108, %v4774
    %4924 = vst.msk [vmem:[%s3 + $0x48] sm:$0xff] %vm108, %v4780
    %4925 = vst.msk [vmem:[%s3 + $0x50] sm:$0xff] %vm108, %v4786
    %4926 = vst.msk [vmem:[%s3 + $0x58] sm:$0xff] %vm108, %v4792
    %4927 = vst.msk [vmem:[%s3 + $0x60] sm:$0xff] %vm108, %v4798
    %4928 = vst.msk [vmem:[%s3 + $0x68] sm:$0xff] %vm108, %v4804
    %4929 = vst.msk [vmem:[%s3 + $0x70] sm:$0xff] %vm108, %v4810
    %4930 = vst.msk [vmem:[%s3 + $0x78] sm:$0xff] %vm108, %v4816
    %4931 = vst.msk [vmem:[%s3 + $0x80] sm:$0xff] %vm108, %v4822
    %4932 = vst.msk [vmem:[%s3 + $0x88] sm:$0xff] %vm108, %v4828
    %4933 = vst.msk [vmem:[%s3 + $0x90] sm:$0xff] %vm108, %v4834
    %4934 = vst.msk [vmem:[%s3 + $0x98] sm:$0xff] %vm108, %v4840
    %4935 = vst.msk [vmem:[%s3 + $0xa0] sm:$0xff] %vm108, %v4846
    %4936 = vst.msk [vmem:[%s3 + $0xa8] sm:$0xff] %vm108, %v4852
    %4937 = vst.msk [vmem:[%s3 + $0xb0] sm:$0xff] %vm108, %v4858
    %4938 = vst.msk [vmem:[%s3 + $0xb8] sm:$0xff] %vm108, %v4864
    %4939 = vst.msk [vmem:[%s3 + $0xc0] sm:$0xff] %vm108, %v4870
    %4940 = vst.msk [vmem:[%s3 + $0xc8] sm:$0xff] %vm108, %v4876
    %4941 = vst.msk [vmem:[%s3 + $0xd0] sm:$0xff] %vm108, %v4882
    %4942 = vst.msk [vmem:[%s3 + $0xd8] sm:$0xff] %vm108, %v4888
    %4943 = vst.msk [vmem:[%s3 + $0xe0] sm:$0xff] %vm108, %v4894
    %4944 = vst.msk [vmem:[%s3 + $0xe8] sm:$0xff] %vm108, %v4900
    %4945 = vst.msk [vmem:[%s3 + $0xf0] sm:$0xff] %vm108, %v4906
    %4946 = vst.msk [vmem:[%s3 + $0xf8] sm:$0xff] %vm108, %v4912
    %4947 = vxpose.xlu0.b32.start [1/16] %v2410, 128
    %4948 = vxpose.xlu0.b32.cont [2/16] %v2424, 128
    %4949 = vxpose.xlu0.b32.cont [3/16] %v2438, 128
    %4950 = vxpose.xlu0.b32.cont [4/16] %v2452, 128
    %4951 = vxpose.xlu0.b32.cont [5/16] %v2466, 128
    %4952 = vxpose.xlu0.b32.cont [6/16] %v2480, 128
    %4953 = vxpose.xlu0.b32.cont [7/16] %v2494, 128
    %4954 = vxpose.xlu0.b32.cont [8/16] %v2508, 128
    %4955 = vxpose.xlu0.b32.cont [9/16] %v2522, 128
    %4956 = vxpose.xlu0.b32.cont [10/16] %v2536, 128
    %4957 = vxpose.xlu0.b32.cont [11/16] %v2550, 128
    %4958 = vxpose.xlu0.b32.cont [12/16] %v2564, 128
    %4959 = vxpose.xlu0.b32.cont [13/16] %v2578, 128
    %4960 = vxpose.xlu0.b32.cont [14/16] %v2592, 128
    %4961 = vxpose.xlu0.b32.cont [15/16] %v2606, 128
    %4962 = vxpose.xlu0.b32.end [16/16] %v2620, 128
    %v4963 = vpop.trf.xlu0
    %v4964 = vpop.trf.xlu0
    %v4965 = vpop.trf.xlu0
    %v4966 = vpop.trf.xlu0
    %v4967 = vpop.trf.xlu0
    %v4968 = vpop.trf.xlu0
    %v4969 = vpop.trf.xlu0
    %v4970 = vpop.trf.xlu0
    %v4971 = vpop.trf.xlu0
    %v4972 = vpop.trf.xlu0
    %v4973 = vpop.trf.xlu0
    %v4974 = vpop.trf.xlu0
    %v4975 = vpop.trf.xlu0
    %v4976 = vpop.trf.xlu0
    %v4977 = vpop.trf.xlu0
    %v4978 = vpop.trf.xlu0
    %4979 = vxpose.xlu0.b32.start [1/16] %v2634, 128
    %4980 = vxpose.xlu0.b32.cont [2/16] %v2648, 128
    %4981 = vxpose.xlu0.b32.cont [3/16] %v2662, 128
    %4982 = vxpose.xlu0.b32.cont [4/16] %v2676, 128
    %4983 = vxpose.xlu0.b32.cont [5/16] %v2690, 128
    %4984 = vxpose.xlu0.b32.cont [6/16] %v2704, 128
    %4985 = vxpose.xlu0.b32.cont [7/16] %v2718, 128
    %4986 = vxpose.xlu0.b32.cont [8/16] %v2732, 128
    %4987 = vxpose.xlu0.b32.cont [9/16] %v2746, 128
    %4988 = vxpose.xlu0.b32.cont [10/16] %v2760, 128
    %4989 = vxpose.xlu0.b32.cont [11/16] %v2774, 128
    %4990 = vxpose.xlu0.b32.cont [12/16] %v2788, 128
    %4991 = vxpose.xlu0.b32.cont [13/16] %v2802, 128
    %4992 = vxpose.xlu0.b32.cont [14/16] %v2816, 128
    %4993 = vxpose.xlu0.b32.cont [15/16] %v2830, 128
    %4994 = vxpose.xlu0.b32.end [16/16] %v2844, 128
    %v4995 = vpop.trf.xlu0
    %v4996 = vpop.trf.xlu0
    %v4997 = vpop.trf.xlu0
    %v4998 = vpop.trf.xlu0
    %v4999 = vpop.trf.xlu0
    %v5000 = vpop.trf.xlu0
    %v5001 = vpop.trf.xlu0
    %v5002 = vpop.trf.xlu0
    %v5003 = vpop.trf.xlu0
    %v5004 = vpop.trf.xlu0
    %v5005 = vpop.trf.xlu0
    %v5006 = vpop.trf.xlu0
    %v5007 = vpop.trf.xlu0
    %v5008 = vpop.trf.xlu0
    %v5009 = vpop.trf.xlu0
    %v5010 = vpop.trf.xlu0
    %v5011 = vcombine.low %v4963, %v4995
    %v5013 = vunpack.c.l.s4 1966171168
    %v5014 = vunpack.c.0.s8 %v5013
    %v5015 = vlaneseq
    %v5016 = vshrl.u32 %v5015, 7
    %v5017 = vsub.s32 %v5014, %v5016
    %v5018 = vrot.slane %v5011, %v5017
    %v5020 = vunpack.c.l.s4 1966171168
    %v5021 = vunpack.c.0.s8 %v5020
    %v5022 = vlaneseq
    %v5023 = vshrl.u32 %v5022, 7
    %v5024 = vsub.s32 %v5021, %v5023
    %v5025 = vrot.slane %v5018, %v5024
    %v5026 = vlaneseq
    %vm5027 = vcmp.ge.s32.totalorder %v5026, 0
    %vm5028 = vcmp.lt.s32.totalorder %v5026, 256
    %vm5029 = vmand %vm5027, %vm5028
    %5030 = vst.msk [vmem:[#allocation2] sm:$0x3] %vm5029, %v5025
    %5031 = vst [vmem:[#allocation4] sm:$0xff] %v2078
    %5032 = vst [vmem:[#allocation4 + $0x8] sm:$0xff] %v2084
    %5033 = vst [vmem:[#allocation4 + $0x10] sm:$0xff] %v2090
    %5034 = vst [vmem:[#allocation4 + $0x18] sm:$0xff] %v2096
    %5035 = vst [vmem:[#allocation4 + $0x20] sm:$0xff] %v2102
    %5036 = vst [vmem:[#allocation4 + $0x28] sm:$0xff] %v2108
    %5037 = vst [vmem:[#allocation4 + $0x30] sm:$0xff] %v2114
    %5038 = vst [vmem:[#allocation4 + $0x38] sm:$0xff] %v2120
    %5039 = vst [vmem:[#allocation4 + $0x40] sm:$0xff] %v2126
    %5040 = vst [vmem:[#allocation4 + $0x48] sm:$0xff] %v2132
    %5041 = vst [vmem:[#allocation4 + $0x50] sm:$0xff] %v2138
    %5042 = vst [vmem:[#allocation4 + $0x58] sm:$0xff] %v2144
    %5043 = vst [vmem:[#allocation4 + $0x60] sm:$0xff] %v2150
    %5044 = vst [vmem:[#allocation4 + $0x68] sm:$0xff] %v2156
    %5045 = vst [vmem:[#allocation4 + $0x70] sm:$0xff] %v2162
    %5046 = vst [vmem:[#allocation4 + $0x78] sm:$0xff] %v2168
    %5047 = vst [vmem:[#allocation4 + $0x80] sm:$0xff] %v2174
    %5048 = vst [vmem:[#allocation4 + $0x88] sm:$0xff] %v2180
    %5049 = vst [vmem:[#allocation4 + $0x90] sm:$0xff] %v2186
    %5050 = vst [vmem:[#allocation4 + $0x98] sm:$0xff] %v2192
    %5051 = vst [vmem:[#allocation4 + $0xa0] sm:$0xff] %v2198
    %5052 = vst [vmem:[#allocation4 + $0xa8] sm:$0xff] %v2204
    %5053 = vst [vmem:[#allocation4 + $0xb0] sm:$0xff] %v2210
    %5054 = vst [vmem:[#allocation4 + $0xb8] sm:$0xff] %v2216
    %5055 = vst [vmem:[#allocation4 + $0xc0] sm:$0xff] %v2222
    %5056 = vst [vmem:[#allocation4 + $0xc8] sm:$0xff] %v2228
    %5057 = vst [vmem:[#allocation4 + $0xd0] sm:$0xff] %v2234
    %5058 = vst [vmem:[#allocation4 + $0xd8] sm:$0xff] %v2240
    %5059 = vst [vmem:[#allocation4 + $0xe0] sm:$0xff] %v2246
    %5060 = vst [vmem:[#allocation4 + $0xe8] sm:$0xff] %v2252
    %5061 = vst [vmem:[#allocation4 + $0xf0] sm:$0xff] %v2258
    %5062 = vst [vmem:[#allocation4 + $0xf8] sm:$0xff] %v2264
    %5063 = vst.msk [vmem:[%s6] sm:$0xff] %vm108, %v269
    %5064 = vst.msk [vmem:[%s6 + $0x8] sm:$0xff] %vm108, %v270
    %5065 = vst.msk [vmem:[%s6 + $0x10] sm:$0xff] %vm108, %v271
    %5066 = vst.msk [vmem:[%s6 + $0x18] sm:$0xff] %vm108, %v272
    %5067 = vst.msk [vmem:[%s6 + $0x20] sm:$0xff] %vm108, %v273
    %5068 = vst.msk [vmem:[%s6 + $0x28] sm:$0xff] %vm108, %v274
    %5069 = vst.msk [vmem:[%s6 + $0x30] sm:$0xff] %vm108, %v275
    %5070 = vst.msk [vmem:[%s6 + $0x38] sm:$0xff] %vm108, %v276
    %5071 = vst.msk [vmem:[%s6 + $0x40] sm:$0xff] %vm108, %v277
    %5072 = vst.msk [vmem:[%s6 + $0x48] sm:$0xff] %vm108, %v278
    %5073 = vst.msk [vmem:[%s6 + $0x50] sm:$0xff] %vm108, %v279
    %5074 = vst.msk [vmem:[%s6 + $0x58] sm:$0xff] %vm108, %v280
    %5075 = vst.msk [vmem:[%s6 + $0x60] sm:$0xff] %vm108, %v281
    %5076 = vst.msk [vmem:[%s6 + $0x68] sm:$0xff] %vm108, %v282
    %5077 = vst.msk [vmem:[%s6 + $0x70] sm:$0xff] %vm108, %v283
    %5078 = vst.msk [vmem:[%s6 + $0x78] sm:$0xff] %vm108, %v284
    %5079 = vst.msk [vmem:[%s6 + $0x80] sm:$0xff] %vm108, %v285
    %5080 = vst.msk [vmem:[%s6 + $0x88] sm:$0xff] %vm108, %v286
    %5081 = vst.msk [vmem:[%s6 + $0x90] sm:$0xff] %vm108, %v287
    %5082 = vst.msk [vmem:[%s6 + $0x98] sm:$0xff] %vm108, %v288
    %5083 = vst.msk [vmem:[%s6 + $0xa0] sm:$0xff] %vm108, %v289
    %5084 = vst.msk [vmem:[%s6 + $0xa8] sm:$0xff] %vm108, %v290
    %5085 = vst.msk [vmem:[%s6 + $0xb0] sm:$0xff] %vm108, %v291
    %5086 = vst.msk [vmem:[%s6 + $0xb8] sm:$0xff] %vm108, %v292
    %5087 = vst.msk [vmem:[%s6 + $0xc0] sm:$0xff] %vm108, %v293
    %5088 = vst.msk [vmem:[%s6 + $0xc8] sm:$0xff] %vm108, %v294
    %5089 = vst.msk [vmem:[%s6 + $0xd0] sm:$0xff] %vm108, %v295
    %5090 = vst.msk [vmem:[%s6 + $0xd8] sm:$0xff] %vm108, %v296
    %5091 = vst.msk [vmem:[%s6 + $0xe0] sm:$0xff] %vm108, %v297
    %5092 = vst.msk [vmem:[%s6 + $0xe8] sm:$0xff] %vm108, %v298
    %5093 = vst.msk [vmem:[%s6 + $0xf0] sm:$0xff] %vm108, %v299
    %5094 = vst.msk [vmem:[%s6 + $0xf8] sm:$0xff] %vm108, %v300
    // Predicated region
    $region14: #{cosine_sim_codebook_forward.1} parent=1 // pred_check
      _
    $region15: #{cosine_sim_codebook_forward.1} parent=1 // pred_check_branch
      %5096 = sbr.rel (0) target = $region17
    $region16: #{cosine_sim_codebook_forward.1} parent=1 // pred_region
      _
    $region17: #{cosine_sim_codebook_forward.1} parent=1 // pred_fallthru
      _
    // Predicated region
    $region18: #{cosine_sim_codebook_forward.1} parent=1 // pred_check
      _
    $region19: #{cosine_sim_codebook_forward.1} parent=1 // pred_check_branch
      %5098 = sbr.rel (0) target = $region21
    $region20: #{cosine_sim_codebook_forward.1} parent=1 // pred_region
      %s5100 = ssub.s32 32, 32
      %5101 = vsyncadd [#allocation3], %s5100
      %s5103 = sshll.u32 [#allocation2], 4
      %s5104 = int_to_ptr.vmem [resolvable:$true] %s5103
      %5106 = dma.vmem_to_hbm [thread:$0]  %s5104, 32, %s4, [#allocation3]
    $region21: #{cosine_sim_codebook_forward.1} parent=1 // pred_fallthru
      _
    // Predicated region
    $region22: #{cosine_sim_codebook_forward.1} parent=1 // pred_check
      _
    $region23: #{cosine_sim_codebook_forward.1} parent=1 // pred_check_branch
      %5108 = sbr.rel (0) target = $region25
    $region24: #{cosine_sim_codebook_forward.1} parent=1 // pred_region
      %s5110 = ssub.s32 4096, 4096
      %5111 = vsyncadd [#allocation5], %s5110
      %s5112 = sshll.u32 [#allocation4], 4
      %s5113 = int_to_ptr.vmem [resolvable:$true] %s5112
      %5118 = dma.vmem_to_hbm [thread:$0]  %s5113, 4096, %s5, [#allocation5], 128, 128, 8
    $region25: #{cosine_sim_codebook_forward.1} parent=1 // pred_fallthru
      _
    // Predicated region
    $region26: #{cosine_sim_codebook_forward.1} parent=1 // pred_check
      _
    $region27: #{cosine_sim_codebook_forward.1} parent=1 // pred_check_branch
      %5120 = sbr.rel (0) target = $region29
    $region28: #{cosine_sim_codebook_forward.1} parent=1 // pred_region
      _
    $region29: #{cosine_sim_codebook_forward.1} parent=1 // pred_fallthru
      _
    // Predicated region
    $region30: #{cosine_sim_codebook_forward.1} parent=1 // pred_check
      _
    $region31: #{cosine_sim_codebook_forward.1} parent=1 // pred_check_branch
      %5122 = sbr.rel (0) target = $region33
    $region32: #{cosine_sim_codebook_forward.1} parent=1 // pred_region
      _
    $region33: #{cosine_sim_codebook_forward.1} parent=1 // pred_fallthru
      _
    // Predicated region
    $region34: #{cosine_sim_codebook_forward.1} parent=1 // pred_check
      _
    $region35: #{cosine_sim_codebook_forward.1} parent=1 // pred_check_branch
      %5124 = sbr.rel (0) target = $region37
    $region36: #{cosine_sim_codebook_forward.1} parent=1 // pred_region
      %5125 = dma.done [#allocation3], 32
    $region37: #{cosine_sim_codebook_forward.1} parent=1 // pred_fallthru
      _
    // Predicated region
    $region38: #{cosine_sim_codebook_forward.1} parent=1 // pred_check
      _
    $region39: #{cosine_sim_codebook_forward.1} parent=1 // pred_check_branch
      %5127 = sbr.rel (0) target = $region41
    $region40: #{cosine_sim_codebook_forward.1} parent=1 // pred_region
      %5128 = dma.done [#allocation5], 4096
    $region41: #{cosine_sim_codebook_forward.1} parent=1 // pred_fallthru
      _
    // Predicated region
    $region42: #{cosine_sim_codebook_forward.1} parent=1 // pred_check
      _
    $region43: #{cosine_sim_codebook_forward.1} parent=1 // pred_check_branch
      %5130 = sbr.rel (0) target = $region45
    $region44: #{cosine_sim_codebook_forward.1} parent=1 // pred_region
      _
    $region45: #{cosine_sim_codebook_forward.1} parent=1 // pred_fallthru
      _
    %5131 = vsyncpa [#allocation3], 1
    %5132 = vsyncpa [#allocation5], 1

</llo_original>
